<compile_context>
chip_gen: v7x
topology: tpu7x:2x2x1
jax: 0.10.0
libtpu: 0.0.40
codegen_flags: <defaults>
</compile_context>

<pallas_src>
import functools

import jax
import jax.numpy as jnp
from jax.experimental import pallas as pl
from jax.experimental.pallas import tpu as pltpu

# GNNModel.__init__ sets `leakiness = 0.1` but never forwards it to the
# EdgeModel/NodeModel/GlobalModel constructors, so every LeakyReLU runs with
# the sub-module default negative_slope = 0.0 (plain ReLU).
LEAKINESS = 0.0
BN_EPS = 1e-5

NODE_IN = 9
EDGE_IN = 12
EDGE_CAT = 2 * NODE_IN + EDGE_IN      # 30 = cat([x[row], x[col], edge_attr])
HIDDEN = 64
N_CLASSES = 6


def _round_up(n, m):
    return ((n + m - 1) // m) * m


def _bf16(x):
    return x.astype(jnp.bfloat16)


def _act(h, slope):
    # Compile-time branch: plain ReLU is a single VPU max when slope == 0.
    if slope == 0.0:
        return jnp.maximum(h, 0.0)
    return jnp.where(h > 0, h, slope * h)


def _hw_config():
    """Per-generation tile sizes / scoped-VMEM budget derived from hardware."""
    try:
        cap = int(pltpu.get_tpu_info().vmem_capacity_bytes)
    except Exception:  # pragma: no cover - conservative fallback
        cap = 128 * 1024 * 1024
    vmem_limit = min(cap // 2, 64 * 1024 * 1024)
    edge_tile = 1024 if cap >= 100 * 1024 * 1024 else 512   # v5e/v6e vs v7x
    node_tile = 256                                         # scatter window
    return {"vmem_limit": vmem_limit, "edge_tile": edge_tile,
            "node_tile": node_tile}


# ---------------------------------------------------------------------------
# Kernel A: EdgeModel MLP + NodeModel.node_mlp_1 + windowed scatter-sum(col)
# ---------------------------------------------------------------------------
def _edge_stage_kernel(tab_ref, xin_ref, col_ref,
                       w1cat, eb1, ew2, eb2, ew3, eb3,
                       nw1b, nb1, nw2, nb2, nw3, nb3,
                       agg_ref, *, slope, node_tile):
    t = pl.program_id(0)
    blk = tab_ref[t]
    prev = tab_ref[jnp.maximum(t - 1, 0)]

    # New destination node block -> zero the VMEM-resident accumulator window.
    @pl.when((t == 0) | (blk != prev))
    def _():
        agg_ref[...] = jnp.zeros_like(agg_ref)

    xin = xin_ref[...]                                     # [TE, 30] bf16
    # One packed K=30 MXU pass: lanes [:64] = EdgeModel layer 1,
    # lanes [64:] = node_mlp_1 layer-1 contribution of x[row].
    hcat = jnp.dot(xin, w1cat[...], preferred_element_type=jnp.float32)
    h = _act(hcat[:, :HIDDEN] + eb1[...], slope)
    pre_node = hcat[:, HIDDEN:]

    h = _act(jnp.dot(_bf16(h), ew2[...],
                     preferred_element_type=jnp.float32) + eb2[...], slope)
    e_new = jnp.dot(_bf16(h), ew3[...],
                    preferred_element_type=jnp.float32) + eb3[...]

    m = _act(pre_node
             + jnp.dot(_bf16(e_new), nw1b[...],
                       preferred_element_type=jnp.float32)
             + nb1[...], slope)
    m = _act(jnp.dot(_bf16(m), nw2[...],
                     preferred_element_type=jnp.float32) + nb2[...], slope)
    msg = jnp.dot(_bf16(m), nw3[...],
                  preferred_element_type=jnp.float32) + nb3[...]

    # Windowed scatter-sum: one-hot only over the NODE_TILE destination rows.
    col = col_ref[...]                                     # [1, TE] i32 (-1 = pad)
    col_local = col - blk * node_tile
    iota = jax.lax.broadcasted_iota(jnp.int32, (node_tile, 1), 0)
    onehot_t = (iota == col_local).astype(jnp.bfloat16)    # [NODE_TILE, TE]
    agg_ref[...] += jnp.dot(onehot_t, _bf16(msg),
                            preferred_element_type=jnp.float32)


# ---------------------------------------------------------------------------
# Kernel B: node_mlp_2 + scatter-sum over graph ids + fused global stage
# ---------------------------------------------------------------------------
def _node_global_kernel(x_ref, agg_ref, invc_ref, bat_ref, invg_ref,
                        w1a, w1b, b1, w2, b2, w3, b3,
                        gw1, gb1, gw2, gb2, gw3, gb3, pw, pb,
                        out_ref, usum_ref, *, slope, b_rows, n_graphs):
    i = pl.program_id(0)

    @pl.when(i == 0)
    def _():
        usum_ref[...] = jnp.zeros_like(usum_ref)

    # Finish the scatter-mean of the edge messages.  invc == 0 both for nodes
    # with no incoming edges and for node blocks kernel A never visited
    # (whose HBM rows are uninitialized) -> the where() neutralizes them.
    invc = invc_ref[...]
    agg = jnp.where(invc > 0, agg_ref[...] * invc, 0.0)

    h = (jnp.dot(x_ref[...], w1a[...], preferred_element_type=jnp.float32)
         + jnp.dot(_bf16(agg), w1b[...], preferred_element_type=jnp.float32)
         + b1[...])
    h = _act(h, slope)
    h = _act(jnp.dot(_bf16(h), w2[...],
                     preferred_element_type=jnp.float32) + b2[...], slope)
    x_new = jnp.dot(_bf16(h), w3[...],
                    preferred_element_type=jnp.float32) + b3[...]

    bat = bat_ref[...]                                     # [1, NT] i32 (-1 = pad)
    iota = jax.lax.broadcasted_iota(jnp.int32, (b_rows, 1), 0)
    onehot_t = (iota == bat).astype(jnp.bfloat16)          # [b_rows, NT]
    usum_ref[...] += jnp.dot(onehot_t, _bf16(x_new),
                             preferred_element_type=jnp.float32)

    # Fused global stage on the last grid step: scatter-mean -> global_mlp ->
    # Linear(64, 6) -> Softmax, written straight to the [B, 6] output.
    @pl.when(i == pl.num_programs(0) - 1)
    def _():
        u = usum_ref[...] * invg_ref[...]
        g = _act(jnp.dot(_bf16(u), gw1[...],
                         preferred_element_type=jnp.float32) + gb1[...], slope)
        g = _act(jnp.dot(_bf16(g), gw2[...],
                         preferred_element_type=jnp.float32) + gb2[...], slope)
        g = jnp.dot(_bf16(g), gw3[...],
                    preferred_element_type=jnp.float32) + gb3[...]
        logits = jnp.dot(_bf16(g), pw[...],
                         preferred_element_type=jnp.float32) + pb[...]
        mx = jnp.max(logits, axis=1, keepdims=True)
        ex = jnp.exp(logits - mx)
        probs = ex / jnp.sum(ex, axis=1, keepdims=True)    # exact division
        out_ref[...] = probs[:n_graphs]


# ---------------------------------------------------------------------------
# pallas_call wrappers
# ---------------------------------------------------------------------------
def _resident_a(shape):
    return pl.BlockSpec(shape, lambda t, tab: (0, 0))


def _resident_b(shape):
    return pl.BlockSpec(shape, lambda i: (0, 0))


def run_edge_stage(pa, blk_tab, xin_p, col_p, n_pad, node_tile, tile_e,
                   vmem_limit):
    weights = (pa["w1cat"], pa["eb1"], pa["ew2"], pa["eb2"], pa["ew3"], pa["eb3"],
               pa["nw1b"], pa["nb1"], pa["nw2"], pa["nb2"], pa["nw3"], pa["nb3"])
    e_cap = xin_p.shape[0]
    grid_spec = pltpu.PrefetchScalarGridSpec(
        num_scalar_prefetch=1,
        grid=(e_cap // tile_e,),
        in_specs=[pl.BlockSpec((tile_e, EDGE_CAT), lambda t, tab: (t, 0)),
                  pl.BlockSpec((1, tile_e), lambda t, tab: (0, t))]
                 + [_resident_a(w.shape) for w in weights],
        out_specs=pl.BlockSpec((node_tile, HIDDEN), lambda t, tab: (tab[t], 0)),
    )
    return pl.pallas_call(
        functools.partial(_edge_stage_kernel, slope=LEAKINESS,
                          node_tile=node_tile),
        out_shape=jax.ShapeDtypeStruct((n_pad, HIDDEN), jnp.float32),
        grid_spec=grid_spec,
        compiler_params=pltpu.CompilerParams(
            dimension_semantics=("arbitrary",),   # output window is revisited
            vmem_limit_bytes=vmem_limit),
    )(blk_tab, xin_p, col_p, *weights)


def run_node_global_stage(pb_params, x_p, agg, invc, bat_2d, invg,
                          node_tile, num_graphs, b_rows, vmem_limit):
    p = pb_params
    weights = (p["w1a"], p["w1b"], p["b1"], p["w2"], p["b2"], p["w3"], p["b3"],
               p["gw1"], p["gb1"], p["gw2"], p["gb2"], p["gw3"], p["gb3"],
               p["pw"], p["pb"])
    n_pad = x_p.shape[0]
    in_specs = [
        pl.BlockSpec((node_tile, NODE_IN), lambda i: (i, 0)),
        pl.BlockSpec((node_tile, HIDDEN), lambda i: (i, 0)),
        pl.BlockSpec((node_tile, 1), lambda i: (i, 0)),
        pl.BlockSpec((1, node_tile), lambda i: (0, i)),
        pl.BlockSpec((b_rows, 1), lambda i: (0, 0)),
    ] + [_resident_b(w.shape) for w in weights]
    return pl.pallas_call(
        functools.partial(_node_global_kernel, slope=LEAKINESS,
                          b_rows=b_rows, n_graphs=num_graphs),
        out_shape=jax.ShapeDtypeStruct((num_graphs, N_CLASSES), jnp.float32),
        grid=(n_pad // node_tile,),
        in_specs=in_specs,
        out_specs=pl.BlockSpec((num_graphs, N_CLASSES), lambda i: (0, 0)),
        scratch_shapes=[pltpu.VMEM((b_rows, HIDDEN), jnp.float32)],
        compiler_params=pltpu.CompilerParams(
            dimension_semantics=("arbitrary",),
            vmem_limit_bytes=vmem_limit),
    )(x_p, agg, invc, bat_2d, invg, *weights)


# ---------------------------------------------------------------------------
# Parameter init (deterministic, PyTorch-default-like) with BN folding
# ---------------------------------------------------------------------------
def _init_linear(key, din, dout):
    kw, kb = jax.random.split(key)
    bound = 1.0 / float(din) ** 0.5
    w = jax.random.uniform(kw, (din, dout), jnp.float32, -bound, bound)
    b = jax.random.uniform(kb, (1, dout), jnp.float32, -bound, bound)
    return w, b


def _fold_bn_into_linear(w, b, gamma, beta, mean, var):
    # Module ordering is BatchNorm1d -> Linear, so
    #   y = (x*s + t) @ W + b = x @ (diag(s) W) + (t @ W + b)
    # with s = gamma/sqrt(var+eps), t = beta - mean*s (eval-mode running stats).
    scale = gamma / jnp.sqrt(var + BN_EPS)
    shift = beta - mean * scale
    return w * scale[:, None], b + shift[None, :] @ w


def _default_bn(d):
    # PyTorch defaults: gamma=1, beta=0, running_mean=0, running_var=1.
    return (jnp.ones((d,), jnp.float32), jnp.zeros((d,), jnp.float32),
            jnp.zeros((d,), jnp.float32), jnp.ones((d,), jnp.float32))


def _init_mlp3(key, din, dout):
    k1, k2, k3 = jax.random.split(key, 3)
    w1, b1 = _fold_bn_into_linear(*_init_linear(k1, din, dout), *_default_bn(din))
    w2, b2 = _fold_bn_into_linear(*_init_linear(k2, dout, dout), *_default_bn(dout))
    w3, b3 = _fold_bn_into_linear(*_init_linear(k3, dout, dout), *_default_bn(dout))
    return {"w1": w1, "b1": b1, "w2": w2, "b2": b2, "w3": w3, "b3": b3}


def init_gnn_params(key):
    ke, kn1, kn2, kg, kp = jax.random.split(key, 5)
    edge = _init_mlp3(ke, EDGE_CAT, HIDDEN)           # cat([x_r, x_c, ea]) -> 64
    node1 = _init_mlp3(kn1, NODE_IN + HIDDEN, HIDDEN)  # cat([x_r, e_new]) -> 64
    node2 = _init_mlp3(kn2, NODE_IN + HIDDEN, HIDDEN)  # cat([x, agg])     -> 64
    glob = _init_mlp3(kg, HIDDEN, HIDDEN)
    pw, pb = _init_linear(kp, HIDDEN, N_CLASSES)

    # Pack EdgeModel layer-1 and node_mlp_1 layer-1 (x[row] rows) side by side:
    # one [30, 128] weight -> a single MXU pass yields 128 output lanes.
    w1cat = jnp.zeros((EDGE_CAT, 2 * HIDDEN), jnp.float32)
    w1cat = w1cat.at[:, :HIDDEN].set(edge["w1"])
    w1cat = w1cat.at[:NODE_IN, HIDDEN:].set(node1["w1"][:NODE_IN])

    a = {"w1cat": _bf16(w1cat), "eb1": edge["b1"],
         "ew2": _bf16(edge["w2"]), "eb2": edge["b2"],
         "ew3": _bf16(edge["w3"]), "eb3": edge["b3"],
         "nw1b": _bf16(node1["w1"][NODE_IN:]), "nb1": node1["b1"],
         "nw2": _bf16(node1["w2"]), "nb2": node1["b2"],
         "nw3": _bf16(node1["w3"]), "nb3": node1["b3"]}
    b = {"w1a": _bf16(node2["w1"][:NODE_IN]),
         "w1b": _bf16(node2["w1"][NODE_IN:]),
         "b1": node2["b1"], "w2": _bf16(node2["w2"]), "b2": node2["b2"],
         "w3": _bf16(node2["w3"]), "b3": node2["b3"],
         "gw1": _bf16(glob["w1"]), "gb1": glob["b1"],
         "gw2": _bf16(glob["w2"]), "gb2": glob["b2"],
         "gw3": _bf16(glob["w3"]), "gb3": glob["b3"],
         "pw": _bf16(pw), "pb": pb}
    return {"A": a, "B": b}


# ---------------------------------------------------------------------------
# Wrapper-side edge layout: sort by col, group-pad per node block (static cap)
# ---------------------------------------------------------------------------
def _prepare_edges(x, edge_index, edge_attr, n_pad, node_tile, tile_e):
    n_edges = edge_attr.shape[0]
    nb = n_pad // node_tile
    row = edge_index[0].astype(jnp.int32)
    col = edge_index[1].astype(jnp.int32)

    # Sort edges by destination node so each edge tile targets one node block.
    order = jnp.argsort(col)
    row_s, col_s = row[order], col[order]
    xin = _bf16(jnp.concatenate([x[row_s], x[col_s], edge_attr[order]], axis=1))

    blk_of_edge = col_s // node_tile
    cnt = jnp.zeros((nb,), jnp.int32).at[blk_of_edge].add(1)
    padded_cnt = ((cnt + tile_e - 1) // tile_e) * tile_e
    pcum = jnp.cumsum(padded_cnt)
    padded_off = pcum - padded_cnt
    rank_in_blk = (jnp.arange(n_edges, dtype=jnp.int32)
                   - (jnp.cumsum(cnt) - cnt)[blk_of_edge])
    dest = padded_off[blk_of_edge] + rank_in_blk

    # Static capacity: each non-empty node block wastes < tile_e slots.
    e_cap = _round_up(n_edges, tile_e) + max(0, min(nb, n_edges) - 1) * tile_e
    xin_p = jnp.zeros((e_cap, EDGE_CAT), jnp.bfloat16).at[dest].set(xin)
    col_p = jnp.full((e_cap,), -1, jnp.int32).at[dest].set(col_s)

    num_tiles = e_cap // tile_e
    tile_starts = jnp.arange(num_tiles, dtype=jnp.int32) * tile_e
    blk_tab = jnp.searchsorted(pcum, tile_starts, side="right").astype(jnp.int32)
    blk_tab = jnp.minimum(blk_tab, nb - 1)   # fully-padded trailing tiles
    return xin_p, col_p.reshape(1, e_cap), blk_tab


# ---------------------------------------------------------------------------
# Full forward (MetaLayer: edge -> node -> global, then predictor)
# ---------------------------------------------------------------------------
def gnn_forward(params, x, edge_index, edge_attr, batch, num_graphs):
    cfg = _hw_config()
    n_nodes = x.shape[0]
    n_edges = edge_attr.shape[0]

    # Node window: one full-size block for small graphs, 128-aligned window
    # otherwise (so [1, n_pad] id rows tile cleanly).
    if _round_up(n_nodes, 8) <= cfg["node_tile"]:
        node_tile = _round_up(n_nodes, 8)
    else:
        node_tile = cfg["node_tile"]
    n_pad = _round_up(n_nodes, node_tile)
    nb = n_pad // node_tile

    if nb == 1 and _round_up(n_edges, 8) <= cfg["edge_tile"]:
        tile_e = _round_up(n_edges, 8)
    else:
        tile_e = cfg["edge_tile"]

    col = edge_index[1].astype(jnp.int32)

    # --- Stage A: EdgeModel MLP + node_mlp_1 + windowed scatter-sum over col.
    xin_p, col_p, blk_tab = _prepare_edges(x, edge_index, edge_attr,
                                           n_pad, node_tile, tile_e)
    agg_sum = run_edge_stage(params["A"], blk_tab, xin_p, col_p,
                             n_pad, node_tile, tile_e, cfg["vmem_limit"])

    # scatter-mean normalizers (O(E)/O(N) XLA work).
    # TODO(synk): could ride kernel A's one-hot matmul via an extra ones column.
    deg = jnp.zeros((n_pad,), jnp.float32).at[col].add(1.0)
    invc = jnp.where(deg > 0, 1.0 / jnp.maximum(deg, 1.0), 0.0).reshape(n_pad, 1)

    b_rows = max(8, _round_up(num_graphs, 8))
    gcnt = jnp.zeros((b_rows,), jnp.float32).at[batch].add(1.0)
    invg = jnp.where(gcnt > 0, 1.0 / jnp.maximum(gcnt, 1.0), 0.0).reshape(b_rows, 1)

    # --- Stage B: node_mlp_2 + scatter over graph ids + fused global stage.
    x_p = _bf16(jnp.pad(x, ((0, n_pad - n_nodes), (0, 0))))
    bat_2d = jnp.pad(batch.astype(jnp.int32), (0, n_pad - n_nodes),
                     constant_values=-1).reshape(1, n_pad)
    return run_node_global_stage(params["B"], x_p, agg_sum, invc, bat_2d, invg,
                                 node_tile, num_graphs, b_rows,
                                 cfg["vmem_limit"])


# ---------------------------------------------------------------------------
# Pure-JAX reference (same folded / bf16-quantized weights, f32 activations)
# ---------------------------------------------------------------------------
def gnn_forward_reference(params, x, edge_index, edge_attr, batch, num_graphs):
    f32 = lambda a: a.astype(jnp.float32)
    A, B = params["A"], params["B"]
    act = lambda h: _act(h, LEAKINESS)
    row, col = edge_index[0], edge_index[1]

    xin = jnp.concatenate([x[row], x[col], edge_attr], axis=1)
    hcat = xin @ f32(A["w1cat"])
    h = act(hcat[:, :HIDDEN] + A["eb1"])
    pre = hcat[:, HIDDEN:]
    h = act(h @ f32(A["ew2"]) + A["eb2"])
    e_new = h @ f32(A["ew3"]) + A["eb3"]
    m = act(pre + e_new @ f32(A["nw1b"]) + A["nb1"])
    m = act(m @ f32(A["nw2"]) + A["nb2"])
    msg = m @ f32(A["nw3"]) + A["nb3"]

    n = x.shape[0]
    agg = jnp.zeros((n, HIDDEN), jnp.float32).at[col].add(msg)
    deg = jnp.zeros((n,), jnp.float32).at[col].add(1.0)
    agg = jnp.where(deg[:, None] > 0, agg / jnp.maximum(deg, 1.0)[:, None], 0.0)

    h = act(x @ f32(B["w1a"]) + agg @ f32(B["w1b"]) + B["b1"])
    h = act(h @ f32(B["w2"]) + B["b2"])
    x_new = h @ f32(B["w3"]) + B["b3"]

    gcnt = jnp.zeros((num_graphs,), jnp.float32).at[batch].add(1.0)
    u = jnp.zeros((num_graphs, HIDDEN), jnp.float32).at[batch].add(x_new)
    u = u / jnp.maximum(gcnt, 1.0)[:, None]

    g = act(u @ f32(B["gw1"]) + B["gb1"])
    g = act(g @ f32(B["gw2"]) + B["gb2"])
    g = g @ f32(B["gw3"]) + B["gb3"]
    logits = g @ f32(B["pw"]) + B["pb"]
    return jax.nn.softmax(logits, axis=1)


if __name__ == "__main__":
    key = jax.random.PRNGKey(0)
    k_param, k_x, k_e, k_row, k_col = jax.random.split(key, 5)

    N = 16           # nodes
    E = 32           # edges
    NUM_GRAPHS = 2   # graphs in the batch

    params = init_gnn_params(k_param)

    x = jax.random.normal(k_x, (N, NODE_IN), jnp.float32)            # data.x
    edge_attr = jax.random.normal(k_e, (E, EDGE_IN), jnp.float32)    # data.edge_attr
    edge_index = jnp.stack([                                         # data.edge_index
        jax.random.randint(k_row, (E,), 0, N),
        jax.random.randint(k_col, (E,), 0, N),
    ]).astype(jnp.int32)
    batch = jnp.concatenate([                                        # batch vector
        jnp.zeros((N // 2,), jnp.int32),
        jnp.ones((N - N // 2,), jnp.int32),
    ])

    fwd = jax.jit(functools.partial(gnn_forward, num_graphs=NUM_GRAPHS))
    u_pred = jax.block_until_ready(fwd(params, x, edge_index, edge_attr, batch))

    assert u_pred.shape == (NUM_GRAPHS, N_CLASSES)
    assert bool(jnp.all(jnp.isfinite(u_pred)))
    assert bool(jnp.allclose(jnp.sum(u_pred, axis=1), 1.0, atol=1e-3))

    u_ref = gnn_forward_reference(params, x, edge_index, edge_attr, batch,
                                  NUM_GRAPHS)
    assert bool(jnp.max(jnp.abs(u_pred - u_ref)) < 5e-2)

    print("KERNEL_OK")
</pallas_src>

<mosaic_0001>
module attributes {stable_mosaic.version = 11 : i64} {
  func.func private @main(%arg0: i32) attributes {dimension_semantics = [#tpu.dimension_semantics<core_parallel>], iteration_bounds = array<i64: 2>, tpu.core_type = #tpu.core_type<sc_scalar_subcore>, window_params = []} {
    return
  }
}

module attributes {stable_mosaic.version = 11 : i64} {
  func.func private @main(%arg0: i32) attributes {dimension_semantics = [#tpu.dimension_semantics<core_parallel>], iteration_bounds = array<i64: 2>, tpu.core_type = #tpu.core_type<sc_scalar_subcore>, window_params = []} {
    return
  }
}

module attributes {stable_mosaic.version = 11 : i64} {
  func.func @_node_global_kernel(%arg0: i32, %arg1: memref<16x9xbf16, #tpu.memory_space<vmem>>, %arg2: memref<16x64xf32, #tpu.memory_space<vmem>>, %arg3: memref<16x1xf32, #tpu.memory_space<vmem>>, %arg4: memref<1x16xi32, #tpu.memory_space<vmem>>, %arg5: memref<8x1xf32, #tpu.memory_space<vmem>>, %arg6: memref<9x64xbf16, #tpu.memory_space<vmem>>, %arg7: memref<64x64xbf16, #tpu.memory_space<vmem>>, %arg8: memref<1x64xf32, #tpu.memory_space<vmem>>, %arg9: memref<64x64xbf16, #tpu.memory_space<vmem>>, %arg10: memref<1x64xf32, #tpu.memory_space<vmem>>, %arg11: memref<64x64xbf16, #tpu.memory_space<vmem>>, %arg12: memref<1x64xf32, #tpu.memory_space<vmem>>, %arg13: memref<64x64xbf16, #tpu.memory_space<vmem>>, %arg14: memref<1x64xf32, #tpu.memory_space<vmem>>, %arg15: memref<64x64xbf16, #tpu.memory_space<vmem>>, %arg16: memref<1x64xf32, #tpu.memory_space<vmem>>, %arg17: memref<64x64xbf16, #tpu.memory_space<vmem>>, %arg18: memref<1x64xf32, #tpu.memory_space<vmem>>, %arg19: memref<64x6xbf16, #tpu.memory_space<vmem>>, %arg20: memref<1x6xf32, #tpu.memory_space<vmem>>, %arg21: memref<2x6xf32, #tpu.memory_space<vmem>>, %arg22: memref<8x64xf32, #tpu.memory_space<vmem>>) attributes {dimension_semantics = [#tpu.dimension_semantics<arbitrary>], iteration_bounds = array<i64: 1>, scalar_prefetch = 0 : i64, scratch_operands = 1 : i64, tpu.core_type = #tpu.core_type<tc>, window_params = [{transform_indices = @transform_0, window_bounds = array<i64: 16, 9>}, {transform_indices = @transform_1, window_bounds = array<i64: 16, 64>}, {transform_indices = @transform_2, window_bounds = array<i64: 16, 1>}, {transform_indices = @transform_3, window_bounds = array<i64: 1, 16>}, {pipeline_mode = #tpu.pipeline_mode<synchronous>, transform_indices = @transform_4, window_bounds = array<i64: 8, 1>}, {pipeline_mode = #tpu.pipeline_mode<synchronous>, transform_indices = @transform_5, window_bounds = array<i64: 9, 64>}, {pipeline_mode = #tpu.pipeline_mode<synchronous>, transform_indices = @transform_6, window_bounds = array<i64: 64, 64>}, {pipeline_mode = #tpu.pipeline_mode<synchronous>, transform_indices = @transform_7, window_bounds = array<i64: 1, 64>}, {pipeline_mode = #tpu.pipeline_mode<synchronous>, transform_indices = @transform_8, window_bounds = array<i64: 64, 64>}, {pipeline_mode = #tpu.pipeline_mode<synchronous>, transform_indices = @transform_9, window_bounds = array<i64: 1, 64>}, {pipeline_mode = #tpu.pipeline_mode<synchronous>, transform_indices = @transform_10, window_bounds = array<i64: 64, 64>}, {pipeline_mode = #tpu.pipeline_mode<synchronous>, transform_indices = @transform_11, window_bounds = array<i64: 1, 64>}, {pipeline_mode = #tpu.pipeline_mode<synchronous>, transform_indices = @transform_12, window_bounds = array<i64: 64, 64>}, {pipeline_mode = #tpu.pipeline_mode<synchronous>, transform_indices = @transform_13, window_bounds = array<i64: 1, 64>}, {pipeline_mode = #tpu.pipeline_mode<synchronous>, transform_indices = @transform_14, window_bounds = array<i64: 64, 64>}, {pipeline_mode = #tpu.pipeline_mode<synchronous>, transform_indices = @transform_15, window_bounds = array<i64: 1, 64>}, {pipeline_mode = #tpu.pipeline_mode<synchronous>, transform_indices = @transform_16, window_bounds = array<i64: 64, 64>}, {pipeline_mode = #tpu.pipeline_mode<synchronous>, transform_indices = @transform_17, window_bounds = array<i64: 1, 64>}, {pipeline_mode = #tpu.pipeline_mode<synchronous>, transform_indices = @transform_18, window_bounds = array<i64: 64, 6>}, {pipeline_mode = #tpu.pipeline_mode<synchronous>, transform_indices = @transform_19, window_bounds = array<i64: 1, 6>}, {pipeline_mode = #tpu.pipeline_mode<synchronous>, transform_indices = @transform_20, window_bounds = array<i64: 2, 6>}]} {
    %c0_i32 = arith.constant 0 : i32
    %0 = arith.cmpi eq, %arg0, %c0_i32 : i32
    %1 = arith.extui %0 : i1 to i32
    %c0_i32_0 = arith.constant 0 : i32
    %2 = arith.cmpi ne, %1, %c0_i32_0 : i32
    scf.if %2 {
      %cst_36 = arith.constant 0.000000e+00 : f32
      %55 = vector.broadcast %cst_36 : f32 to vector<8x64xf32>
      %c0_37 = arith.constant 0 : index
      %c0_38 = arith.constant 0 : index
      %56 = vector.load %arg22[%c0_37, %c0_38] : memref<8x64xf32, #tpu.memory_space<vmem>>, vector<8x64xf32>
      tpu.vector_store %arg22[%c0_37, %c0_38], %55 {strides = array<i32>} : memref<8x64xf32, #tpu.memory_space<vmem>>, vector<8x64xf32>,
    } else {
    }
    %c0 = arith.constant 0 : index
    %c0_1 = arith.constant 0 : index
    %3 = vector.load %arg3[%c0, %c0_1] : memref<16x1xf32, #tpu.memory_space<vmem>>, vector<16x1xf32>
    %cst = arith.constant 0.000000e+00 : f32
    %4 = vector.broadcast %cst : f32 to vector<16x1xf32>
    %5 = arith.cmpf ogt, %3, %4 : vector<16x1xf32>
    %c0_2 = arith.constant 0 : index
    %c0_3 = arith.constant 0 : index
    %6 = vector.load %arg2[%c0_2, %c0_3] : memref<16x64xf32, #tpu.memory_space<vmem>>, vector<16x64xf32>
    %7 = vector.broadcast %3 : vector<16x1xf32> to vector<16x64xf32>
    %8 = arith.mulf %6, %7 : vector<16x64xf32>
    %cst_4 = arith.constant 0.000000e+00 : f32
    %9 = vector.shape_cast %5 : vector<16x1xi1> to vector<16x1xi1>
    %10 = vector.broadcast %9 : vector<16x1xi1> to vector<16x64xi1>
    %11 = vector.broadcast %cst_4 : f32 to vector<16x64xf32>
    %12 = arith.select %10, %8, %11 : vector<16x64xi1>, vector<16x64xf32>
    %c0_5 = arith.constant 0 : index
    %c0_6 = arith.constant 0 : index
    %13 = vector.load %arg1[%c0_5, %c0_6] : memref<16x9xbf16, #tpu.memory_space<vmem>>, vector<16x9xbf16>
    %c0_7 = arith.constant 0 : index
    %c0_8 = arith.constant 0 : index
    %14 = vector.load %arg6[%c0_7, %c0_8] : memref<9x64xbf16, #tpu.memory_space<vmem>>, vector<9x64xbf16>
    %cst_9 = arith.constant dense<0.000000e+00> : vector<16x64xf32>
    %15 = tpu.matmul %13, %14, %cst_9 {dimension_numbers = #tpu.dot_dimension_numbers<[1], [0], [0], [1], [0, 0, 1, 1], [], []>} : vector<16x9xbf16>, vector<9x64xbf16>, vector<16x64xf32> -> vector<16x64xf32>
    %16 = arith.truncf %12 : vector<16x64xf32> to vector<16x64xbf16>
    %c0_10 = arith.constant 0 : index
    %c0_11 = arith.constant 0 : index
    %17 = vector.load %arg7[%c0_10, %c0_11] : memref<64x64xbf16, #tpu.memory_space<vmem>>, vector<64x64xbf16>
    %cst_12 = arith.constant dense<0.000000e+00> : vector<16x64xf32>
    %18 = tpu.matmul %16, %17, %cst_12 {dimension_numbers = #tpu.dot_dimension_numbers<[1], [0], [0], [1], [0, 0, 1, 1], [], []>} : vector<16x64xbf16>, vector<64x64xbf16>, vector<16x64xf32> -> vector<16x64xf32>
    %19 = arith.addf %15, %18 : vector<16x64xf32>
    %c0_13 = arith.constant 0 : index
    %c0_14 = arith.constant 0 : index
    %20 = vector.load %arg8[%c0_13, %c0_14] : memref<1x64xf32, #tpu.memory_space<vmem>>, vector<1x64xf32>
    %21 = vector.broadcast %20 : vector<1x64xf32> to vector<16x64xf32>
    %22 = arith.addf %19, %21 : vector<16x64xf32>
    %cst_15 = arith.constant 0.000000e+00 : f32
    %23 = vector.broadcast %cst_15 : f32 to vector<16x64xf32>
    %24 = arith.maximumf %22, %23 : vector<16x64xf32>
    %25 = arith.truncf %24 : vector<16x64xf32> to vector<16x64xbf16>
    %c0_16 = arith.constant 0 : index
    %c0_17 = arith.constant 0 : index
    %26 = vector.load %arg9[%c0_16, %c0_17] : memref<64x64xbf16, #tpu.memory_space<vmem>>, vector<64x64xbf16>
    %cst_18 = arith.constant dense<0.000000e+00> : vector<16x64xf32>
    %27 = tpu.matmul %25, %26, %cst_18 {dimension_numbers = #tpu.dot_dimension_numbers<[1], [0], [0], [1], [0, 0, 1, 1], [], []>} : vector<16x64xbf16>, vector<64x64xbf16>, vector<16x64xf32> -> vector<16x64xf32>
    %c0_19 = arith.constant 0 : index
    %c0_20 = arith.constant 0 : index
    %28 = vector.load %arg10[%c0_19, %c0_20] : memref<1x64xf32, #tpu.memory_space<vmem>>, vector<1x64xf32>
    %29 = vector.broadcast %28 : vector<1x64xf32> to vector<16x64xf32>
    %30 = arith.addf %27, %29 : vector<16x64xf32>
    %cst_21 = arith.constant 0.000000e+00 : f32
    %31 = vector.broadcast %cst_21 : f32 to vector<16x64xf32>
    %32 = arith.maximumf %30, %31 : vector<16x64xf32>
    %33 = arith.truncf %32 : vector<16x64xf32> to vector<16x64xbf16>
    %c0_22 = arith.constant 0 : index
    %c0_23 = arith.constant 0 : index
    %34 = vector.load %arg11[%c0_22, %c0_23] : memref<64x64xbf16, #tpu.memory_space<vmem>>, vector<64x64xbf16>
    %cst_24 = arith.constant dense<0.000000e+00> : vector<16x64xf32>
    %35 = tpu.matmul %33, %34, %cst_24 {dimension_numbers = #tpu.dot_dimension_numbers<[1], [0], [0], [1], [0, 0, 1, 1], [], []>} : vector<16x64xbf16>, vector<64x64xbf16>, vector<16x64xf32> -> vector<16x64xf32>
    %c0_25 = arith.constant 0 : index
    %c0_26 = arith.constant 0 : index
    %36 = vector.load %arg12[%c0_25, %c0_26] : memref<1x64xf32, #tpu.memory_space<vmem>>, vector<1x64xf32>
    %37 = vector.broadcast %36 : vector<1x64xf32> to vector<16x64xf32>
    %38 = arith.addf %35, %37 : vector<16x64xf32>
    %c0_27 = arith.constant 0 : index
    %c0_28 = arith.constant 0 : index
    %39 = vector.load %arg4[%c0_27, %c0_28] : memref<1x16xi32, #tpu.memory_space<vmem>>, vector<1x16xi32>
    %40 = tpu.iota {dimensions = array<i32: 0>} : vector<8x1xi32>
    %41 = vector.broadcast %40 : vector<8x1xi32> to vector<8x16xi32>
    %42 = vector.broadcast %39 : vector<1x16xi32> to vector<8x16xi32>
    %43 = arith.cmpi eq, %41, %42 : vector<8x16xi32>
    %44 = arith.extui %43 : vector<8x16xi1> to vector<8x16xi32>
    %45 = arith.sitofp %44 : vector<8x16xi32> to vector<8x16xf32>
    %46 = arith.truncf %45 : vector<8x16xf32> to vector<8x16xbf16>
    %c0_29 = arith.constant 0 : index
    %c0_30 = arith.constant 0 : index
    %47 = vector.load %arg22[%c0_29, %c0_30] : memref<8x64xf32, #tpu.memory_space<vmem>>, vector<8x64xf32>
    %48 = arith.truncf %38 : vector<16x64xf32> to vector<16x64xbf16>
    %cst_31 = arith.constant dense<0.000000e+00> : vector<8x64xf32>
    %49 = tpu.matmul %46, %48, %cst_31 {dimension_numbers = #tpu.dot_dimension_numbers<[1], [0], [0], [1], [0, 0, 1, 1], [], []>} : vector<8x16xbf16>, vector<16x64xbf16>, vector<8x64xf32> -> vector<8x64xf32>
    %50 = arith.addf %47, %49 : vector<8x64xf32>
    %c0_32 = arith.constant 0 : index
    %c0_33 = arith.constant 0 : index
    %51 = vector.load %arg22[%c0_32, %c0_33] : memref<8x64xf32, #tpu.memory_space<vmem>>, vector<8x64xf32>
    tpu.vector_store %arg22[%c0_32, %c0_33], %50 {strides = array<i32>} : memref<8x64xf32, #tpu.memory_space<vmem>>, vector<8x64xf32>,
    %c0_i32_34 = arith.constant 0 : i32
    %52 = arith.cmpi eq, %arg0, %c0_i32_34 : i32
    %53 = arith.extui %52 : i1 to i32
    %c0_i32_35 = arith.constant 0 : i32
    %54 = arith.cmpi ne, %53, %c0_i32_35 : i32
    scf.if %54 {
      %c0_36 = arith.constant 0 : index
      %c0_37 = arith.constant 0 : index
      %55 = vector.load %arg22[%c0_36, %c0_37] : memref<8x64xf32, #tpu.memory_space<vmem>>, vector<8x64xf32>
      %c0_38 = arith.constant 0 : index
      %c0_39 = arith.constant 0 : index
      %56 = vector.load %arg5[%c0_38, %c0_39] : memref<8x1xf32, #tpu.memory_space<vmem>>, vector<8x1xf32>
      %57 = vector.broadcast %56 : vector<8x1xf32> to vector<8x64xf32>
      %58 = arith.mulf %55, %57 : vector<8x64xf32>
      %59 = arith.truncf %58 : vector<8x64xf32> to vector<8x64xbf16>
      %c0_40 = arith.constant 0 : index
      %c0_41 = arith.constant 0 : index
      %60 = vector.load %arg13[%c0_40, %c0_41] : memref<64x64xbf16, #tpu.memory_space<vmem>>, vector<64x64xbf16>
      %cst_42 = arith.constant dense<0.000000e+00> : vector<8x64xf32>
      %61 = tpu.matmul %59, %60, %cst_42 {dimension_numbers = #tpu.dot_dimension_numbers<[1], [0], [0], [1], [0, 0, 1, 1], [], []>} : vector<8x64xbf16>, vector<64x64xbf16>, vector<8x64xf32> -> vector<8x64xf32>
      %c0_43 = arith.constant 0 : index
      %c0_44 = arith.constant 0 : index
      %62 = vector.load %arg14[%c0_43, %c0_44] : memref<1x64xf32, #tpu.memory_space<vmem>>, vector<1x64xf32>
      %63 = vector.broadcast %62 : vector<1x64xf32> to vector<8x64xf32>
      %64 = arith.addf %61, %63 : vector<8x64xf32>
      %cst_45 = arith.constant 0.000000e+00 : f32
      %65 = vector.broadcast %cst_45 : f32 to vector<8x64xf32>
      %66 = arith.maximumf %64, %65 : vector<8x64xf32>
      %67 = arith.truncf %66 : vector<8x64xf32> to vector<8x64xbf16>
      %c0_46 = arith.constant 0 : index
      %c0_47 = arith.constant 0 : index
      %68 = vector.load %arg15[%c0_46, %c0_47] : memref<64x64xbf16, #tpu.memory_space<vmem>>, vector<64x64xbf16>
      %cst_48 = arith.constant dense<0.000000e+00> : vector<8x64xf32>
      %69 = tpu.matmul %67, %68, %cst_48 {dimension_numbers = #tpu.dot_dimension_numbers<[1], [0], [0], [1], [0, 0, 1, 1], [], []>} : vector<8x64xbf16>, vector<64x64xbf16>, vector<8x64xf32> -> vector<8x64xf32>
      %c0_49 = arith.constant 0 : index
      %c0_50 = arith.constant 0 : index
      %70 = vector.load %arg16[%c0_49, %c0_50] : memref<1x64xf32, #tpu.memory_space<vmem>>, vector<1x64xf32>
      %71 = vector.broadcast %70 : vector<1x64xf32> to vector<8x64xf32>
      %72 = arith.addf %69, %71 : vector<8x64xf32>
      %cst_51 = arith.constant 0.000000e+00 : f32
      %73 = vector.broadcast %cst_51 : f32 to vector<8x64xf32>
      %74 = arith.maximumf %72, %73 : vector<8x64xf32>
      %75 = arith.truncf %74 : vector<8x64xf32> to vector<8x64xbf16>
      %c0_52 = arith.constant 0 : index
      %c0_53 = arith.constant 0 : index
      %76 = vector.load %arg17[%c0_52, %c0_53] : memref<64x64xbf16, #tpu.memory_space<vmem>>, vector<64x64xbf16>
      %cst_54 = arith.constant dense<0.000000e+00> : vector<8x64xf32>
      %77 = tpu.matmul %75, %76, %cst_54 {dimension_numbers = #tpu.dot_dimension_numbers<[1], [0], [0], [1], [0, 0, 1, 1], [], []>} : vector<8x64xbf16>, vector<64x64xbf16>, vector<8x64xf32> -> vector<8x64xf32>
      %c0_55 = arith.constant 0 : index
      %c0_56 = arith.constant 0 : index
      %78 = vector.load %arg18[%c0_55, %c0_56] : memref<1x64xf32, #tpu.memory_space<vmem>>, vector<1x64xf32>
      %79 = vector.broadcast %78 : vector<1x64xf32> to vector<8x64xf32>
      %80 = arith.addf %77, %79 : vector<8x64xf32>
      %81 = arith.truncf %80 : vector<8x64xf32> to vector<8x64xbf16>
      %c0_57 = arith.constant 0 : index
      %c0_58 = arith.constant 0 : index
      %82 = vector.load %arg19[%c0_57, %c0_58] : memref<64x6xbf16, #tpu.memory_space<vmem>>, vector<64x6xbf16>
      %cst_59 = arith.constant dense<0.000000e+00> : vector<8x6xf32>
      %83 = tpu.matmul %81, %82, %cst_59 {dimension_numbers = #tpu.dot_dimension_numbers<[1], [0], [0], [1], [0, 0, 1, 1], [], []>} : vector<8x64xbf16>, vector<64x6xbf16>, vector<8x6xf32> -> vector<8x6xf32>
      %c0_60 = arith.constant 0 : index
      %c0_61 = arith.constant 0 : index
      %84 = vector.load %arg20[%c0_60, %c0_61] : memref<1x6xf32, #tpu.memory_space<vmem>>, vector<1x6xf32>
      %85 = vector.broadcast %84 : vector<1x6xf32> to vector<8x6xf32>
      %86 = arith.addf %83, %85 : vector<8x6xf32>
      %cst_62 = arith.constant dense<0xFF800000> : vector<8xf32>
      %87 = vector.multi_reduction <maximumf>, %86, %cst_62 [1] : vector<8x6xf32> to vector<8xf32>
      %88 = vector.shape_cast %87 : vector<8xf32> to vector<8x1xf32>
      %89 = vector.broadcast %88 : vector<8x1xf32> to vector<8x6xf32>
      %90 = arith.subf %86, %89 : vector<8x6xf32>
      %91 = math.exp %90 : vector<8x6xf32>
      %cst_63 = arith.constant dense<0.000000e+00> : vector<8xf32>
      %92 = vector.multi_reduction <add>, %91, %cst_63 [1] : vector<8x6xf32> to vector<8xf32>
      %93 = vector.shape_cast %92 : vector<8xf32> to vector<8x1xf32>
      %94 = vector.broadcast %93 : vector<8x1xf32> to vector<8x6xf32>
      %95 = arith.divf %91, %94 : vector<8x6xf32>
      %96 = vector.extract_strided_slice %95 {offsets = [0, 0], sizes = [2, 6], strides = [1, 1]} : vector<8x6xf32> to vector<2x6xf32>
      %c0_64 = arith.constant 0 : index
      %c0_65 = arith.constant 0 : index
      %97 = vector.load %arg21[%c0_64, %c0_65] : memref<2x6xf32, #tpu.memory_space<vmem>>, vector<2x6xf32>
      tpu.vector_store %arg21[%c0_64, %c0_65], %96 {strides = array<i32>} : memref<2x6xf32, #tpu.memory_space<vmem>>, vector<2x6xf32>,
    } else {
    }
    return
  }
  func.func @transform_0(%arg0: i32) -> (i32, i32) {
    %c0_i32 = arith.constant 0 : i32
    %c0_i32_0 = arith.constant 0 : i32
    return %arg0, %c0_i32 : i32, i32
  }
  func.func @transform_1(%arg0: i32) -> (i32, i32) {
    %c0_i32 = arith.constant 0 : i32
    %c0_i32_0 = arith.constant 0 : i32
    return %arg0, %c0_i32 : i32, i32
  }
  func.func @transform_2(%arg0: i32) -> (i32, i32) {
    %c0_i32 = arith.constant 0 : i32
    %c0_i32_0 = arith.constant 0 : i32
    return %arg0, %c0_i32 : i32, i32
  }
  func.func @transform_3(%arg0: i32) -> (i32, i32) {
    %c0_i32 = arith.constant 0 : i32
    %c0_i32_0 = arith.constant 0 : i32
    return %c0_i32, %arg0 : i32, i32
  }
  func.func @transform_4(%arg0: i32) -> (i32, i32) {
    %c0_i32 = arith.constant 0 : i32
    %c0_i32_0 = arith.constant 0 : i32
    %c0_i32_1 = arith.constant 0 : i32
    return %c0_i32, %c0_i32_0 : i32, i32
  }
  func.func @transform_5(%arg0: i32) -> (i32, i32) {
    %c0_i32 = arith.constant 0 : i32
    %c0_i32_0 = arith.constant 0 : i32
    %c0_i32_1 = arith.constant 0 : i32
    return %c0_i32, %c0_i32_0 : i32, i32
  }
  func.func @transform_6(%arg0: i32) -> (i32, i32) {
    %c0_i32 = arith.constant 0 : i32
    %c0_i32_0 = arith.constant 0 : i32
    %c0_i32_1 = arith.constant 0 : i32
    return %c0_i32, %c0_i32_0 : i32, i32
  }
  func.func @transform_7(%arg0: i32) -> (i32, i32) {
    %c0_i32 = arith.constant 0 : i32
    %c0_i32_0 = arith.constant 0 : i32
    %c0_i32_1 = arith.constant 0 : i32
    return %c0_i32, %c0_i32_0 : i32, i32
  }
  func.func @transform_8(%arg0: i32) -> (i32, i32) {
    %c0_i32 = arith.constant 0 : i32
    %c0_i32_0 = arith.constant 0 : i32
    %c0_i32_1 = arith.constant 0 : i32
    return %c0_i32, %c0_i32_0 : i32, i32
  }
  func.func @transform_9(%arg0: i32) -> (i32, i32) {
    %c0_i32 = arith.constant 0 : i32
    %c0_i32_0 = arith.constant 0 : i32
    %c0_i32_1 = arith.constant 0 : i32
    return %c0_i32, %c0_i32_0 : i32, i32
  }
  func.func @transform_10(%arg0: i32) -> (i32, i32) {
    %c0_i32 = arith.constant 0 : i32
    %c0_i32_0 = arith.constant 0 : i32
    %c0_i32_1 = arith.constant 0 : i32
    return %c0_i32, %c0_i32_0 : i32, i32
  }
  func.func @transform_11(%arg0: i32) -> (i32, i32) {
    %c0_i32 = arith.constant 0 : i32
    %c0_i32_0 = arith.constant 0 : i32
    %c0_i32_1 = arith.constant 0 : i32
    return %c0_i32, %c0_i32_0 : i32, i32
  }
  func.func @transform_12(%arg0: i32) -> (i32, i32) {
    %c0_i32 = arith.constant 0 : i32
    %c0_i32_0 = arith.constant 0 : i32
    %c0_i32_1 = arith.constant 0 : i32
    return %c0_i32, %c0_i32_0 : i32, i32
  }
  func.func @transform_13(%arg0: i32) -> (i32, i32) {
    %c0_i32 = arith.constant 0 : i32
    %c0_i32_0 = arith.constant 0 : i32
    %c0_i32_1 = arith.constant 0 : i32
    return %c0_i32, %c0_i32_0 : i32, i32
  }
  func.func @transform_14(%arg0: i32) -> (i32, i32) {
    %c0_i32 = arith.constant 0 : i32
    %c0_i32_0 = arith.constant 0 : i32
    %c0_i32_1 = arith.constant 0 : i32
    return %c0_i32, %c0_i32_0 : i32, i32
  }
  func.func @transform_15(%arg0: i32) -> (i32, i32) {
    %c0_i32 = arith.constant 0 : i32
    %c0_i32_0 = arith.constant 0 : i32
    %c0_i32_1 = arith.constant 0 : i32
    return %c0_i32, %c0_i32_0 : i32, i32
  }
  func.func @transform_16(%arg0: i32) -> (i32, i32) {
    %c0_i32 = arith.constant 0 : i32
    %c0_i32_0 = arith.constant 0 : i32
    %c0_i32_1 = arith.constant 0 : i32
    return %c0_i32, %c0_i32_0 : i32, i32
  }
  func.func @transform_17(%arg0: i32) -> (i32, i32) {
    %c0_i32 = arith.constant 0 : i32
    %c0_i32_0 = arith.constant 0 : i32
    %c0_i32_1 = arith.constant 0 : i32
    return %c0_i32, %c0_i32_0 : i32, i32
  }
  func.func @transform_18(%arg0: i32) -> (i32, i32) {
    %c0_i32 = arith.constant 0 : i32
    %c0_i32_0 = arith.constant 0 : i32
    %c0_i32_1 = arith.constant 0 : i32
    return %c0_i32, %c0_i32_0 : i32, i32
  }
  func.func @transform_19(%arg0: i32) -> (i32, i32) {
    %c0_i32 = arith.constant 0 : i32
    %c0_i32_0 = arith.constant 0 : i32
    %c0_i32_1 = arith.constant 0 : i32
    return %c0_i32, %c0_i32_0 : i32, i32
  }
  func.func @transform_20(%arg0: i32) -> (i32, i32) {
    %c0_i32 = arith.constant 0 : i32
    %c0_i32_0 = arith.constant 0 : i32
    %c0_i32_1 = arith.constant 0 : i32
    return %c0_i32, %c0_i32_0 : i32, i32
  }
}

module attributes {stable_mosaic.version = 11 : i64} {
  func.func @_edge_stage_kernel(%arg0: i32, %arg1: memref<1xi32, #tpu.memory_space<smem>>, %arg2: memref<32x30xbf16, #tpu.memory_space<vmem>>, %arg3: memref<1x32xi32, #tpu.memory_space<vmem>>, %arg4: memref<30x128xbf16, #tpu.memory_space<vmem>>, %arg5: memref<1x64xf32, #tpu.memory_space<vmem>>, %arg6: memref<64x64xbf16, #tpu.memory_space<vmem>>, %arg7: memref<1x64xf32, #tpu.memory_space<vmem>>, %arg8: memref<64x64xbf16, #tpu.memory_space<vmem>>, %arg9: memref<1x64xf32, #tpu.memory_space<vmem>>, %arg10: memref<64x64xbf16, #tpu.memory_space<vmem>>, %arg11: memref<1x64xf32, #tpu.memory_space<vmem>>, %arg12: memref<64x64xbf16, #tpu.memory_space<vmem>>, %arg13: memref<1x64xf32, #tpu.memory_space<vmem>>, %arg14: memref<64x64xbf16, #tpu.memory_space<vmem>>, %arg15: memref<1x64xf32, #tpu.memory_space<vmem>>, %arg16: memref<16x64xf32, #tpu.memory_space<vmem>>) attributes {dimension_semantics = [#tpu.dimension_semantics<arbitrary>], iteration_bounds = array<i64: 1>, scalar_prefetch = 1 : i64, scratch_operands = 0 : i64, tpu.core_type = #tpu.core_type<tc>, window_params = [{transform_indices = @transform_0, window_bounds = array<i64: 32, 30>}, {transform_indices = @transform_1, window_bounds = array<i64: 1, 32>}, {pipeline_mode = #tpu.pipeline_mode<synchronous>, transform_indices = @transform_2, window_bounds = array<i64: 30, 128>}, {pipeline_mode = #tpu.pipeline_mode<synchronous>, transform_indices = @transform_3, window_bounds = array<i64: 1, 64>}, {pipeline_mode = #tpu.pipeline_mode<synchronous>, transform_indices = @transform_4, window_bounds = array<i64: 64, 64>}, {pipeline_mode = #tpu.pipeline_mode<synchronous>, transform_indices = @transform_5, window_bounds = array<i64: 1, 64>}, {pipeline_mode = #tpu.pipeline_mode<synchronous>, transform_indices = @transform_6, window_bounds = array<i64: 64, 64>}, {pipeline_mode = #tpu.pipeline_mode<synchronous>, transform_indices = @transform_7, window_bounds = array<i64: 1, 64>}, {pipeline_mode = #tpu.pipeline_mode<synchronous>, transform_indices = @transform_8, window_bounds = array<i64: 64, 64>}, {pipeline_mode = #tpu.pipeline_mode<synchronous>, transform_indices = @transform_9, window_bounds = array<i64: 1, 64>}, {pipeline_mode = #tpu.pipeline_mode<synchronous>, transform_indices = @transform_10, window_bounds = array<i64: 64, 64>}, {pipeline_mode = #tpu.pipeline_mode<synchronous>, transform_indices = @transform_11, window_bounds = array<i64: 1, 64>}, {pipeline_mode = #tpu.pipeline_mode<synchronous>, transform_indices = @transform_12, window_bounds = array<i64: 64, 64>}, {pipeline_mode = #tpu.pipeline_mode<synchronous>, transform_indices = @transform_13, window_bounds = array<i64: 1, 64>}, {transform_indices = @transform_14, window_bounds = array<i64: 16, 64>}]} {
    %0 = arith.index_cast %arg0 : i32 to index
    %1 = memref.load %arg1[%0] : memref<1xi32, #tpu.memory_space<smem>>
    %c1_i32 = arith.constant 1 : i32
    %2 = arith.subi %arg0, %c1_i32 : i32
    %c0_i32 = arith.constant 0 : i32
    %3 = arith.maxsi %2, %c0_i32 : i32
    %4 = arith.index_cast %3 : i32 to index
    %5 = memref.load %arg1[%4] : memref<1xi32, #tpu.memory_space<smem>>
    %c0_i32_0 = arith.constant 0 : i32
    %6 = arith.cmpi eq, %arg0, %c0_i32_0 : i32
    %7 = arith.cmpi ne, %1, %5 : i32
    %8 = arith.ori %6, %7 : i1
    %9 = arith.extui %8 : i1 to i32
    %c0_i32_1 = arith.constant 0 : i32
    %10 = arith.cmpi ne, %9, %c0_i32_1 : i32
    scf.if %10 {
      %cst_43 = arith.constant 0.000000e+00 : f32
      %74 = vector.broadcast %cst_43 : f32 to vector<16x64xf32>
      %c0_44 = arith.constant 0 : index
      %c0_45 = arith.constant 0 : index
      %75 = vector.load %arg16[%c0_44, %c0_45] : memref<16x64xf32, #tpu.memory_space<vmem>>, vector<16x64xf32>
      tpu.vector_store %arg16[%c0_44, %c0_45], %74 {strides = array<i32>} : memref<16x64xf32, #tpu.memory_space<vmem>>, vector<16x64xf32>,
    } else {
    }
    %c0 = arith.constant 0 : index
    %c0_2 = arith.constant 0 : index
    %11 = vector.load %arg2[%c0, %c0_2] : memref<32x30xbf16, #tpu.memory_space<vmem>>, vector<32x30xbf16>
    %c0_3 = arith.constant 0 : index
    %c0_4 = arith.constant 0 : index
    %12 = vector.load %arg4[%c0_3, %c0_4] : memref<30x128xbf16, #tpu.memory_space<vmem>>, vector<30x128xbf16>
    %cst = arith.constant dense<0.000000e+00> : vector<32x128xf32>
    %13 = tpu.matmul %11, %12, %cst {dimension_numbers = #tpu.dot_dimension_numbers<[1], [0], [0], [1], [0, 0, 1, 1], [], []>} : vector<32x30xbf16>, vector<30x128xbf16>, vector<32x128xf32> -> vector<32x128xf32>
    %14 = vector.extract_strided_slice %13 {offsets = [0, 0], sizes = [32, 64], strides = [1, 1]} : vector<32x128xf32> to vector<32x64xf32>
    %c0_5 = arith.constant 0 : index
    %c0_6 = arith.constant 0 : index
    %15 = vector.load %arg5[%c0_5, %c0_6] : memref<1x64xf32, #tpu.memory_space<vmem>>, vector<1x64xf32>
    %16 = vector.broadcast %15 : vector<1x64xf32> to vector<32x64xf32>
    %17 = arith.addf %14, %16 : vector<32x64xf32>
    %cst_7 = arith.constant 0.000000e+00 : f32
    %18 = vector.broadcast %cst_7 : f32 to vector<32x64xf32>
    %19 = arith.maximumf %17, %18 : vector<32x64xf32>
    %20 = vector.extract_strided_slice %13 {offsets = [0, 64], sizes = [32, 64], strides = [1, 1]} : vector<32x128xf32> to vector<32x64xf32>
    %21 = arith.truncf %19 : vector<32x64xf32> to vector<32x64xbf16>
    %c0_8 = arith.constant 0 : index
    %c0_9 = arith.constant 0 : index
    %22 = vector.load %arg6[%c0_8, %c0_9] : memref<64x64xbf16, #tpu.memory_space<vmem>>, vector<64x64xbf16>
    %cst_10 = arith.constant dense<0.000000e+00> : vector<32x64xf32>
    %23 = tpu.matmul %21, %22, %cst_10 {dimension_numbers = #tpu.dot_dimension_numbers<[1], [0], [0], [1], [0, 0, 1, 1], [], []>} : vector<32x64xbf16>, vector<64x64xbf16>, vector<32x64xf32> -> vector<32x64xf32>
    %c0_11 = arith.constant 0 : index
    %c0_12 = arith.constant 0 : index
    %24 = vector.load %arg7[%c0_11, %c0_12] : memref<1x64xf32, #tpu.memory_space<vmem>>, vector<1x64xf32>
    %25 = vector.broadcast %24 : vector<1x64xf32> to vector<32x64xf32>
    %26 = arith.addf %23, %25 : vector<32x64xf32>
    %cst_13 = arith.constant 0.000000e+00 : f32
    %27 = vector.broadcast %cst_13 : f32 to vector<32x64xf32>
    %28 = arith.maximumf %26, %27 : vector<32x64xf32>
    %29 = arith.truncf %28 : vector<32x64xf32> to vector<32x64xbf16>
    %c0_14 = arith.constant 0 : index
    %c0_15 = arith.constant 0 : index
    %30 = vector.load %arg8[%c0_14, %c0_15] : memref<64x64xbf16, #tpu.memory_space<vmem>>, vector<64x64xbf16>
    %cst_16 = arith.constant dense<0.000000e+00> : vector<32x64xf32>
    %31 = tpu.matmul %29, %30, %cst_16 {dimension_numbers = #tpu.dot_dimension_numbers<[1], [0], [0], [1], [0, 0, 1, 1], [], []>} : vector<32x64xbf16>, vector<64x64xbf16>, vector<32x64xf32> -> vector<32x64xf32>
    %c0_17 = arith.constant 0 : index
    %c0_18 = arith.constant 0 : index
    %32 = vector.load %arg9[%c0_17, %c0_18] : memref<1x64xf32, #tpu.memory_space<vmem>>, vector<1x64xf32>
    %33 = vector.broadcast %32 : vector<1x64xf32> to vector<32x64xf32>
    %34 = arith.addf %31, %33 : vector<32x64xf32>
    %35 = arith.truncf %34 : vector<32x64xf32> to vector<32x64xbf16>
    %c0_19 = arith.constant 0 : index
    %c0_20 = arith.constant 0 : index
    %36 = vector.load %arg10[%c0_19, %c0_20] : memref<64x64xbf16, #tpu.memory_space<vmem>>, vector<64x64xbf16>
    %cst_21 = arith.constant dense<0.000000e+00> : vector<32x64xf32>
    %37 = tpu.matmul %35, %36, %cst_21 {dimension_numbers = #tpu.dot_dimension_numbers<[1], [0], [0], [1], [0, 0, 1, 1], [], []>} : vector<32x64xbf16>, vector<64x64xbf16>, vector<32x64xf32> -> vector<32x64xf32>
    %38 = arith.addf %20, %37 : vector<32x64xf32>
    %c0_22 = arith.constant 0 : index
    %c0_23 = arith.constant 0 : index
    %39 = vector.load %arg11[%c0_22, %c0_23] : memref<1x64xf32, #tpu.memory_space<vmem>>, vector<1x64xf32>
    %40 = vector.broadcast %39 : vector<1x64xf32> to vector<32x64xf32>
    %41 = arith.addf %38, %40 : vector<32x64xf32>
    %cst_24 = arith.constant 0.000000e+00 : f32
    %42 = vector.broadcast %cst_24 : f32 to vector<32x64xf32>
    %43 = arith.maximumf %41, %42 : vector<32x64xf32>
    %44 = arith.truncf %43 : vector<32x64xf32> to vector<32x64xbf16>
    %c0_25 = arith.constant 0 : index
    %c0_26 = arith.constant 0 : index
    %45 = vector.load %arg12[%c0_25, %c0_26] : memref<64x64xbf16, #tpu.memory_space<vmem>>, vector<64x64xbf16>
    %cst_27 = arith.constant dense<0.000000e+00> : vector<32x64xf32>
    %46 = tpu.matmul %44, %45, %cst_27 {dimension_numbers = #tpu.dot_dimension_numbers<[1], [0], [0], [1], [0, 0, 1, 1], [], []>} : vector<32x64xbf16>, vector<64x64xbf16>, vector<32x64xf32> -> vector<32x64xf32>
    %c0_28 = arith.constant 0 : index
    %c0_29 = arith.constant 0 : index
    %47 = vector.load %arg13[%c0_28, %c0_29] : memref<1x64xf32, #tpu.memory_space<vmem>>, vector<1x64xf32>
    %48 = vector.broadcast %47 : vector<1x64xf32> to vector<32x64xf32>
    %49 = arith.addf %46, %48 : vector<32x64xf32>
    %cst_30 = arith.constant 0.000000e+00 : f32
    %50 = vector.broadcast %cst_30 : f32 to vector<32x64xf32>
    %51 = arith.maximumf %49, %50 : vector<32x64xf32>
    %52 = arith.truncf %51 : vector<32x64xf32> to vector<32x64xbf16>
    %c0_31 = arith.constant 0 : index
    %c0_32 = arith.constant 0 : index
    %53 = vector.load %arg14[%c0_31, %c0_32] : memref<64x64xbf16, #tpu.memory_space<vmem>>, vector<64x64xbf16>
    %cst_33 = arith.constant dense<0.000000e+00> : vector<32x64xf32>
    %54 = tpu.matmul %52, %53, %cst_33 {dimension_numbers = #tpu.dot_dimension_numbers<[1], [0], [0], [1], [0, 0, 1, 1], [], []>} : vector<32x64xbf16>, vector<64x64xbf16>, vector<32x64xf32> -> vector<32x64xf32>
    %c0_34 = arith.constant 0 : index
    %c0_35 = arith.constant 0 : index
    %55 = vector.load %arg15[%c0_34, %c0_35] : memref<1x64xf32, #tpu.memory_space<vmem>>, vector<1x64xf32>
    %56 = vector.broadcast %55 : vector<1x64xf32> to vector<32x64xf32>
    %57 = arith.addf %54, %56 : vector<32x64xf32>
    %c0_36 = arith.constant 0 : index
    %c0_37 = arith.constant 0 : index
    %58 = vector.load %arg3[%c0_36, %c0_37] : memref<1x32xi32, #tpu.memory_space<vmem>>, vector<1x32xi32>
    %c16_i32 = arith.constant 16 : i32
    %59 = arith.muli %1, %c16_i32 : i32
    %60 = vector.broadcast %59 : i32 to vector<1x32xi32>
    %61 = arith.subi %58, %60 : vector<1x32xi32>
    %62 = tpu.iota {dimensions = array<i32: 0>} : vector<16x1xi32>
    %63 = vector.broadcast %62 : vector<16x1xi32> to vector<16x32xi32>
    %64 = vector.broadcast %61 : vector<1x32xi32> to vector<16x32xi32>
    %65 = arith.cmpi eq, %63, %64 : vector<16x32xi32>
    %66 = arith.extui %65 : vector<16x32xi1> to vector<16x32xi32>
    %67 = arith.sitofp %66 : vector<16x32xi32> to vector<16x32xf32>
    %68 = arith.truncf %67 : vector<16x32xf32> to vector<16x32xbf16>
    %c0_38 = arith.constant 0 : index
    %c0_39 = arith.constant 0 : index
    %69 = vector.load %arg16[%c0_38, %c0_39] : memref<16x64xf32, #tpu.memory_space<vmem>>, vector<16x64xf32>
    %70 = arith.truncf %57 : vector<32x64xf32> to vector<32x64xbf16>
    %cst_40 = arith.constant dense<0.000000e+00> : vector<16x64xf32>
    %71 = tpu.matmul %68, %70, %cst_40 {dimension_numbers = #tpu.dot_dimension_numbers<[1], [0], [0], [1], [0, 0, 1, 1], [], []>} : vector<16x32xbf16>, vector<32x64xbf16>, vector<16x64xf32> -> vector<16x64xf32>
    %72 = arith.addf %69, %71 : vector<16x64xf32>
    %c0_41 = arith.constant 0 : index
    %c0_42 = arith.constant 0 : index
    %73 = vector.load %arg16[%c0_41, %c0_42] : memref<16x64xf32, #tpu.memory_space<vmem>>, vector<16x64xf32>
    tpu.vector_store %arg16[%c0_41, %c0_42], %72 {strides = array<i32>} : memref<16x64xf32, #tpu.memory_space<vmem>>, vector<16x64xf32>,
    return
  }
  func.func @transform_0(%arg0: i32, %arg1: memref<1xi32, #tpu.memory_space<smem>>) -> (i32, i32) {
    %c0_i32 = arith.constant 0 : i32
    %c0_i32_0 = arith.constant 0 : i32
    return %arg0, %c0_i32 : i32, i32
  }
  func.func @transform_1(%arg0: i32, %arg1: memref<1xi32, #tpu.memory_space<smem>>) -> (i32, i32) {
    %c0_i32 = arith.constant 0 : i32
    %c0_i32_0 = arith.constant 0 : i32
    return %c0_i32, %arg0 : i32, i32
  }
  func.func @transform_2(%arg0: i32, %arg1: memref<1xi32, #tpu.memory_space<smem>>) -> (i32, i32) {
    %c0_i32 = arith.constant 0 : i32
    %c0_i32_0 = arith.constant 0 : i32
    %c0_i32_1 = arith.constant 0 : i32
    return %c0_i32, %c0_i32_0 : i32, i32
  }
  func.func @transform_3(%arg0: i32, %arg1: memref<1xi32, #tpu.memory_space<smem>>) -> (i32, i32) {
    %c0_i32 = arith.constant 0 : i32
    %c0_i32_0 = arith.constant 0 : i32
    %c0_i32_1 = arith.constant 0 : i32
    return %c0_i32, %c0_i32_0 : i32, i32
  }
  func.func @transform_4(%arg0: i32, %arg1: memref<1xi32, #tpu.memory_space<smem>>) -> (i32, i32) {
    %c0_i32 = arith.constant 0 : i32
    %c0_i32_0 = arith.constant 0 : i32
    %c0_i32_1 = arith.constant 0 : i32
    return %c0_i32, %c0_i32_0 : i32, i32
  }
  func.func @transform_5(%arg0: i32, %arg1: memref<1xi32, #tpu.memory_space<smem>>) -> (i32, i32) {
    %c0_i32 = arith.constant 0 : i32
    %c0_i32_0 = arith.constant 0 : i32
    %c0_i32_1 = arith.constant 0 : i32
    return %c0_i32, %c0_i32_0 : i32, i32
  }
  func.func @transform_6(%arg0: i32, %arg1: memref<1xi32, #tpu.memory_space<smem>>) -> (i32, i32) {
    %c0_i32 = arith.constant 0 : i32
    %c0_i32_0 = arith.constant 0 : i32
    %c0_i32_1 = arith.constant 0 : i32
    return %c0_i32, %c0_i32_0 : i32, i32
  }
  func.func @transform_7(%arg0: i32, %arg1: memref<1xi32, #tpu.memory_space<smem>>) -> (i32, i32) {
    %c0_i32 = arith.constant 0 : i32
    %c0_i32_0 = arith.constant 0 : i32
    %c0_i32_1 = arith.constant 0 : i32
    return %c0_i32, %c0_i32_0 : i32, i32
  }
  func.func @transform_8(%arg0: i32, %arg1: memref<1xi32, #tpu.memory_space<smem>>) -> (i32, i32) {
    %c0_i32 = arith.constant 0 : i32
    %c0_i32_0 = arith.constant 0 : i32
    %c0_i32_1 = arith.constant 0 : i32
    return %c0_i32, %c0_i32_0 : i32, i32
  }
  func.func @transform_9(%arg0: i32, %arg1: memref<1xi32, #tpu.memory_space<smem>>) -> (i32, i32) {
    %c0_i32 = arith.constant 0 : i32
    %c0_i32_0 = arith.constant 0 : i32
    %c0_i32_1 = arith.constant 0 : i32
    return %c0_i32, %c0_i32_0 : i32, i32
  }
  func.func @transform_10(%arg0: i32, %arg1: memref<1xi32, #tpu.memory_space<smem>>) -> (i32, i32) {
    %c0_i32 = arith.constant 0 : i32
    %c0_i32_0 = arith.constant 0 : i32
    %c0_i32_1 = arith.constant 0 : i32
    return %c0_i32, %c0_i32_0 : i32, i32
  }
  func.func @transform_11(%arg0: i32, %arg1: memref<1xi32, #tpu.memory_space<smem>>) -> (i32, i32) {
    %c0_i32 = arith.constant 0 : i32
    %c0_i32_0 = arith.constant 0 : i32
    %c0_i32_1 = arith.constant 0 : i32
    return %c0_i32, %c0_i32_0 : i32, i32
  }
  func.func @transform_12(%arg0: i32, %arg1: memref<1xi32, #tpu.memory_space<smem>>) -> (i32, i32) {
    %c0_i32 = arith.constant 0 : i32
    %c0_i32_0 = arith.constant 0 : i32
    %c0_i32_1 = arith.constant 0 : i32
    return %c0_i32, %c0_i32_0 : i32, i32
  }
  func.func @transform_13(%arg0: i32, %arg1: memref<1xi32, #tpu.memory_space<smem>>) -> (i32, i32) {
    %c0_i32 = arith.constant 0 : i32
    %c0_i32_0 = arith.constant 0 : i32
    %c0_i32_1 = arith.constant 0 : i32
    return %c0_i32, %c0_i32_0 : i32, i32
  }
  func.func @transform_14(%arg0: i32, %arg1: memref<1xi32, #tpu.memory_space<smem>>) -> (i32, i32) {
    %0 = arith.index_cast %arg0 : i32 to index
    %1 = memref.load %arg1[%0] : memref<1xi32, #tpu.memory_space<smem>>
    %c0_i32 = arith.constant 0 : i32
    %c0_i32_0 = arith.constant 0 : i32
    return %1, %c0_i32 : i32, i32
  }
}

</mosaic_0001>

<llo_original>
// kernel: gnn_forward.3
$region0: #{gnn_forward.3}
  #allocation0 [shape = 'u32[]', space=smem, size = 0x4, offset = 0x4, fixed_abs, tag = 'smem constant byte address 0x4 - core index']
  #allocation1 [shape = 'u32[144,128]{1,0:T(1,128)}', space=vmem, size = 0x12000, scoped, tag = 'internal scratch']
  #allocation2 [shape = 'f32[8,64]{1,0:T(8,128)}', space=vmem, size = 0x1000, scoped, tag = 'scratch operand']
  %s0 = inlined_call_operand.hbm [shape: bf16[16,9], index: 0, kind: input, shape index: {}]
  %s1 = inlined_call_operand.hbm [shape: f32[16,64], index: 1, kind: input, shape index: {}]
  %s2 = inlined_call_operand.hbm [shape: f32[16,1], index: 2, kind: input, shape index: {}]
  %s3 = inlined_call_operand.hbm [shape: s32[1,16], index: 3, kind: input, shape index: {}]
  %s4 = inlined_call_operand.hbm [shape: f32[8,1], index: 4, kind: input, shape index: {}]
  %s5 = inlined_call_operand.hbm [shape: bf16[9,64], index: 5, kind: input, shape index: {}]
  %s6 = inlined_call_operand.hbm [shape: bf16[64,64], index: 6, kind: input, shape index: {}]
  %s7 = inlined_call_operand.hbm [shape: f32[1,64], index: 7, kind: input, shape index: {}]
  %s8 = inlined_call_operand.hbm [shape: bf16[64,64], index: 8, kind: input, shape index: {}]
  %s9 = inlined_call_operand.hbm [shape: f32[1,64], index: 9, kind: input, shape index: {}]
  %s10 = inlined_call_operand.hbm [shape: bf16[64,64], index: 10, kind: input, shape index: {}]
  %s11 = inlined_call_operand.hbm [shape: f32[1,64], index: 11, kind: input, shape index: {}]
  %s12 = inlined_call_operand.hbm [shape: bf16[64,64], index: 12, kind: input, shape index: {}]
  %s13 = inlined_call_operand.hbm [shape: f32[1,64], index: 13, kind: input, shape index: {}]
  %s14 = inlined_call_operand.hbm [shape: bf16[64,64], index: 14, kind: input, shape index: {}]
  %s15 = inlined_call_operand.hbm [shape: f32[1,64], index: 15, kind: input, shape index: {}]
  %s16 = inlined_call_operand.hbm [shape: bf16[64,64], index: 16, kind: input, shape index: {}]
  %s17 = inlined_call_operand.hbm [shape: f32[1,64], index: 17, kind: input, shape index: {}]
  %s18 = inlined_call_operand.hbm [shape: bf16[64,6], index: 18, kind: input, shape index: {}]
  %s19 = inlined_call_operand.hbm [shape: f32[1,6], index: 19, kind: input, shape index: {}]
  %s20 = inlined_call_operand.hbm [shape: f32[2,6], index: 20, kind: output, shape index: {}]
  %s21 = sld [smem:[#allocation0]]
  $region178: #{gnn_forward.3} parent=0
    _
  %s23 = ssub.s32 1, %s21
  %s24 = scalar_select 0, %s23, %s21
  $region1: #{gnn_forward.3} parent=0
    #allocation3 [shape = 'u8[4096]{0}', space=vmem, size = 0x1000, scoped, tag = 'input window, operand 0, single buffered']
    #allocation4 [shape = 's32[1]{0}', space=sflag, size = 0x4, scoped, tag = 'scoped memory for gnn_forward.3']
    #allocation5 [shape = 's32[1]{0}', space=sflag, size = 0x4, scoped, tag = 'scoped memory for gnn_forward.3']
    #allocation6 [shape = 'u8[8192]{0}', space=vmem, size = 0x2000, scoped, tag = 'input window, operand 1, single buffered']
    #allocation7 [shape = 's32[1]{0}', space=sflag, size = 0x4, scoped, tag = 'scoped memory for gnn_forward.3']
    #allocation8 [shape = 'u8[8192]{0}', space=vmem, size = 0x2000, scoped, tag = 'input window, operand 2, single buffered']
    #allocation9 [shape = 'u8[512]{0}', space=vmem, size = 0x400, scoped, tag = 'input window, operand 3, single buffered']
    #allocation10 [shape = 's32[1]{0}', space=sflag, size = 0x4, scoped, tag = 'scoped memory for gnn_forward.3']
    #allocation11 [shape = 'u8[4096]{0}', space=vmem, size = 0x1000, scoped, tag = 'input window, operand 4, single buffered']
    #allocation12 [shape = 'u8[4096]{0}', space=vmem, size = 0x1000, scoped, tag = 'input window, operand 5, single buffered']
    #allocation13 [shape = 's32[1]{0}', space=sflag, size = 0x4, scoped, tag = 'scoped memory for gnn_forward.3']
    #allocation14 [shape = 'u8[16384]{0}', space=vmem, size = 0x4000, scoped, tag = 'input window, operand 6, single buffered']
    #allocation15 [shape = 'u8[512]{0}', space=vmem, size = 0x400, scoped, tag = 'input window, operand 7, single buffered']
    #allocation16 [shape = 's32[1]{0}', space=sflag, size = 0x4, scoped, tag = 'scoped memory for gnn_forward.3']
    #allocation17 [shape = 'u8[16384]{0}', space=vmem, size = 0x4000, scoped, tag = 'input window, operand 8, single buffered']
    #allocation18 [shape = 'u8[512]{0}', space=vmem, size = 0x400, scoped, tag = 'input window, operand 9, single buffered']
    #allocation19 [shape = 's32[1]{0}', space=sflag, size = 0x4, scoped, tag = 'scoped memory for gnn_forward.3']
    #allocation20 [shape = 'u8[16384]{0}', space=vmem, size = 0x4000, scoped, tag = 'input window, operand 10, single buffered']
    #allocation21 [shape = 'u8[512]{0}', space=vmem, size = 0x400, scoped, tag = 'input window, operand 11, single buffered']
    #allocation22 [shape = 's32[1]{0}', space=sflag, size = 0x4, scoped, tag = 'scoped memory for gnn_forward.3']
    #allocation23 [shape = 'u8[16384]{0}', space=vmem, size = 0x4000, scoped, tag = 'input window, operand 12, single buffered']
    #allocation24 [shape = 'u8[512]{0}', space=vmem, size = 0x400, scoped, tag = 'input window, operand 13, single buffered']
    #allocation25 [shape = 's32[1]{0}', space=sflag, size = 0x4, scoped, tag = 'scoped memory for gnn_forward.3']
    #allocation26 [shape = 'u8[16384]{0}', space=vmem, size = 0x4000, scoped, tag = 'input window, operand 14, single buffered']
    #allocation27 [shape = 'u8[512]{0}', space=vmem, size = 0x400, scoped, tag = 'input window, operand 15, single buffered']
    #allocation28 [shape = 's32[1]{0}', space=sflag, size = 0x4, scoped, tag = 'scoped memory for gnn_forward.3']
    #allocation29 [shape = 'u8[16384]{0}', space=vmem, size = 0x4000, scoped, tag = 'input window, operand 16, single buffered']
    #allocation30 [shape = 'u8[512]{0}', space=vmem, size = 0x400, scoped, tag = 'input window, operand 17, single buffered']
    #allocation31 [shape = 's32[1]{0}', space=sflag, size = 0x4, scoped, tag = 'scoped memory for gnn_forward.3']
    #allocation32 [shape = 'u8[16384]{0}', space=vmem, size = 0x4000, scoped, tag = 'input window, operand 18, single buffered']
    #allocation33 [shape = 'u8[512]{0}', space=vmem, size = 0x400, scoped, tag = 'input window, operand 19, single buffered']
    #allocation34 [shape = 's32[1]{0}', space=sflag, size = 0x4, scoped, tag = 'scoped memory for gnn_forward.3']
    #allocation35 [shape = 'u8[1024]{0}', space=vmem, size = 0x400, scoped, tag = 'output window, operand 0, single buffered']
    %25 = vsyncpa [#allocation4], 0
    %26 = vsyncpa [#allocation7], 0
    %27 = vsyncpa [#allocation10], 0
    %28 = vsyncpa [#allocation13], 0
    %29 = vsyncpa [#allocation16], 0
    %30 = vsyncpa [#allocation19], 0
    %31 = vsyncpa [#allocation22], 0
    %32 = vsyncpa [#allocation25], 0
    %33 = vsyncpa [#allocation28], 0
    %34 = vsyncpa [#allocation31], 0
    %35 = vsyncpa [#allocation34], 0
    %36 = vsyncpa [#allocation5], 0
    // Predicated region
    $region2: #{gnn_forward.3} parent=1 // pred_check
      _
    $region3: #{gnn_forward.3} parent=1 // pred_check_branch
      %38 = sbr.rel (0) target = $region5
    $region4: #{gnn_forward.3} parent=1 // pred_region
      %s40 = ssub.s32 128, 128
      %41 = vsyncadd [#allocation4], %s40
      %s42 = sshll.u32 [#allocation3], 4
      %s43 = int_to_ptr.vmem [resolvable:$true] %s42
      %48 = dma.hbm_to_vmem [thread:$0]  %s0, 128, %s43, [#allocation4], 64, 64, 4
    $region5: #{gnn_forward.3} parent=1 // pred_fallthru
      _
    // Predicated region
    $region6: #{gnn_forward.3} parent=1 // pred_check
      _
    $region7: #{gnn_forward.3} parent=1 // pred_check_branch
      %50 = sbr.rel (0) target = $region9
    $region8: #{gnn_forward.3} parent=1 // pred_region
      %s52 = ssub.s32 256, 256
      %53 = vsyncadd [#allocation7], %s52
      %s54 = sshll.u32 [#allocation6], 4
      %s55 = int_to_ptr.vmem [resolvable:$true] %s54
      %60 = dma.hbm_to_vmem [thread:$0]  %s1, 256, %s55, [#allocation7], 128, 128, 8
    $region9: #{gnn_forward.3} parent=1 // pred_fallthru
      _
    // Predicated region
    $region10: #{gnn_forward.3} parent=1 // pred_check
      _
    $region11: #{gnn_forward.3} parent=1 // pred_check_branch
      %62 = sbr.rel (0) target = $region13
    $region12: #{gnn_forward.3} parent=1 // pred_region
      %s64 = ssub.s32 256, 256
      %65 = vsyncadd [#allocation7], %s64
      %s66 = sshll.u32 [#allocation8], 4
      %s67 = int_to_ptr.vmem [resolvable:$true] %s66
      %72 = dma.hbm_to_vmem [thread:$0]  %s2, 256, %s67, [#allocation7], 128, 128, 8
    $region13: #{gnn_forward.3} parent=1 // pred_fallthru
      _
    // Predicated region
    $region14: #{gnn_forward.3} parent=1 // pred_check
      _
    $region15: #{gnn_forward.3} parent=1 // pred_check_branch
      %74 = sbr.rel (0) target = $region17
    $region16: #{gnn_forward.3} parent=1 // pred_region
      %s76 = ssub.s32 16, 16
      %77 = vsyncadd [#allocation10], %s76
      %s79 = sshll.u32 [#allocation9], 4
      %s80 = int_to_ptr.vmem [resolvable:$true] %s79
      %82 = dma.hbm_to_vmem [thread:$0]  %s3, 16, %s80, [#allocation10]
    $region17: #{gnn_forward.3} parent=1 // pred_fallthru
      _
    // Predicated region
    $region18: #{gnn_forward.3} parent=1 // pred_check
      _
    $region19: #{gnn_forward.3} parent=1 // pred_check_branch
      %84 = sbr.rel (0) target = $region21
    $region20: #{gnn_forward.3} parent=1 // pred_region
      %s86 = ssub.s32 128, 128
      %87 = vsyncadd [#allocation10], %s86
      %s89 = sshll.u32 [#allocation11], 4
      %s90 = int_to_ptr.vmem [resolvable:$true] %s89
      %92 = dma.hbm_to_vmem [thread:$0]  %s4, 128, %s90, [#allocation10]
    $region21: #{gnn_forward.3} parent=1 // pred_fallthru
      _
    // Predicated region
    $region22: #{gnn_forward.3} parent=1 // pred_check
      _
    $region23: #{gnn_forward.3} parent=1 // pred_check_branch
      %94 = sbr.rel (0) target = $region25
    $region24: #{gnn_forward.3} parent=1 // pred_region
      %s96 = ssub.s32 128, 128
      %97 = vsyncadd [#allocation13], %s96
      %s98 = sshll.u32 [#allocation12], 4
      %s99 = int_to_ptr.vmem [resolvable:$true] %s98
      %104 = dma.hbm_to_vmem [thread:$0]  %s5, 128, %s99, [#allocation13], 64, 64, 4
    $region25: #{gnn_forward.3} parent=1 // pred_fallthru
      _
    // Predicated region
    $region26: #{gnn_forward.3} parent=1 // pred_check
      _
    $region27: #{gnn_forward.3} parent=1 // pred_check_branch
      %106 = sbr.rel (0) target = $region29
    $region28: #{gnn_forward.3} parent=1 // pred_region
      %s108 = ssub.s32 512, 512
      %109 = vsyncadd [#allocation13], %s108
      %s110 = sshll.u32 [#allocation14], 4
      %s111 = int_to_ptr.vmem [resolvable:$true] %s110
      %116 = dma.hbm_to_vmem [thread:$0]  %s6, 512, %s111, [#allocation13], 64, 64, 4
    $region29: #{gnn_forward.3} parent=1 // pred_fallthru
      _
    // Predicated region
    $region30: #{gnn_forward.3} parent=1 // pred_check
      _
    $region31: #{gnn_forward.3} parent=1 // pred_check_branch
      %118 = sbr.rel (0) target = $region33
    $region32: #{gnn_forward.3} parent=1 // pred_region
      %s120 = ssub.s32 16, 16
      %121 = vsyncadd [#allocation16], %s120
      %s123 = sshll.u32 [#allocation15], 4
      %s124 = int_to_ptr.vmem [resolvable:$true] %s123
      %126 = dma.hbm_to_vmem [thread:$0]  %s7, 16, %s124, [#allocation16]
    $region33: #{gnn_forward.3} parent=1 // pred_fallthru
      _
    // Predicated region
    $region34: #{gnn_forward.3} parent=1 // pred_check
      _
    $region35: #{gnn_forward.3} parent=1 // pred_check_branch
      %128 = sbr.rel (0) target = $region37
    $region36: #{gnn_forward.3} parent=1 // pred_region
      %s130 = ssub.s32 512, 512
      %131 = vsyncadd [#allocation16], %s130
      %s132 = sshll.u32 [#allocation17], 4
      %s133 = int_to_ptr.vmem [resolvable:$true] %s132
      %138 = dma.hbm_to_vmem [thread:$0]  %s8, 512, %s133, [#allocation16], 64, 64, 4
    $region37: #{gnn_forward.3} parent=1 // pred_fallthru
      _
    // Predicated region
    $region38: #{gnn_forward.3} parent=1 // pred_check
      _
    $region39: #{gnn_forward.3} parent=1 // pred_check_branch
      %140 = sbr.rel (0) target = $region41
    $region40: #{gnn_forward.3} parent=1 // pred_region
      %s142 = ssub.s32 16, 16
      %143 = vsyncadd [#allocation19], %s142
      %s145 = sshll.u32 [#allocation18], 4
      %s146 = int_to_ptr.vmem [resolvable:$true] %s145
      %148 = dma.hbm_to_vmem [thread:$0]  %s9, 16, %s146, [#allocation19]
    $region41: #{gnn_forward.3} parent=1 // pred_fallthru
      _
    // Predicated region
    $region42: #{gnn_forward.3} parent=1 // pred_check
      _
    $region43: #{gnn_forward.3} parent=1 // pred_check_branch
      %150 = sbr.rel (0) target = $region45
    $region44: #{gnn_forward.3} parent=1 // pred_region
      %s152 = ssub.s32 512, 512
      %153 = vsyncadd [#allocation19], %s152
      %s154 = sshll.u32 [#allocation20], 4
      %s155 = int_to_ptr.vmem [resolvable:$true] %s154
      %160 = dma.hbm_to_vmem [thread:$0]  %s10, 512, %s155, [#allocation19], 64, 64, 4
    $region45: #{gnn_forward.3} parent=1 // pred_fallthru
      _
    // Predicated region
    $region46: #{gnn_forward.3} parent=1 // pred_check
      _
    $region47: #{gnn_forward.3} parent=1 // pred_check_branch
      %162 = sbr.rel (0) target = $region49
    $region48: #{gnn_forward.3} parent=1 // pred_region
      %s164 = ssub.s32 16, 16
      %165 = vsyncadd [#allocation22], %s164
      %s167 = sshll.u32 [#allocation21], 4
      %s168 = int_to_ptr.vmem [resolvable:$true] %s167
      %170 = dma.hbm_to_vmem [thread:$0]  %s11, 16, %s168, [#allocation22]
    $region49: #{gnn_forward.3} parent=1 // pred_fallthru
      _
    // Predicated region
    $region50: #{gnn_forward.3} parent=1 // pred_check
      _
    $region51: #{gnn_forward.3} parent=1 // pred_check_branch
      %172 = sbr.rel (0) target = $region53
    $region52: #{gnn_forward.3} parent=1 // pred_region
      %s174 = ssub.s32 512, 512
      %175 = vsyncadd [#allocation22], %s174
      %s176 = sshll.u32 [#allocation23], 4
      %s177 = int_to_ptr.vmem [resolvable:$true] %s176
      %182 = dma.hbm_to_vmem [thread:$0]  %s12, 512, %s177, [#allocation22], 64, 64, 4
    $region53: #{gnn_forward.3} parent=1 // pred_fallthru
      _
    // Predicated region
    $region54: #{gnn_forward.3} parent=1 // pred_check
      _
    $region55: #{gnn_forward.3} parent=1 // pred_check_branch
      %184 = sbr.rel (0) target = $region57
    $region56: #{gnn_forward.3} parent=1 // pred_region
      %s186 = ssub.s32 16, 16
      %187 = vsyncadd [#allocation25], %s186
      %s189 = sshll.u32 [#allocation24], 4
      %s190 = int_to_ptr.vmem [resolvable:$true] %s189
      %192 = dma.hbm_to_vmem [thread:$0]  %s13, 16, %s190, [#allocation25]
    $region57: #{gnn_forward.3} parent=1 // pred_fallthru
      _
    // Predicated region
    $region58: #{gnn_forward.3} parent=1 // pred_check
      _
    $region59: #{gnn_forward.3} parent=1 // pred_check_branch
      %194 = sbr.rel (0) target = $region61
    $region60: #{gnn_forward.3} parent=1 // pred_region
      %s196 = ssub.s32 512, 512
      %197 = vsyncadd [#allocation25], %s196
      %s198 = sshll.u32 [#allocation26], 4
      %s199 = int_to_ptr.vmem [resolvable:$true] %s198
      %204 = dma.hbm_to_vmem [thread:$0]  %s14, 512, %s199, [#allocation25], 64, 64, 4
    $region61: #{gnn_forward.3} parent=1 // pred_fallthru
      _
    // Predicated region
    $region62: #{gnn_forward.3} parent=1 // pred_check
      _
    $region63: #{gnn_forward.3} parent=1 // pred_check_branch
      %206 = sbr.rel (0) target = $region65
    $region64: #{gnn_forward.3} parent=1 // pred_region
      %s208 = ssub.s32 16, 16
      %209 = vsyncadd [#allocation28], %s208
      %s211 = sshll.u32 [#allocation27], 4
      %s212 = int_to_ptr.vmem [resolvable:$true] %s211
      %214 = dma.hbm_to_vmem [thread:$0]  %s15, 16, %s212, [#allocation28]
    $region65: #{gnn_forward.3} parent=1 // pred_fallthru
      _
    // Predicated region
    $region66: #{gnn_forward.3} parent=1 // pred_check
      _
    $region67: #{gnn_forward.3} parent=1 // pred_check_branch
      %216 = sbr.rel (0) target = $region69
    $region68: #{gnn_forward.3} parent=1 // pred_region
      %s218 = ssub.s32 512, 512
      %219 = vsyncadd [#allocation28], %s218
      %s220 = sshll.u32 [#allocation29], 4
      %s221 = int_to_ptr.vmem [resolvable:$true] %s220
      %226 = dma.hbm_to_vmem [thread:$0]  %s16, 512, %s221, [#allocation28], 64, 64, 4
    $region69: #{gnn_forward.3} parent=1 // pred_fallthru
      _
    // Predicated region
    $region70: #{gnn_forward.3} parent=1 // pred_check
      _
    $region71: #{gnn_forward.3} parent=1 // pred_check_branch
      %228 = sbr.rel (0) target = $region73
    $region72: #{gnn_forward.3} parent=1 // pred_region
      %s230 = ssub.s32 16, 16
      %231 = vsyncadd [#allocation31], %s230
      %s233 = sshll.u32 [#allocation30], 4
      %s234 = int_to_ptr.vmem [resolvable:$true] %s233
      %236 = dma.hbm_to_vmem [thread:$0]  %s17, 16, %s234, [#allocation31]
    $region73: #{gnn_forward.3} parent=1 // pred_fallthru
      _
    // Predicated region
    $region74: #{gnn_forward.3} parent=1 // pred_check
      _
    $region75: #{gnn_forward.3} parent=1 // pred_check_branch
      %238 = sbr.rel (0) target = $region77
    $region76: #{gnn_forward.3} parent=1 // pred_region
      %s240 = ssub.s32 512, 512
      %241 = vsyncadd [#allocation31], %s240
      %s242 = sshll.u32 [#allocation32], 4
      %s243 = int_to_ptr.vmem [resolvable:$true] %s242
      %248 = dma.hbm_to_vmem [thread:$0]  %s18, 512, %s243, [#allocation31], 64, 64, 4
    $region77: #{gnn_forward.3} parent=1 // pred_fallthru
      _
    // Predicated region
    $region78: #{gnn_forward.3} parent=1 // pred_check
      _
    $region79: #{gnn_forward.3} parent=1 // pred_check_branch
      %250 = sbr.rel (0) target = $region81
    $region80: #{gnn_forward.3} parent=1 // pred_region
      %s252 = ssub.s32 16, 16
      %253 = vsyncadd [#allocation34], %s252
      %s255 = sshll.u32 [#allocation33], 4
      %s256 = int_to_ptr.vmem [resolvable:$true] %s255
      %258 = dma.hbm_to_vmem [thread:$0]  %s19, 16, %s256, [#allocation34]
    $region81: #{gnn_forward.3} parent=1 // pred_fallthru
      _
    // Predicated region
    $region82: #{gnn_forward.3} parent=1 // pred_check
      _
    $region83: #{gnn_forward.3} parent=1 // pred_check_branch
      %260 = sbr.rel (0) target = $region85
    $region84: #{gnn_forward.3} parent=1 // pred_region
      %261 = dma.done [#allocation4], 128
    $region85: #{gnn_forward.3} parent=1 // pred_fallthru
      _
    // Predicated region
    $region86: #{gnn_forward.3} parent=1 // pred_check
      _
    $region87: #{gnn_forward.3} parent=1 // pred_check_branch
      %263 = sbr.rel (0) target = $region89
    $region88: #{gnn_forward.3} parent=1 // pred_region
      %264 = dma.done [#allocation7], 256
    $region89: #{gnn_forward.3} parent=1 // pred_fallthru
      _
    // Predicated region
    $region90: #{gnn_forward.3} parent=1 // pred_check
      _
    $region91: #{gnn_forward.3} parent=1 // pred_check_branch
      %266 = sbr.rel (0) target = $region93
    $region92: #{gnn_forward.3} parent=1 // pred_region
      %267 = dma.done [#allocation7], 256
    $region93: #{gnn_forward.3} parent=1 // pred_fallthru
      _
    // Predicated region
    $region94: #{gnn_forward.3} parent=1 // pred_check
      _
    $region95: #{gnn_forward.3} parent=1 // pred_check_branch
      %269 = sbr.rel (0) target = $region97
    $region96: #{gnn_forward.3} parent=1 // pred_region
      %270 = dma.done [#allocation10], 16
    $region97: #{gnn_forward.3} parent=1 // pred_fallthru
      _
    // Predicated region
    $region98: #{gnn_forward.3} parent=1 // pred_check
      _
    $region99: #{gnn_forward.3} parent=1 // pred_check_branch
      %272 = sbr.rel (0) target = $region101
    $region100: #{gnn_forward.3} parent=1 // pred_region
      %273 = dma.done [#allocation10], 128
    $region101: #{gnn_forward.3} parent=1 // pred_fallthru
      _
    // Predicated region
    $region102: #{gnn_forward.3} parent=1 // pred_check
      _
    $region103: #{gnn_forward.3} parent=1 // pred_check_branch
      %275 = sbr.rel (0) target = $region105
    $region104: #{gnn_forward.3} parent=1 // pred_region
      %276 = dma.done [#allocation13], 128
    $region105: #{gnn_forward.3} parent=1 // pred_fallthru
      _
    // Predicated region
    $region106: #{gnn_forward.3} parent=1 // pred_check
      _
    $region107: #{gnn_forward.3} parent=1 // pred_check_branch
      %278 = sbr.rel (0) target = $region109
    $region108: #{gnn_forward.3} parent=1 // pred_region
      %279 = dma.done [#allocation13], 512
    $region109: #{gnn_forward.3} parent=1 // pred_fallthru
      _
    // Predicated region
    $region110: #{gnn_forward.3} parent=1 // pred_check
      _
    $region111: #{gnn_forward.3} parent=1 // pred_check_branch
      %281 = sbr.rel (0) target = $region113
    $region112: #{gnn_forward.3} parent=1 // pred_region
      %282 = dma.done [#allocation16], 16
    $region113: #{gnn_forward.3} parent=1 // pred_fallthru
      _
    // Predicated region
    $region114: #{gnn_forward.3} parent=1 // pred_check
      _
    $region115: #{gnn_forward.3} parent=1 // pred_check_branch
      %284 = sbr.rel (0) target = $region117
    $region116: #{gnn_forward.3} parent=1 // pred_region
      %285 = dma.done [#allocation16], 512
    $region117: #{gnn_forward.3} parent=1 // pred_fallthru
      _
    // Predicated region
    $region118: #{gnn_forward.3} parent=1 // pred_check
      _
    $region119: #{gnn_forward.3} parent=1 // pred_check_branch
      %287 = sbr.rel (0) target = $region121
    $region120: #{gnn_forward.3} parent=1 // pred_region
      %288 = dma.done [#allocation19], 16
    $region121: #{gnn_forward.3} parent=1 // pred_fallthru
      _
    // Predicated region
    $region122: #{gnn_forward.3} parent=1 // pred_check
      _
    $region123: #{gnn_forward.3} parent=1 // pred_check_branch
      %290 = sbr.rel (0) target = $region125
    $region124: #{gnn_forward.3} parent=1 // pred_region
      %291 = dma.done [#allocation19], 512
    $region125: #{gnn_forward.3} parent=1 // pred_fallthru
      _
    // Predicated region
    $region126: #{gnn_forward.3} parent=1 // pred_check
      _
    $region127: #{gnn_forward.3} parent=1 // pred_check_branch
      %293 = sbr.rel (0) target = $region129
    $region128: #{gnn_forward.3} parent=1 // pred_region
      %294 = dma.done [#allocation22], 16
    $region129: #{gnn_forward.3} parent=1 // pred_fallthru
      _
    // Predicated region
    $region130: #{gnn_forward.3} parent=1 // pred_check
      _
    $region131: #{gnn_forward.3} parent=1 // pred_check_branch
      %296 = sbr.rel (0) target = $region133
    $region132: #{gnn_forward.3} parent=1 // pred_region
      %297 = dma.done [#allocation22], 512
    $region133: #{gnn_forward.3} parent=1 // pred_fallthru
      _
    // Predicated region
    $region134: #{gnn_forward.3} parent=1 // pred_check
      _
    $region135: #{gnn_forward.3} parent=1 // pred_check_branch
      %299 = sbr.rel (0) target = $region137
    $region136: #{gnn_forward.3} parent=1 // pred_region
      %300 = dma.done [#allocation25], 16
    $region137: #{gnn_forward.3} parent=1 // pred_fallthru
      _
    // Predicated region
    $region138: #{gnn_forward.3} parent=1 // pred_check
      _
    $region139: #{gnn_forward.3} parent=1 // pred_check_branch
      %302 = sbr.rel (0) target = $region141
    $region140: #{gnn_forward.3} parent=1 // pred_region
      %303 = dma.done [#allocation25], 512
    $region141: #{gnn_forward.3} parent=1 // pred_fallthru
      _
    // Predicated region
    $region142: #{gnn_forward.3} parent=1 // pred_check
      _
    $region143: #{gnn_forward.3} parent=1 // pred_check_branch
      %305 = sbr.rel (0) target = $region145
    $region144: #{gnn_forward.3} parent=1 // pred_region
      %306 = dma.done [#allocation28], 16
    $region145: #{gnn_forward.3} parent=1 // pred_fallthru
      _
    // Predicated region
    $region146: #{gnn_forward.3} parent=1 // pred_check
      _
    $region147: #{gnn_forward.3} parent=1 // pred_check_branch
      %308 = sbr.rel (0) target = $region149
    $region148: #{gnn_forward.3} parent=1 // pred_region
      %309 = dma.done [#allocation28], 512
    $region149: #{gnn_forward.3} parent=1 // pred_fallthru
      _
    // Predicated region
    $region150: #{gnn_forward.3} parent=1 // pred_check
      _
    $region151: #{gnn_forward.3} parent=1 // pred_check_branch
      %311 = sbr.rel (0) target = $region153
    $region152: #{gnn_forward.3} parent=1 // pred_region
      %312 = dma.done [#allocation31], 16
    $region153: #{gnn_forward.3} parent=1 // pred_fallthru
      _
    // Predicated region
    $region154: #{gnn_forward.3} parent=1 // pred_check
      _
    $region155: #{gnn_forward.3} parent=1 // pred_check_branch
      %314 = sbr.rel (0) target = $region157
    $region156: #{gnn_forward.3} parent=1 // pred_region
      %315 = dma.done [#allocation31], 512
    $region157: #{gnn_forward.3} parent=1 // pred_fallthru
      _
    // Predicated region
    $region158: #{gnn_forward.3} parent=1 // pred_check
      _
    $region159: #{gnn_forward.3} parent=1 // pred_check_branch
      %317 = sbr.rel (0) target = $region161
    $region160: #{gnn_forward.3} parent=1 // pred_region
      %318 = dma.done [#allocation34], 16
    $region161: #{gnn_forward.3} parent=1 // pred_fallthru
      _
    %p320 = scmp.eq.s32.totalorder 0, 0
    // Predicated region
    $region162: #{gnn_forward.3} parent=1 // pred_check
      %p321 = pneg %p320
    $region163: #{gnn_forward.3} parent=1 // pred_check_branch
      %323 = sbr.rel (%p321) target = $region165
    $region164: #{gnn_forward.3} parent=1 // pred_region
      %vm324 = vcmask 523264
      %325 = vst.msk [vmem:[#allocation2] sm:$0xff] %vm324, 0.0
    $region165: #{gnn_forward.3} parent=1 // pred_fallthru
      _
    %v326 = vld [vmem:[#allocation8] sm:$0xff]
    %v327 = vld [vmem:[#allocation8 + $0x8] sm:$0xff]
    %vm328 = vcmp.gt.f32.partialorder %v326, 0.0
    %vm329 = vcmp.gt.f32.partialorder %v327, 0.0
    %v330 = vld [vmem:[#allocation6] sm:$0xff]
    %v331 = vld [vmem:[#allocation6 + $0x8] sm:$0xff]
    %333 = vset.pattern.permute.xlu0 0
    %334 = vperm.xlu0 %333, %v326
    %v335 = vpop.permute.xlu0 %334
    %338 = vset.pattern.permute.xlu0 0
    %339 = vperm.xlu0 %338, %v327
    %v340 = vpop.permute.xlu0 %339
    %v342 = vmul.f32 %v330, %v335
    %v343 = vmul.f32 %v331, %v340
    %v344 = vsel %vm328, 1, 0
    %v345 = vsel %vm329, 1, 0
    %346 = vset.pattern.permute.xlu0 0
    %347 = vperm.xlu0 %346, %v344
    %v348 = vpop.permute.xlu0 %347
    %349 = vset.pattern.permute.xlu0 0
    %350 = vperm.xlu0 %349, %v345
    %v351 = vpop.permute.xlu0 %350
    %vm352 = vcmp.eq.s32.totalorder %v348, 1
    %vm353 = vcmp.eq.s32.totalorder %v351, 1
    %v354 = vsel %vm352, %v342, 0.0
    %v355 = vsel %vm353, %v343, 0.0
    %v356 = vld [vmem:[#allocation3] sm:$0xf]
    %v357 = vld [vmem:[#allocation3 + $0x4] sm:$0xf]
    %v358 = vld [vmem:[#allocation12] sm:$0xf]
    %v359 = vld [vmem:[#allocation12 + $0x4] sm:$0x1]
    %v360 = vpack.c.bf16 %v355, %v354
    %v361 = vld [vmem:[#allocation14] sm:$0xf]
    %v362 = vld [vmem:[#allocation14 + $0x4] sm:$0xf]
    %v363 = vld [vmem:[#allocation14 + $0x8] sm:$0xf]
    %v364 = vld [vmem:[#allocation14 + $0xc] sm:$0xf]
    %v365 = vld [vmem:[#allocation14 + $0x10] sm:$0xf]
    %v366 = vld [vmem:[#allocation14 + $0x14] sm:$0xf]
    %v367 = vld [vmem:[#allocation14 + $0x18] sm:$0xf]
    %v368 = vld [vmem:[#allocation14 + $0x1c] sm:$0xf]
    %v377 = vunpack.c.l.b16 %v361
    %v378 = vunpack.c.l.b16 %v362
    %v379 = vunpack.c.l.b16 %v363
    %v380 = vunpack.c.l.b16 %v364
    %v381 = vunpack.c.l.b16 %v365
    %v382 = vunpack.c.l.b16 %v366
    %v383 = vunpack.c.l.b16 %v367
    %v384 = vunpack.c.l.b16 %v368
    %v385 = vpack.c.b16 %v378, %v377
    %v386 = vpack.c.b16 %v380, %v379
    %v387 = vpack.c.b16 %v382, %v381
    %v388 = vpack.c.b16 %v384, %v383
    %vm393 = vcmask 523264
    %v395 = vsel %vm393, %v360, 0
    %397 = vmatprep.subr.bf16.mxu0 0
    %398 = vmatpush1.bf16.msra.mxu0 %v385
    %399 = vmatprep.subr.bf16.mxu0 0
    %400 = vmatpush1.bf16.msra.mxu0 %v386
    %401 = vmatprep.subr.bf16.mxu0 0
    %402 = vmatpush1.bf16.msra.mxu0 %v387
    %403 = vmatprep.subr.bf16.mxu0 0
    %404 = vmatpush1.bf16.msra.mxu0 %v388
    %405 = vmatprep.subr.bf16.mxu0 0
    %406 = vmatpush1.bf16.msra.mxu0 0
    %407 = vmatprep.subr.bf16.mxu0 0
    %408 = vmatpush1.bf16.msra.mxu0 0
    %409 = vmatprep.subr.bf16.mxu0 0
    %410 = vmatpush1.bf16.msra.mxu0 0
    %411 = vmatprep.subr.bf16.mxu0 0
    %412 = vmatpush1.bf16.msra.mxu0 0
    %413 = vmatprep.subr.bf16.mxu0 0
    %414 = vmatpush1.bf16.msra.mxu0 0
    %415 = vmatprep.subr.bf16.mxu0 0
    %416 = vmatpush1.bf16.msra.mxu0 0
    %417 = vmatprep.subr.bf16.mxu0 0
    %418 = vmatpush1.bf16.msra.mxu0 0
    %419 = vmatprep.subr.bf16.mxu0 0
    %420 = vmatpush1.bf16.msra.mxu0 0
    %421 = vmatprep.subr.bf16.mxu0 0
    %422 = vmatpush1.bf16.msra.mxu0 0
    %423 = vmatprep.subr.bf16.mxu0 0
    %424 = vmatpush1.bf16.msra.mxu0 0
    %425 = vmatprep.subr.bf16.mxu0 0
    %426 = vmatpush1.bf16.msra.mxu0 0
    %427 = vmatprep.subr.bf16.mxu0 0
    %428 = vmatpush1.bf16.msra.mxu0 0
    %429 = vmatprep.mubr.bf16.mxu0 0
    %430 = vmatmul.mubr.bf16.gmra.mrb[0].mxu0 %v395
    %v431 = vpop.f32.mrb[0].mxu0
    %v432 = vadd.f32 0.0, %v431
    %v433 = vpop.f32.mrb[0].mxu0
    %v434 = vpop.f32.mrb[0].mxu0
    %v435 = vadd.f32 0.0, %v434
    %v436 = vpop.f32.mrb[0].mxu0
    %437 = vdwg.mxu0
    %v440 = vunpack.c.l.b16 %v356
    %v441 = vunpack.c.l.b16 %v357
    %v442 = vpack.c.b16 %v441, %v440
    %v445 = vunpack.c.l.b16 %v358
    %v446 = vunpack.c.l.b16 %v359
    %v447 = vpack.c.b16 %v446, %v445
    %vm448 = vcmask 72704
    %v450 = vsel %vm448, %v442, 0
    %vm452 = vcmask 1043456
    %vm453 = vcmask 1044480
    %v454 = vsel %vm452, 4294967295, 65535
    %v455 = vsel %vm453, %v454, 0
    %v457 = vand.u32 %v447, %v455
    %459 = vmatprep.subr.bf16.mxu0 0
    %460 = vmatpush1.bf16.msra.mxu0 %v457
    %461 = vmatprep.subr.bf16.mxu0 0
    %462 = vmatpush1.bf16.msra.mxu0 0
    %463 = vmatprep.subr.bf16.mxu0 0
    %464 = vmatpush1.bf16.msra.mxu0 0
    %465 = vmatprep.subr.bf16.mxu0 0
    %466 = vmatpush1.bf16.msra.mxu0 0
    %467 = vmatprep.subr.bf16.mxu0 0
    %468 = vmatpush1.bf16.msra.mxu0 0
    %469 = vmatprep.subr.bf16.mxu0 0
    %470 = vmatpush1.bf16.msra.mxu0 0
    %471 = vmatprep.subr.bf16.mxu0 0
    %472 = vmatpush1.bf16.msra.mxu0 0
    %473 = vmatprep.subr.bf16.mxu0 0
    %474 = vmatpush1.bf16.msra.mxu0 0
    %475 = vmatprep.subr.bf16.mxu0 0
    %476 = vmatpush1.bf16.msra.mxu0 0
    %477 = vmatprep.subr.bf16.mxu0 0
    %478 = vmatpush1.bf16.msra.mxu0 0
    %479 = vmatprep.subr.bf16.mxu0 0
    %480 = vmatpush1.bf16.msra.mxu0 0
    %481 = vmatprep.subr.bf16.mxu0 0
    %482 = vmatpush1.bf16.msra.mxu0 0
    %483 = vmatprep.subr.bf16.mxu0 0
    %484 = vmatpush1.bf16.msra.mxu0 0
    %485 = vmatprep.subr.bf16.mxu0 0
    %486 = vmatpush1.bf16.msra.mxu0 0
    %487 = vmatprep.subr.bf16.mxu0 0
    %488 = vmatpush1.bf16.msra.mxu0 0
    %489 = vmatprep.subr.bf16.mxu0 0
    %490 = vmatpush1.bf16.msra.mxu0 0
    %491 = vmatprep.mubr.bf16.mxu0 0
    %492 = vmatmul.mubr.bf16.gmra.mrb[0].mxu0 %v450
    %v493 = vpop.f32.mrb[0].mxu0
    %v494 = vadd.f32 %v432, %v493
    %v495 = vpop.f32.mrb[0].mxu0
    %v496 = vpop.f32.mrb[0].mxu0
    %v497 = vadd.f32 %v435, %v496
    %v498 = vpop.f32.mrb[0].mxu0
    %499 = vdwg.mxu0
    %v500 = vld [vmem:[#allocation15] sm:$0x1]
    %v502 = vlaneseq
    %v503 = vshrl.u32 %v502, 7
    %v504 = vsub.s32 0, %v503
    %v505 = vrot.slane %v500, %v504
    %v507 = vadd.f32 %v494, %v505
    %v508 = vadd.f32 %v497, %v505
    %v509 = vmax.f32 %v507, 0.0
    %v510 = vmax.f32 %v508, 0.0
    %v511 = vpack.c.bf16 %v510, %v509
    %v512 = vld [vmem:[#allocation17] sm:$0xf]
    %v513 = vld [vmem:[#allocation17 + $0x4] sm:$0xf]
    %v514 = vld [vmem:[#allocation17 + $0x8] sm:$0xf]
    %v515 = vld [vmem:[#allocation17 + $0xc] sm:$0xf]
    %v516 = vld [vmem:[#allocation17 + $0x10] sm:$0xf]
    %v517 = vld [vmem:[#allocation17 + $0x14] sm:$0xf]
    %v518 = vld [vmem:[#allocation17 + $0x18] sm:$0xf]
    %v519 = vld [vmem:[#allocation17 + $0x1c] sm:$0xf]
    %v520 = vld [vmem:[#allocation18] sm:$0x1]
    %v522 = vlaneseq
    %v523 = vshrl.u32 %v522, 7
    %v524 = vsub.s32 0, %v523
    %v525 = vrot.slane %v520, %v524
    %v535 = vunpack.c.l.b16 %v512
    %v536 = vunpack.c.l.b16 %v513
    %v537 = vunpack.c.l.b16 %v514
    %v538 = vunpack.c.l.b16 %v515
    %v539 = vunpack.c.l.b16 %v516
    %v540 = vunpack.c.l.b16 %v517
    %v541 = vunpack.c.l.b16 %v518
    %v542 = vunpack.c.l.b16 %v519
    %v543 = vpack.c.b16 %v536, %v535
    %v544 = vpack.c.b16 %v538, %v537
    %v545 = vpack.c.b16 %v540, %v539
    %v546 = vpack.c.b16 %v542, %v541
    %v552 = vsel %vm393, %v511, 0
    %554 = vmatprep.subr.bf16.mxu0 0
    %555 = vmatpush1.bf16.msra.mxu0 %v543
    %556 = vmatprep.subr.bf16.mxu0 0
    %557 = vmatpush1.bf16.msra.mxu0 %v544
    %558 = vmatprep.subr.bf16.mxu0 0
    %559 = vmatpush1.bf16.msra.mxu0 %v545
    %560 = vmatprep.subr.bf16.mxu0 0
    %561 = vmatpush1.bf16.msra.mxu0 %v546
    %562 = vmatprep.subr.bf16.mxu0 0
    %563 = vmatpush1.bf16.msra.mxu0 0
    %564 = vmatprep.subr.bf16.mxu0 0
    %565 = vmatpush1.bf16.msra.mxu0 0
    %566 = vmatprep.subr.bf16.mxu0 0
    %567 = vmatpush1.bf16.msra.mxu0 0
    %568 = vmatprep.subr.bf16.mxu0 0
    %569 = vmatpush1.bf16.msra.mxu0 0
    %570 = vmatprep.subr.bf16.mxu0 0
    %571 = vmatpush1.bf16.msra.mxu0 0
    %572 = vmatprep.subr.bf16.mxu0 0
    %573 = vmatpush1.bf16.msra.mxu0 0
    %574 = vmatprep.subr.bf16.mxu0 0
    %575 = vmatpush1.bf16.msra.mxu0 0
    %576 = vmatprep.subr.bf16.mxu0 0
    %577 = vmatpush1.bf16.msra.mxu0 0
    %578 = vmatprep.subr.bf16.mxu0 0
    %579 = vmatpush1.bf16.msra.mxu0 0
    %580 = vmatprep.subr.bf16.mxu0 0
    %581 = vmatpush1.bf16.msra.mxu0 0
    %582 = vmatprep.subr.bf16.mxu0 0
    %583 = vmatpush1.bf16.msra.mxu0 0
    %584 = vmatprep.subr.bf16.mxu0 0
    %585 = vmatpush1.bf16.msra.mxu0 0
    %586 = vmatprep.mubr.bf16.mxu0 0
    %587 = vmatmul.mubr.bf16.gmra.mrb[0].mxu0 %v552
    %v588 = vpop.f32.mrb[0].mxu0
    %v589 = vadd.f32 %v525, %v588
    %v590 = vpop.f32.mrb[0].mxu0
    %v591 = vpop.f32.mrb[0].mxu0
    %v592 = vadd.f32 %v525, %v591
    %v593 = vpop.f32.mrb[0].mxu0
    %594 = vdwg.mxu0
    %v595 = vmax.f32 %v589, 0.0
    %v596 = vmax.f32 %v592, 0.0
    %v597 = vpack.c.bf16 %v596, %v595
    %v598 = vld [vmem:[#allocation20] sm:$0xf]
    %v599 = vld [vmem:[#allocation20 + $0x4] sm:$0xf]
    %v600 = vld [vmem:[#allocation20 + $0x8] sm:$0xf]
    %v601 = vld [vmem:[#allocation20 + $0xc] sm:$0xf]
    %v602 = vld [vmem:[#allocation20 + $0x10] sm:$0xf]
    %v603 = vld [vmem:[#allocation20 + $0x14] sm:$0xf]
    %v604 = vld [vmem:[#allocation20 + $0x18] sm:$0xf]
    %v605 = vld [vmem:[#allocation20 + $0x1c] sm:$0xf]
    %v606 = vld [vmem:[#allocation21] sm:$0x1]
    %v608 = vlaneseq
    %v609 = vshrl.u32 %v608, 7
    %v610 = vsub.s32 0, %v609
    %v611 = vrot.slane %v606, %v610
    %v621 = vunpack.c.l.b16 %v598
    %v622 = vunpack.c.l.b16 %v599
    %v623 = vunpack.c.l.b16 %v600
    %v624 = vunpack.c.l.b16 %v601
    %v625 = vunpack.c.l.b16 %v602
    %v626 = vunpack.c.l.b16 %v603
    %v627 = vunpack.c.l.b16 %v604
    %v628 = vunpack.c.l.b16 %v605
    %v629 = vpack.c.b16 %v622, %v621
    %v630 = vpack.c.b16 %v624, %v623
    %v631 = vpack.c.b16 %v626, %v625
    %v632 = vpack.c.b16 %v628, %v627
    %v638 = vsel %vm393, %v597, 0
    %640 = vmatprep.subr.bf16.mxu0 0
    %641 = vmatpush1.bf16.msra.mxu0 %v629
    %642 = vmatprep.subr.bf16.mxu0 0
    %643 = vmatpush1.bf16.msra.mxu0 %v630
    %644 = vmatprep.subr.bf16.mxu0 0
    %645 = vmatpush1.bf16.msra.mxu0 %v631
    %646 = vmatprep.subr.bf16.mxu0 0
    %647 = vmatpush1.bf16.msra.mxu0 %v632
    %648 = vmatprep.subr.bf16.mxu0 0
    %649 = vmatpush1.bf16.msra.mxu0 0
    %650 = vmatprep.subr.bf16.mxu0 0
    %651 = vmatpush1.bf16.msra.mxu0 0
    %652 = vmatprep.subr.bf16.mxu0 0
    %653 = vmatpush1.bf16.msra.mxu0 0
    %654 = vmatprep.subr.bf16.mxu0 0
    %655 = vmatpush1.bf16.msra.mxu0 0
    %656 = vmatprep.subr.bf16.mxu0 0
    %657 = vmatpush1.bf16.msra.mxu0 0
    %658 = vmatprep.subr.bf16.mxu0 0
    %659 = vmatpush1.bf16.msra.mxu0 0
    %660 = vmatprep.subr.bf16.mxu0 0
    %661 = vmatpush1.bf16.msra.mxu0 0
    %662 = vmatprep.subr.bf16.mxu0 0
    %663 = vmatpush1.bf16.msra.mxu0 0
    %664 = vmatprep.subr.bf16.mxu0 0
    %665 = vmatpush1.bf16.msra.mxu0 0
    %666 = vmatprep.subr.bf16.mxu0 0
    %667 = vmatpush1.bf16.msra.mxu0 0
    %668 = vmatprep.subr.bf16.mxu0 0
    %669 = vmatpush1.bf16.msra.mxu0 0
    %670 = vmatprep.subr.bf16.mxu0 0
    %671 = vmatpush1.bf16.msra.mxu0 0
    %672 = vmatprep.mubr.bf16.mxu0 0
    %673 = vmatmul.mubr.bf16.gmra.mrb[0].mxu0 %v638
    %v674 = vpop.f32.mrb[0].mxu0
    %v675 = vadd.f32 %v611, %v674
    %v676 = vpop.f32.mrb[0].mxu0
    %v677 = vpop.f32.mrb[0].mxu0
    %v678 = vadd.f32 %v611, %v677
    %v679 = vpop.f32.mrb[0].mxu0
    %680 = vdwg.mxu0
    %v681 = vld [vmem:[#allocation9] sm:$0x1]
    %v682 = vlaneseq
    %v683 = vshrl.u32 %v682, 7
    %v684 = vlaneseq
    %v685 = vshrl.u32 %v684, 7
    %v686 = vsub.s32 0, %v685
    %v687 = vrot.slane %v681, %v686
    %vm688 = vcmp.eq.s32.totalorder %v683, %v687
    %v689 = vsel %vm688, 1, 0
    %v690 = vcvt.s32.f32 %v689
    %v691 = vpack.c.bf16 %v690, %v690
    %v692 = vld [vmem:[#allocation2] sm:$0xff]
    %v693 = vpack.c.bf16 %v678, %v675
    %vm694 = vcmask 130048
    %v696 = vsel %vm694, %v691, 0
    %698 = vmatprep.subr.bf16.mxu0 0
    %699 = vmatpush1.bf16.msra.mxu0 %v693
    %700 = vmatprep.subr.bf16.mxu0 0
    %701 = vmatpush1.bf16.msra.mxu0 0
    %702 = vmatprep.subr.bf16.mxu0 0
    %703 = vmatpush1.bf16.msra.mxu0 0
    %704 = vmatprep.subr.bf16.mxu0 0
    %705 = vmatpush1.bf16.msra.mxu0 0
    %706 = vmatprep.subr.bf16.mxu0 0
    %707 = vmatpush1.bf16.msra.mxu0 0
    %708 = vmatprep.subr.bf16.mxu0 0
    %709 = vmatpush1.bf16.msra.mxu0 0
    %710 = vmatprep.subr.bf16.mxu0 0
    %711 = vmatpush1.bf16.msra.mxu0 0
    %712 = vmatprep.subr.bf16.mxu0 0
    %713 = vmatpush1.bf16.msra.mxu0 0
    %714 = vmatprep.subr.bf16.mxu0 0
    %715 = vmatpush1.bf16.msra.mxu0 0
    %716 = vmatprep.subr.bf16.mxu0 0
    %717 = vmatpush1.bf16.msra.mxu0 0
    %718 = vmatprep.subr.bf16.mxu0 0
    %719 = vmatpush1.bf16.msra.mxu0 0
    %720 = vmatprep.subr.bf16.mxu0 0
    %721 = vmatpush1.bf16.msra.mxu0 0
    %722 = vmatprep.subr.bf16.mxu0 0
    %723 = vmatpush1.bf16.msra.mxu0 0
    %724 = vmatprep.subr.bf16.mxu0 0
    %725 = vmatpush1.bf16.msra.mxu0 0
    %726 = vmatprep.subr.bf16.mxu0 0
    %727 = vmatpush1.bf16.msra.mxu0 0
    %728 = vmatprep.subr.bf16.mxu0 0
    %729 = vmatpush1.bf16.msra.mxu0 0
    %730 = vmatprep.mubr.bf16.mxu0 0
    %731 = vmatmul.mubr.bf16.gmra.mrb[0].mxu0 %v696
    %v732 = vpop.f32.mrb[0].mxu0
    %v733 = vadd.f32 0.0, %v732
    %v734 = vpop.f32.mrb[0].mxu0
    %v735 = vpop.f32.mrb[0].mxu0
    %v736 = vpop.f32.mrb[0].mxu0
    %737 = vdwg.mxu0
    %v738 = vadd.f32 %v692, %v733
    %739 = vst.msk [vmem:[#allocation2] sm:$0xff] %vm393, %v738
    // Predicated region
    $region166: #{gnn_forward.3} parent=1 // pred_check
      %p740 = pneg %p320
    $region167: #{gnn_forward.3} parent=1 // pred_check_branch
      %742 = sbr.rel (%p740) target = $region169
    $region168: #{gnn_forward.3} parent=1 // pred_region
      %v743 = vld [vmem:[#allocation2] sm:$0xff]
      %v744 = vld [vmem:[#allocation11] sm:$0xff]
      %746 = vset.pattern.permute.xlu0 0
      %747 = vperm.xlu0 %746, %v744
      %v748 = vpop.permute.xlu0 %747
      %v750 = vmul.f32 %v743, %v748
      %v751 = vpack.c.bf16 %v750, %v750
      %v752 = vld [vmem:[#allocation23] sm:$0xf]
      %v753 = vld [vmem:[#allocation23 + $0x4] sm:$0xf]
      %v754 = vld [vmem:[#allocation23 + $0x8] sm:$0xf]
      %v755 = vld [vmem:[#allocation23 + $0xc] sm:$0xf]
      %v756 = vld [vmem:[#allocation23 + $0x10] sm:$0xf]
      %v757 = vld [vmem:[#allocation23 + $0x14] sm:$0xf]
      %v758 = vld [vmem:[#allocation23 + $0x18] sm:$0xf]
      %v759 = vld [vmem:[#allocation23 + $0x1c] sm:$0xf]
      %v760 = vld [vmem:[#allocation24] sm:$0x1]
      %v762 = vlaneseq
      %v763 = vshrl.u32 %v762, 7
      %v764 = vsub.s32 0, %v763
      %v765 = vrot.slane %v760, %v764
      %v775 = vunpack.c.l.b16 %v752
      %v776 = vunpack.c.l.b16 %v753
      %v777 = vunpack.c.l.b16 %v754
      %v778 = vunpack.c.l.b16 %v755
      %v779 = vunpack.c.l.b16 %v756
      %v780 = vunpack.c.l.b16 %v757
      %v781 = vunpack.c.l.b16 %v758
      %v782 = vunpack.c.l.b16 %v759
      %v783 = vpack.c.b16 %v776, %v775
      %v784 = vpack.c.b16 %v778, %v777
      %v785 = vpack.c.b16 %v780, %v779
      %v786 = vpack.c.b16 %v782, %v781
      %v792 = vsel %vm393, %v751, 0
      %794 = vmatprep.subr.bf16.mxu0 0
      %795 = vmatpush1.bf16.msra.mxu0 %v783
      %796 = vmatprep.subr.bf16.mxu0 0
      %797 = vmatpush1.bf16.msra.mxu0 %v784
      %798 = vmatprep.subr.bf16.mxu0 0
      %799 = vmatpush1.bf16.msra.mxu0 %v785
      %800 = vmatprep.subr.bf16.mxu0 0
      %801 = vmatpush1.bf16.msra.mxu0 %v786
      %802 = vmatprep.subr.bf16.mxu0 0
      %803 = vmatpush1.bf16.msra.mxu0 0
      %804 = vmatprep.subr.bf16.mxu0 0
      %805 = vmatpush1.bf16.msra.mxu0 0
      %806 = vmatprep.subr.bf16.mxu0 0
      %807 = vmatpush1.bf16.msra.mxu0 0
      %808 = vmatprep.subr.bf16.mxu0 0
      %809 = vmatpush1.bf16.msra.mxu0 0
      %810 = vmatprep.subr.bf16.mxu0 0
      %811 = vmatpush1.bf16.msra.mxu0 0
      %812 = vmatprep.subr.bf16.mxu0 0
      %813 = vmatpush1.bf16.msra.mxu0 0
      %814 = vmatprep.subr.bf16.mxu0 0
      %815 = vmatpush1.bf16.msra.mxu0 0
      %816 = vmatprep.subr.bf16.mxu0 0
      %817 = vmatpush1.bf16.msra.mxu0 0
      %818 = vmatprep.subr.bf16.mxu0 0
      %819 = vmatpush1.bf16.msra.mxu0 0
      %820 = vmatprep.subr.bf16.mxu0 0
      %821 = vmatpush1.bf16.msra.mxu0 0
      %822 = vmatprep.subr.bf16.mxu0 0
      %823 = vmatpush1.bf16.msra.mxu0 0
      %824 = vmatprep.subr.bf16.mxu0 0
      %825 = vmatpush1.bf16.msra.mxu0 0
      %826 = vmatprep.mubr.bf16.mxu0 0
      %827 = vmatmul.mubr.bf16.gmra.mrb[0].mxu0 %v792
      %v828 = vpop.f32.mrb[0].mxu0
      %v829 = vadd.f32 %v765, %v828
      %v830 = vpop.f32.mrb[0].mxu0
      %v831 = vpop.f32.mrb[0].mxu0
      %v832 = vpop.f32.mrb[0].mxu0
      %833 = vdwg.mxu0
      %v834 = vmax.f32 %v829, 0.0
      %v835 = vpack.c.bf16 %v834, %v834
      %v836 = vld [vmem:[#allocation26] sm:$0xf]
      %v837 = vld [vmem:[#allocation26 + $0x4] sm:$0xf]
      %v838 = vld [vmem:[#allocation26 + $0x8] sm:$0xf]
      %v839 = vld [vmem:[#allocation26 + $0xc] sm:$0xf]
      %v840 = vld [vmem:[#allocation26 + $0x10] sm:$0xf]
      %v841 = vld [vmem:[#allocation26 + $0x14] sm:$0xf]
      %v842 = vld [vmem:[#allocation26 + $0x18] sm:$0xf]
      %v843 = vld [vmem:[#allocation26 + $0x1c] sm:$0xf]
      %v844 = vld [vmem:[#allocation27] sm:$0x1]
      %v846 = vlaneseq
      %v847 = vshrl.u32 %v846, 7
      %v848 = vsub.s32 0, %v847
      %v849 = vrot.slane %v844, %v848
      %v859 = vunpack.c.l.b16 %v836
      %v860 = vunpack.c.l.b16 %v837
      %v861 = vunpack.c.l.b16 %v838
      %v862 = vunpack.c.l.b16 %v839
      %v863 = vunpack.c.l.b16 %v840
      %v864 = vunpack.c.l.b16 %v841
      %v865 = vunpack.c.l.b16 %v842
      %v866 = vunpack.c.l.b16 %v843
      %v867 = vpack.c.b16 %v860, %v859
      %v868 = vpack.c.b16 %v862, %v861
      %v869 = vpack.c.b16 %v864, %v863
      %v870 = vpack.c.b16 %v866, %v865
      %v876 = vsel %vm393, %v835, 0
      %878 = vmatprep.subr.bf16.mxu0 0
      %879 = vmatpush1.bf16.msra.mxu0 %v867
      %880 = vmatprep.subr.bf16.mxu0 0
      %881 = vmatpush1.bf16.msra.mxu0 %v868
      %882 = vmatprep.subr.bf16.mxu0 0
      %883 = vmatpush1.bf16.msra.mxu0 %v869
      %884 = vmatprep.subr.bf16.mxu0 0
      %885 = vmatpush1.bf16.msra.mxu0 %v870
      %886 = vmatprep.subr.bf16.mxu0 0
      %887 = vmatpush1.bf16.msra.mxu0 0
      %888 = vmatprep.subr.bf16.mxu0 0
      %889 = vmatpush1.bf16.msra.mxu0 0
      %890 = vmatprep.subr.bf16.mxu0 0
      %891 = vmatpush1.bf16.msra.mxu0 0
      %892 = vmatprep.subr.bf16.mxu0 0
      %893 = vmatpush1.bf16.msra.mxu0 0
      %894 = vmatprep.subr.bf16.mxu0 0
      %895 = vmatpush1.bf16.msra.mxu0 0
      %896 = vmatprep.subr.bf16.mxu0 0
      %897 = vmatpush1.bf16.msra.mxu0 0
      %898 = vmatprep.subr.bf16.mxu0 0
      %899 = vmatpush1.bf16.msra.mxu0 0
      %900 = vmatprep.subr.bf16.mxu0 0
      %901 = vmatpush1.bf16.msra.mxu0 0
      %902 = vmatprep.subr.bf16.mxu0 0
      %903 = vmatpush1.bf16.msra.mxu0 0
      %904 = vmatprep.subr.bf16.mxu0 0
      %905 = vmatpush1.bf16.msra.mxu0 0
      %906 = vmatprep.subr.bf16.mxu0 0
      %907 = vmatpush1.bf16.msra.mxu0 0
      %908 = vmatprep.subr.bf16.mxu0 0
      %909 = vmatpush1.bf16.msra.mxu0 0
      %910 = vmatprep.mubr.bf16.mxu0 0
      %911 = vmatmul.mubr.bf16.gmra.mrb[0].mxu0 %v876
      %v912 = vpop.f32.mrb[0].mxu0
      %v913 = vadd.f32 %v849, %v912
      %v914 = vpop.f32.mrb[0].mxu0
      %v915 = vpop.f32.mrb[0].mxu0
      %v916 = vpop.f32.mrb[0].mxu0
      %917 = vdwg.mxu0
      %v918 = vmax.f32 %v913, 0.0
      %v919 = vpack.c.bf16 %v918, %v918
      %v920 = vld [vmem:[#allocation29] sm:$0xf]
      %v921 = vld [vmem:[#allocation29 + $0x4] sm:$0xf]
      %v922 = vld [vmem:[#allocation29 + $0x8] sm:$0xf]
      %v923 = vld [vmem:[#allocation29 + $0xc] sm:$0xf]
      %v924 = vld [vmem:[#allocation29 + $0x10] sm:$0xf]
      %v925 = vld [vmem:[#allocation29 + $0x14] sm:$0xf]
      %v926 = vld [vmem:[#allocation29 + $0x18] sm:$0xf]
      %v927 = vld [vmem:[#allocation29 + $0x1c] sm:$0xf]
      %v928 = vld [vmem:[#allocation30] sm:$0x1]
      %v930 = vlaneseq
      %v931 = vshrl.u32 %v930, 7
      %v932 = vsub.s32 0, %v931
      %v933 = vrot.slane %v928, %v932
      %v943 = vunpack.c.l.b16 %v920
      %v944 = vunpack.c.l.b16 %v921
      %v945 = vunpack.c.l.b16 %v922
      %v946 = vunpack.c.l.b16 %v923
      %v947 = vunpack.c.l.b16 %v924
      %v948 = vunpack.c.l.b16 %v925
      %v949 = vunpack.c.l.b16 %v926
      %v950 = vunpack.c.l.b16 %v927
      %v951 = vpack.c.b16 %v944, %v943
      %v952 = vpack.c.b16 %v946, %v945
      %v953 = vpack.c.b16 %v948, %v947
      %v954 = vpack.c.b16 %v950, %v949
      %v960 = vsel %vm393, %v919, 0
      %962 = vmatprep.subr.bf16.mxu0 0
      %963 = vmatpush1.bf16.msra.mxu0 %v951
      %964 = vmatprep.subr.bf16.mxu0 0
      %965 = vmatpush1.bf16.msra.mxu0 %v952
      %966 = vmatprep.subr.bf16.mxu0 0
      %967 = vmatpush1.bf16.msra.mxu0 %v953
      %968 = vmatprep.subr.bf16.mxu0 0
      %969 = vmatpush1.bf16.msra.mxu0 %v954
      %970 = vmatprep.subr.bf16.mxu0 0
      %971 = vmatpush1.bf16.msra.mxu0 0
      %972 = vmatprep.subr.bf16.mxu0 0
      %973 = vmatpush1.bf16.msra.mxu0 0
      %974 = vmatprep.subr.bf16.mxu0 0
      %975 = vmatpush1.bf16.msra.mxu0 0
      %976 = vmatprep.subr.bf16.mxu0 0
      %977 = vmatpush1.bf16.msra.mxu0 0
      %978 = vmatprep.subr.bf16.mxu0 0
      %979 = vmatpush1.bf16.msra.mxu0 0
      %980 = vmatprep.subr.bf16.mxu0 0
      %981 = vmatpush1.bf16.msra.mxu0 0
      %982 = vmatprep.subr.bf16.mxu0 0
      %983 = vmatpush1.bf16.msra.mxu0 0
      %984 = vmatprep.subr.bf16.mxu0 0
      %985 = vmatpush1.bf16.msra.mxu0 0
      %986 = vmatprep.subr.bf16.mxu0 0
      %987 = vmatpush1.bf16.msra.mxu0 0
      %988 = vmatprep.subr.bf16.mxu0 0
      %989 = vmatpush1.bf16.msra.mxu0 0
      %990 = vmatprep.subr.bf16.mxu0 0
      %991 = vmatpush1.bf16.msra.mxu0 0
      %992 = vmatprep.subr.bf16.mxu0 0
      %993 = vmatpush1.bf16.msra.mxu0 0
      %994 = vmatprep.mubr.bf16.mxu0 0
      %995 = vmatmul.mubr.bf16.gmra.mrb[0].mxu0 %v960
      %v996 = vpop.f32.mrb[0].mxu0
      %v997 = vadd.f32 %v933, %v996
      %v998 = vpop.f32.mrb[0].mxu0
      %v999 = vpop.f32.mrb[0].mxu0
      %v1000 = vpop.f32.mrb[0].mxu0
      %1001 = vdwg.mxu0
      %v1002 = vpack.c.bf16 %v997, %v997
      %v1003 = vld [vmem:[#allocation32] sm:$0xf]
      %v1004 = vld [vmem:[#allocation32 + $0x4] sm:$0xf]
      %v1005 = vld [vmem:[#allocation32 + $0x8] sm:$0xf]
      %v1006 = vld [vmem:[#allocation32 + $0xc] sm:$0xf]
      %v1007 = vld [vmem:[#allocation32 + $0x10] sm:$0xf]
      %v1008 = vld [vmem:[#allocation32 + $0x14] sm:$0xf]
      %v1009 = vld [vmem:[#allocation32 + $0x18] sm:$0xf]
      %v1010 = vld [vmem:[#allocation32 + $0x1c] sm:$0xf]
      %v1011 = vld [vmem:[#allocation33] sm:$0x1]
      %v1013 = vlaneseq
      %v1014 = vshrl.u32 %v1013, 7
      %v1015 = vsub.s32 0, %v1014
      %v1016 = vrot.slane %v1011, %v1015
      %v1026 = vunpack.c.l.b16 %v1003
      %v1027 = vunpack.c.l.b16 %v1004
      %v1028 = vunpack.c.l.b16 %v1005
      %v1029 = vunpack.c.l.b16 %v1006
      %v1030 = vunpack.c.l.b16 %v1007
      %v1031 = vunpack.c.l.b16 %v1008
      %v1032 = vunpack.c.l.b16 %v1009
      %v1033 = vunpack.c.l.b16 %v1010
      %v1034 = vpack.c.b16 %v1027, %v1026
      %v1035 = vpack.c.b16 %v1029, %v1028
      %v1036 = vpack.c.b16 %v1031, %v1030
      %v1037 = vpack.c.b16 %v1033, %v1032
      %v1043 = vsel %vm393, %v1002, 0
      %1045 = vmatprep.subr.bf16.mxu0 0
      %1046 = vmatpush1.bf16.msra.mxu0 %v1034
      %1047 = vmatprep.subr.bf16.mxu0 0
      %1048 = vmatpush1.bf16.msra.mxu0 %v1035
      %1049 = vmatprep.subr.bf16.mxu0 0
      %1050 = vmatpush1.bf16.msra.mxu0 %v1036
      %1051 = vmatprep.subr.bf16.mxu0 0
      %1052 = vmatpush1.bf16.msra.mxu0 %v1037
      %1053 = vmatprep.subr.bf16.mxu0 0
      %1054 = vmatpush1.bf16.msra.mxu0 0
      %1055 = vmatprep.subr.bf16.mxu0 0
      %1056 = vmatpush1.bf16.msra.mxu0 0
      %1057 = vmatprep.subr.bf16.mxu0 0
      %1058 = vmatpush1.bf16.msra.mxu0 0
      %1059 = vmatprep.subr.bf16.mxu0 0
      %1060 = vmatpush1.bf16.msra.mxu0 0
      %1061 = vmatprep.subr.bf16.mxu0 0
      %1062 = vmatpush1.bf16.msra.mxu0 0
      %1063 = vmatprep.subr.bf16.mxu0 0
      %1064 = vmatpush1.bf16.msra.mxu0 0
      %1065 = vmatprep.subr.bf16.mxu0 0
      %1066 = vmatpush1.bf16.msra.mxu0 0
      %1067 = vmatprep.subr.bf16.mxu0 0
      %1068 = vmatpush1.bf16.msra.mxu0 0
      %1069 = vmatprep.subr.bf16.mxu0 0
      %1070 = vmatpush1.bf16.msra.mxu0 0
      %1071 = vmatprep.subr.bf16.mxu0 0
      %1072 = vmatpush1.bf16.msra.mxu0 0
      %1073 = vmatprep.subr.bf16.mxu0 0
      %1074 = vmatpush1.bf16.msra.mxu0 0
      %1075 = vmatprep.subr.bf16.mxu0 0
      %1076 = vmatpush1.bf16.msra.mxu0 0
      %1077 = vmatprep.mubr.bf16.mxu0 0
      %1078 = vmatmul.mubr.bf16.gmra.mrb[0].mxu0 %v1043
      %v1079 = vpop.f32.mrb[0].mxu0
      %v1080 = vadd.f32 %v1016, %v1079
      %v1081 = vpop.f32.mrb[0].mxu0
      %v1082 = vpop.f32.mrb[0].mxu0
      %v1083 = vpop.f32.mrb[0].mxu0
      %1084 = vdwg.mxu0
      %vm1085 = vcmask 48128
      %v1086 = vsel %vm1085, %v1080, -inf
      %1087 = vmax.xlane.f32.xlu0 %v1086
      %v1088 = vpop.xlane.xlu0 %1087
      %v1089 = vsub.f32 %v1080, %v1088
      %v1090 = vmul.f32 %v1089, 1.442695
      %v1091 = vpow.pop %v1090
      %v1092 = vsel %vm1085, %v1091, 0.0
      %1093 = vadd.xlane.f32.xlu0 %v1092
      %v1094 = vpop.xlane.xlu0 %1093
      %v1095 = vrcp.pop %v1094
      %v1096 = vmul.f32 %v1091, %v1095
      %vm1097 = vcmask 41984
      %1098 = vst.msk [vmem:[#allocation35] sm:$0x3] %vm1097, %v1096
    $region169: #{gnn_forward.3} parent=1 // pred_fallthru
      _
    // Predicated region
    $region170: #{gnn_forward.3} parent=1 // pred_check
      _
    $region171: #{gnn_forward.3} parent=1 // pred_check_branch
      %1100 = sbr.rel (0) target = $region173
    $region172: #{gnn_forward.3} parent=1 // pred_region
      %s1102 = ssub.s32 32, 32
      %1103 = vsyncadd [#allocation5], %s1102
      %s1105 = sshll.u32 [#allocation35], 4
      %s1106 = int_to_ptr.vmem [resolvable:$true] %s1105
      %1108 = dma.vmem_to_hbm [thread:$0]  %s1106, 32, %s20, [#allocation5]
    $region173: #{gnn_forward.3} parent=1 // pred_fallthru
      _
    // Predicated region
    $region174: #{gnn_forward.3} parent=1 // pred_check
      _
    $region175: #{gnn_forward.3} parent=1 // pred_check_branch
      %1110 = sbr.rel (0) target = $region177
    $region176: #{gnn_forward.3} parent=1 // pred_region
      %1111 = dma.done [#allocation5], 32
    $region177: #{gnn_forward.3} parent=1 // pred_fallthru
      _
    %1112 = vsyncpa [#allocation4], 1
    %1113 = vsyncpa [#allocation7], 1
    %1114 = vsyncpa [#allocation10], 1
    %1115 = vsyncpa [#allocation13], 1
    %1116 = vsyncpa [#allocation16], 1
    %1117 = vsyncpa [#allocation19], 1
    %1118 = vsyncpa [#allocation22], 1
    %1119 = vsyncpa [#allocation25], 1
    %1120 = vsyncpa [#allocation28], 1
    %1121 = vsyncpa [#allocation31], 1
    %1122 = vsyncpa [#allocation34], 1
    %1123 = vsyncpa [#allocation5], 1

// kernel: gnn_forward.2
$region0: #{gnn_forward.2}
  #allocation0 [shape = 'u32[]', space=smem, size = 0x4, offset = 0x4, fixed_abs, tag = 'smem constant byte address 0x4 - core index']
  #allocation1 [shape = 'u32[144,128]{1,0:T(1,128)}', space=vmem, size = 0x12000, scoped, tag = 'internal scratch']
  #allocation2 [shape = 's32[1]{0}', space=sflag, size = 0x4, scoped, tag = 'scoped memory for gnn_forward.2']
  #allocation3 [shape = 's32[1]{0:T(128)S(6)}', space=smem, size = 0x200, scoped, tag = 'prefetched SMEM operand 0']
  %s0 = inlined_call_operand.<no memory space> [shape: s32[1], index: 0, kind: input, shape index: {}]
  %s1 = inlined_call_operand.hbm [shape: bf16[32,30], index: 1, kind: input, shape index: {}]
  %s2 = inlined_call_operand.hbm [shape: s32[1,32], index: 2, kind: input, shape index: {}]
  %s3 = inlined_call_operand.hbm [shape: bf16[30,128], index: 3, kind: input, shape index: {}]
  %s4 = inlined_call_operand.hbm [shape: f32[1,64], index: 4, kind: input, shape index: {}]
  %s5 = inlined_call_operand.hbm [shape: bf16[64,64], index: 5, kind: input, shape index: {}]
  %s6 = inlined_call_operand.hbm [shape: f32[1,64], index: 6, kind: input, shape index: {}]
  %s7 = inlined_call_operand.hbm [shape: bf16[64,64], index: 7, kind: input, shape index: {}]
  %s8 = inlined_call_operand.hbm [shape: f32[1,64], index: 8, kind: input, shape index: {}]
  %s9 = inlined_call_operand.hbm [shape: bf16[64,64], index: 9, kind: input, shape index: {}]
  %s10 = inlined_call_operand.hbm [shape: f32[1,64], index: 10, kind: input, shape index: {}]
  %s11 = inlined_call_operand.hbm [shape: bf16[64,64], index: 11, kind: input, shape index: {}]
  %s12 = inlined_call_operand.hbm [shape: f32[1,64], index: 12, kind: input, shape index: {}]
  %s13 = inlined_call_operand.hbm [shape: bf16[64,64], index: 13, kind: input, shape index: {}]
  %s14 = inlined_call_operand.hbm [shape: f32[1,64], index: 14, kind: input, shape index: {}]
  %s15 = inlined_call_operand.hbm [shape: f32[16,64], index: 15, kind: output, shape index: {}]
  %s16 = sld [smem:[#allocation0]]
  $region126: #{gnn_forward.2} parent=0
    _
  %s18 = ssub.s32 1, %s16
  %s19 = scalar_select 0, %s18, %s16
  %20 = sst [smem:[#allocation3]] %s0
  $region1: #{gnn_forward.2} parent=0
    #allocation4 [shape = 'u8[8192]{0}', space=vmem, size = 0x2000, scoped, tag = 'input window, operand 1, single buffered']
    #allocation5 [shape = 's32[1]{0}', space=sflag, size = 0x4, scoped, tag = 'scoped memory for gnn_forward.2']
    #allocation6 [shape = 's32[1]{0}', space=sflag, size = 0x4, scoped, tag = 'scoped memory for gnn_forward.2']
    #allocation7 [shape = 'u8[512]{0}', space=vmem, size = 0x400, scoped, tag = 'input window, operand 2, single buffered']
    #allocation8 [shape = 's32[1]{0}', space=sflag, size = 0x4, scoped, tag = 'scoped memory for gnn_forward.2']
    #allocation9 [shape = 'u8[8192]{0}', space=vmem, size = 0x2000, scoped, tag = 'input window, operand 3, single buffered']
    #allocation10 [shape = 'u8[512]{0}', space=vmem, size = 0x400, scoped, tag = 'input window, operand 4, single buffered']
    #allocation11 [shape = 's32[1]{0}', space=sflag, size = 0x4, scoped, tag = 'scoped memory for gnn_forward.2']
    #allocation12 [shape = 'u8[16384]{0}', space=vmem, size = 0x4000, scoped, tag = 'input window, operand 5, single buffered']
    #allocation13 [shape = 'u8[512]{0}', space=vmem, size = 0x400, scoped, tag = 'input window, operand 6, single buffered']
    #allocation14 [shape = 's32[1]{0}', space=sflag, size = 0x4, scoped, tag = 'scoped memory for gnn_forward.2']
    #allocation15 [shape = 'u8[16384]{0}', space=vmem, size = 0x4000, scoped, tag = 'input window, operand 7, single buffered']
    #allocation16 [shape = 'u8[512]{0}', space=vmem, size = 0x400, scoped, tag = 'input window, operand 8, single buffered']
    #allocation17 [shape = 's32[1]{0}', space=sflag, size = 0x4, scoped, tag = 'scoped memory for gnn_forward.2']
    #allocation18 [shape = 'u8[16384]{0}', space=vmem, size = 0x4000, scoped, tag = 'input window, operand 9, single buffered']
    #allocation19 [shape = 'u8[512]{0}', space=vmem, size = 0x400, scoped, tag = 'input window, operand 10, single buffered']
    #allocation20 [shape = 's32[1]{0}', space=sflag, size = 0x4, scoped, tag = 'scoped memory for gnn_forward.2']
    #allocation21 [shape = 'u8[16384]{0}', space=vmem, size = 0x4000, scoped, tag = 'input window, operand 11, single buffered']
    #allocation22 [shape = 'u8[512]{0}', space=vmem, size = 0x400, scoped, tag = 'input window, operand 12, single buffered']
    #allocation23 [shape = 's32[1]{0}', space=sflag, size = 0x4, scoped, tag = 'scoped memory for gnn_forward.2']
    #allocation24 [shape = 'u8[16384]{0}', space=vmem, size = 0x4000, scoped, tag = 'input window, operand 13, single buffered']
    #allocation25 [shape = 'u8[512]{0}', space=vmem, size = 0x400, scoped, tag = 'input window, operand 14, single buffered']
    #allocation26 [shape = 's32[1]{0}', space=sflag, size = 0x4, scoped, tag = 'scoped memory for gnn_forward.2']
    #allocation27 [shape = 'u8[8192]{0}', space=vmem, size = 0x2000, scoped, tag = 'output window, operand 0, single buffered']
    %21 = vsyncpa [#allocation5], 0
    %22 = vsyncpa [#allocation8], 0
    %23 = vsyncpa [#allocation11], 0
    %24 = vsyncpa [#allocation14], 0
    %25 = vsyncpa [#allocation17], 0
    %26 = vsyncpa [#allocation20], 0
    %27 = vsyncpa [#allocation23], 0
    %28 = vsyncpa [#allocation26], 0
    %29 = vsyncpa [#allocation6], 0
    // Predicated region
    $region2: #{gnn_forward.2} parent=1 // pred_check
      _
    $region3: #{gnn_forward.2} parent=1 // pred_check_branch
      %31 = sbr.rel (0) target = $region5
    $region4: #{gnn_forward.2} parent=1 // pred_region
      %s33 = ssub.s32 256, 256
      %34 = vsyncadd [#allocation5], %s33
      %s35 = sshll.u32 [#allocation4], 4
      %s36 = int_to_ptr.vmem [resolvable:$true] %s35
      %41 = dma.hbm_to_vmem [thread:$0]  %s1, 256, %s36, [#allocation5], 64, 64, 4
    $region5: #{gnn_forward.2} parent=1 // pred_fallthru
      _
    // Predicated region
    $region6: #{gnn_forward.2} parent=1 // pred_check
      _
    $region7: #{gnn_forward.2} parent=1 // pred_check_branch
      %43 = sbr.rel (0) target = $region9
    $region8: #{gnn_forward.2} parent=1 // pred_region
      %s45 = ssub.s32 16, 16
      %46 = vsyncadd [#allocation8], %s45
      %s48 = sshll.u32 [#allocation7], 4
      %s49 = int_to_ptr.vmem [resolvable:$true] %s48
      %51 = dma.hbm_to_vmem [thread:$0]  %s2, 16, %s49, [#allocation8]
    $region9: #{gnn_forward.2} parent=1 // pred_fallthru
      _
    // Predicated region
    $region10: #{gnn_forward.2} parent=1 // pred_check
      _
    $region11: #{gnn_forward.2} parent=1 // pred_check_branch
      %53 = sbr.rel (0) target = $region13
    $region12: #{gnn_forward.2} parent=1 // pred_region
      %s55 = ssub.s32 256, 256
      %56 = vsyncadd [#allocation8], %s55
      %s57 = sshll.u32 [#allocation9], 4
      %s58 = int_to_ptr.vmem [resolvable:$true] %s57
      %63 = dma.hbm_to_vmem [thread:$0]  %s3, 256, %s58, [#allocation8], 64, 64, 4
    $region13: #{gnn_forward.2} parent=1 // pred_fallthru
      _
    // Predicated region
    $region14: #{gnn_forward.2} parent=1 // pred_check
      _
    $region15: #{gnn_forward.2} parent=1 // pred_check_branch
      %65 = sbr.rel (0) target = $region17
    $region16: #{gnn_forward.2} parent=1 // pred_region
      %s67 = ssub.s32 16, 16
      %68 = vsyncadd [#allocation11], %s67
      %s70 = sshll.u32 [#allocation10], 4
      %s71 = int_to_ptr.vmem [resolvable:$true] %s70
      %73 = dma.hbm_to_vmem [thread:$0]  %s4, 16, %s71, [#allocation11]
    $region17: #{gnn_forward.2} parent=1 // pred_fallthru
      _
    // Predicated region
    $region18: #{gnn_forward.2} parent=1 // pred_check
      _
    $region19: #{gnn_forward.2} parent=1 // pred_check_branch
      %75 = sbr.rel (0) target = $region21
    $region20: #{gnn_forward.2} parent=1 // pred_region
      %s77 = ssub.s32 512, 512
      %78 = vsyncadd [#allocation11], %s77
      %s79 = sshll.u32 [#allocation12], 4
      %s80 = int_to_ptr.vmem [resolvable:$true] %s79
      %85 = dma.hbm_to_vmem [thread:$0]  %s5, 512, %s80, [#allocation11], 64, 64, 4
    $region21: #{gnn_forward.2} parent=1 // pred_fallthru
      _
    // Predicated region
    $region22: #{gnn_forward.2} parent=1 // pred_check
      _
    $region23: #{gnn_forward.2} parent=1 // pred_check_branch
      %87 = sbr.rel (0) target = $region25
    $region24: #{gnn_forward.2} parent=1 // pred_region
      %s89 = ssub.s32 16, 16
      %90 = vsyncadd [#allocation14], %s89
      %s92 = sshll.u32 [#allocation13], 4
      %s93 = int_to_ptr.vmem [resolvable:$true] %s92
      %95 = dma.hbm_to_vmem [thread:$0]  %s6, 16, %s93, [#allocation14]
    $region25: #{gnn_forward.2} parent=1 // pred_fallthru
      _
    // Predicated region
    $region26: #{gnn_forward.2} parent=1 // pred_check
      _
    $region27: #{gnn_forward.2} parent=1 // pred_check_branch
      %97 = sbr.rel (0) target = $region29
    $region28: #{gnn_forward.2} parent=1 // pred_region
      %s99 = ssub.s32 512, 512
      %100 = vsyncadd [#allocation14], %s99
      %s101 = sshll.u32 [#allocation15], 4
      %s102 = int_to_ptr.vmem [resolvable:$true] %s101
      %107 = dma.hbm_to_vmem [thread:$0]  %s7, 512, %s102, [#allocation14], 64, 64, 4
    $region29: #{gnn_forward.2} parent=1 // pred_fallthru
      _
    // Predicated region
    $region30: #{gnn_forward.2} parent=1 // pred_check
      _
    $region31: #{gnn_forward.2} parent=1 // pred_check_branch
      %109 = sbr.rel (0) target = $region33
    $region32: #{gnn_forward.2} parent=1 // pred_region
      %s111 = ssub.s32 16, 16
      %112 = vsyncadd [#allocation17], %s111
      %s114 = sshll.u32 [#allocation16], 4
      %s115 = int_to_ptr.vmem [resolvable:$true] %s114
      %117 = dma.hbm_to_vmem [thread:$0]  %s8, 16, %s115, [#allocation17]
    $region33: #{gnn_forward.2} parent=1 // pred_fallthru
      _
    // Predicated region
    $region34: #{gnn_forward.2} parent=1 // pred_check
      _
    $region35: #{gnn_forward.2} parent=1 // pred_check_branch
      %119 = sbr.rel (0) target = $region37
    $region36: #{gnn_forward.2} parent=1 // pred_region
      %s121 = ssub.s32 512, 512
      %122 = vsyncadd [#allocation17], %s121
      %s123 = sshll.u32 [#allocation18], 4
      %s124 = int_to_ptr.vmem [resolvable:$true] %s123
      %129 = dma.hbm_to_vmem [thread:$0]  %s9, 512, %s124, [#allocation17], 64, 64, 4
    $region37: #{gnn_forward.2} parent=1 // pred_fallthru
      _
    // Predicated region
    $region38: #{gnn_forward.2} parent=1 // pred_check
      _
    $region39: #{gnn_forward.2} parent=1 // pred_check_branch
      %131 = sbr.rel (0) target = $region41
    $region40: #{gnn_forward.2} parent=1 // pred_region
      %s133 = ssub.s32 16, 16
      %134 = vsyncadd [#allocation20], %s133
      %s136 = sshll.u32 [#allocation19], 4
      %s137 = int_to_ptr.vmem [resolvable:$true] %s136
      %139 = dma.hbm_to_vmem [thread:$0]  %s10, 16, %s137, [#allocation20]
    $region41: #{gnn_forward.2} parent=1 // pred_fallthru
      _
    // Predicated region
    $region42: #{gnn_forward.2} parent=1 // pred_check
      _
    $region43: #{gnn_forward.2} parent=1 // pred_check_branch
      %141 = sbr.rel (0) target = $region45
    $region44: #{gnn_forward.2} parent=1 // pred_region
      %s143 = ssub.s32 512, 512
      %144 = vsyncadd [#allocation20], %s143
      %s145 = sshll.u32 [#allocation21], 4
      %s146 = int_to_ptr.vmem [resolvable:$true] %s145
      %151 = dma.hbm_to_vmem [thread:$0]  %s11, 512, %s146, [#allocation20], 64, 64, 4
    $region45: #{gnn_forward.2} parent=1 // pred_fallthru
      _
    // Predicated region
    $region46: #{gnn_forward.2} parent=1 // pred_check
      _
    $region47: #{gnn_forward.2} parent=1 // pred_check_branch
      %153 = sbr.rel (0) target = $region49
    $region48: #{gnn_forward.2} parent=1 // pred_region
      %s155 = ssub.s32 16, 16
      %156 = vsyncadd [#allocation23], %s155
      %s158 = sshll.u32 [#allocation22], 4
      %s159 = int_to_ptr.vmem [resolvable:$true] %s158
      %161 = dma.hbm_to_vmem [thread:$0]  %s12, 16, %s159, [#allocation23]
    $region49: #{gnn_forward.2} parent=1 // pred_fallthru
      _
    // Predicated region
    $region50: #{gnn_forward.2} parent=1 // pred_check
      _
    $region51: #{gnn_forward.2} parent=1 // pred_check_branch
      %163 = sbr.rel (0) target = $region53
    $region52: #{gnn_forward.2} parent=1 // pred_region
      %s165 = ssub.s32 512, 512
      %166 = vsyncadd [#allocation23], %s165
      %s167 = sshll.u32 [#allocation24], 4
      %s168 = int_to_ptr.vmem [resolvable:$true] %s167
      %173 = dma.hbm_to_vmem [thread:$0]  %s13, 512, %s168, [#allocation23], 64, 64, 4
    $region53: #{gnn_forward.2} parent=1 // pred_fallthru
      _
    // Predicated region
    $region54: #{gnn_forward.2} parent=1 // pred_check
      _
    $region55: #{gnn_forward.2} parent=1 // pred_check_branch
      %175 = sbr.rel (0) target = $region57
    $region56: #{gnn_forward.2} parent=1 // pred_region
      %s177 = ssub.s32 16, 16
      %178 = vsyncadd [#allocation26], %s177
      %s180 = sshll.u32 [#allocation25], 4
      %s181 = int_to_ptr.vmem [resolvable:$true] %s180
      %183 = dma.hbm_to_vmem [thread:$0]  %s14, 16, %s181, [#allocation26]
    $region57: #{gnn_forward.2} parent=1 // pred_fallthru
      _
    // Predicated region
    $region58: #{gnn_forward.2} parent=1 // pred_check
      _
    $region59: #{gnn_forward.2} parent=1 // pred_check_branch
      %185 = sbr.rel (0) target = $region61
    $region60: #{gnn_forward.2} parent=1 // pred_region
      %186 = dma.done [#allocation5], 256
    $region61: #{gnn_forward.2} parent=1 // pred_fallthru
      _
    // Predicated region
    $region62: #{gnn_forward.2} parent=1 // pred_check
      _
    $region63: #{gnn_forward.2} parent=1 // pred_check_branch
      %188 = sbr.rel (0) target = $region65
    $region64: #{gnn_forward.2} parent=1 // pred_region
      %189 = dma.done [#allocation8], 16
    $region65: #{gnn_forward.2} parent=1 // pred_fallthru
      _
    // Predicated region
    $region66: #{gnn_forward.2} parent=1 // pred_check
      _
    $region67: #{gnn_forward.2} parent=1 // pred_check_branch
      %191 = sbr.rel (0) target = $region69
    $region68: #{gnn_forward.2} parent=1 // pred_region
      %192 = dma.done [#allocation8], 256
    $region69: #{gnn_forward.2} parent=1 // pred_fallthru
      _
    // Predicated region
    $region70: #{gnn_forward.2} parent=1 // pred_check
      _
    $region71: #{gnn_forward.2} parent=1 // pred_check_branch
      %194 = sbr.rel (0) target = $region73
    $region72: #{gnn_forward.2} parent=1 // pred_region
      %195 = dma.done [#allocation11], 16
    $region73: #{gnn_forward.2} parent=1 // pred_fallthru
      _
    // Predicated region
    $region74: #{gnn_forward.2} parent=1 // pred_check
      _
    $region75: #{gnn_forward.2} parent=1 // pred_check_branch
      %197 = sbr.rel (0) target = $region77
    $region76: #{gnn_forward.2} parent=1 // pred_region
      %198 = dma.done [#allocation11], 512
    $region77: #{gnn_forward.2} parent=1 // pred_fallthru
      _
    // Predicated region
    $region78: #{gnn_forward.2} parent=1 // pred_check
      _
    $region79: #{gnn_forward.2} parent=1 // pred_check_branch
      %200 = sbr.rel (0) target = $region81
    $region80: #{gnn_forward.2} parent=1 // pred_region
      %201 = dma.done [#allocation14], 16
    $region81: #{gnn_forward.2} parent=1 // pred_fallthru
      _
    // Predicated region
    $region82: #{gnn_forward.2} parent=1 // pred_check
      _
    $region83: #{gnn_forward.2} parent=1 // pred_check_branch
      %203 = sbr.rel (0) target = $region85
    $region84: #{gnn_forward.2} parent=1 // pred_region
      %204 = dma.done [#allocation14], 512
    $region85: #{gnn_forward.2} parent=1 // pred_fallthru
      _
    // Predicated region
    $region86: #{gnn_forward.2} parent=1 // pred_check
      _
    $region87: #{gnn_forward.2} parent=1 // pred_check_branch
      %206 = sbr.rel (0) target = $region89
    $region88: #{gnn_forward.2} parent=1 // pred_region
      %207 = dma.done [#allocation17], 16
    $region89: #{gnn_forward.2} parent=1 // pred_fallthru
      _
    // Predicated region
    $region90: #{gnn_forward.2} parent=1 // pred_check
      _
    $region91: #{gnn_forward.2} parent=1 // pred_check_branch
      %209 = sbr.rel (0) target = $region93
    $region92: #{gnn_forward.2} parent=1 // pred_region
      %210 = dma.done [#allocation17], 512
    $region93: #{gnn_forward.2} parent=1 // pred_fallthru
      _
    // Predicated region
    $region94: #{gnn_forward.2} parent=1 // pred_check
      _
    $region95: #{gnn_forward.2} parent=1 // pred_check_branch
      %212 = sbr.rel (0) target = $region97
    $region96: #{gnn_forward.2} parent=1 // pred_region
      %213 = dma.done [#allocation20], 16
    $region97: #{gnn_forward.2} parent=1 // pred_fallthru
      _
    // Predicated region
    $region98: #{gnn_forward.2} parent=1 // pred_check
      _
    $region99: #{gnn_forward.2} parent=1 // pred_check_branch
      %215 = sbr.rel (0) target = $region101
    $region100: #{gnn_forward.2} parent=1 // pred_region
      %216 = dma.done [#allocation20], 512
    $region101: #{gnn_forward.2} parent=1 // pred_fallthru
      _
    // Predicated region
    $region102: #{gnn_forward.2} parent=1 // pred_check
      _
    $region103: #{gnn_forward.2} parent=1 // pred_check_branch
      %218 = sbr.rel (0) target = $region105
    $region104: #{gnn_forward.2} parent=1 // pred_region
      %219 = dma.done [#allocation23], 16
    $region105: #{gnn_forward.2} parent=1 // pred_fallthru
      _
    // Predicated region
    $region106: #{gnn_forward.2} parent=1 // pred_check
      _
    $region107: #{gnn_forward.2} parent=1 // pred_check_branch
      %221 = sbr.rel (0) target = $region109
    $region108: #{gnn_forward.2} parent=1 // pred_region
      %222 = dma.done [#allocation23], 512
    $region109: #{gnn_forward.2} parent=1 // pred_fallthru
      _
    // Predicated region
    $region110: #{gnn_forward.2} parent=1 // pred_check
      _
    $region111: #{gnn_forward.2} parent=1 // pred_check_branch
      %224 = sbr.rel (0) target = $region113
    $region112: #{gnn_forward.2} parent=1 // pred_region
      %225 = dma.done [#allocation26], 16
    $region113: #{gnn_forward.2} parent=1 // pred_fallthru
      _
    %s226 = sld [smem:[#allocation3]]
    %s227 = smul.u32 2, %s226
    %s229 = sld [smem:[#allocation3]]
    %s230 = ssub.s32 0, 1
    %p231 = scmp.gt.s32.totalorder %s230, 0
    %s232 = scalar_select %p231, %s230, 0
    %s233 = sld [smem:[#allocation3 + %s232]]
    %p234 = scmp.eq.s32.totalorder 0, 0
    %p235 = scmp.ne.s32.totalorder %s229, %s233
    %p236 = por %p234, %p235
    // Predicated region
    $region114: #{gnn_forward.2} parent=1 // pred_check
      %p237 = pneg %p236
    $region115: #{gnn_forward.2} parent=1 // pred_check_branch
      %239 = sbr.rel (%p237) target = $region117
    $region116: #{gnn_forward.2} parent=1 // pred_region
      %vm240 = vcmask 523264
      %241 = vst.msk [vmem:[#allocation27] sm:$0xff] %vm240, 0.0
      %242 = vst.msk [vmem:[#allocation27 + $0x8] sm:$0xff] %vm240, 0.0
    $region117: #{gnn_forward.2} parent=1 // pred_fallthru
      _
    %v243 = vld [vmem:[#allocation4] sm:$0xf]
    %v244 = vld [vmem:[#allocation4 + $0x4] sm:$0xf]
    %v245 = vld [vmem:[#allocation4 + $0x8] sm:$0xf]
    %v246 = vld [vmem:[#allocation4 + $0xc] sm:$0xf]
    %v247 = vld [vmem:[#allocation9] sm:$0xf]
    %v248 = vld [vmem:[#allocation9 + $0x4] sm:$0xf]
    %v249 = vld [vmem:[#allocation9 + $0x8] sm:$0xf]
    %v250 = vld [vmem:[#allocation9 + $0xc] sm:$0x7]
    %v255 = vunpack.c.l.b16 %v243
    %v256 = vunpack.c.l.b16 %v244
    %v257 = vunpack.c.l.b16 %v245
    %v258 = vunpack.c.l.b16 %v246
    %v259 = vpack.c.b16 %v256, %v255
    %v260 = vpack.c.b16 %v258, %v257
    %v265 = vunpack.c.l.b16 %v247
    %v266 = vunpack.c.l.b16 %v248
    %v267 = vunpack.c.l.b16 %v249
    %v268 = vunpack.c.l.b16 %v250
    %v269 = vpack.c.b16 %v266, %v265
    %v270 = vpack.c.b16 %v268, %v267
    %vm272 = vcmask 244736
    %v274 = vsel %vm272, %v259, 0
    %v277 = vsel %vm272, %v260, 0
    %vm279 = vcmask 1046528
    %v281 = vsel %vm279, %v270, 0
    %283 = vmatprep.subr.bf16.mxu0 0
    %284 = vmatpush1.bf16.msra.mxu0 %v269
    %285 = vmatprep.subr.bf16.mxu0 0
    %286 = vmatpush1.bf16.msra.mxu0 %v281
    %287 = vmatprep.subr.bf16.mxu0 0
    %288 = vmatpush1.bf16.msra.mxu0 0
    %289 = vmatprep.subr.bf16.mxu0 0
    %290 = vmatpush1.bf16.msra.mxu0 0
    %291 = vmatprep.subr.bf16.mxu0 0
    %292 = vmatpush1.bf16.msra.mxu0 0
    %293 = vmatprep.subr.bf16.mxu0 0
    %294 = vmatpush1.bf16.msra.mxu0 0
    %295 = vmatprep.subr.bf16.mxu0 0
    %296 = vmatpush1.bf16.msra.mxu0 0
    %297 = vmatprep.subr.bf16.mxu0 0
    %298 = vmatpush1.bf16.msra.mxu0 0
    %299 = vmatprep.subr.bf16.mxu0 0
    %300 = vmatpush1.bf16.msra.mxu0 0
    %301 = vmatprep.subr.bf16.mxu0 0
    %302 = vmatpush1.bf16.msra.mxu0 0
    %303 = vmatprep.subr.bf16.mxu0 0
    %304 = vmatpush1.bf16.msra.mxu0 0
    %305 = vmatprep.subr.bf16.mxu0 0
    %306 = vmatpush1.bf16.msra.mxu0 0
    %307 = vmatprep.subr.bf16.mxu0 0
    %308 = vmatpush1.bf16.msra.mxu0 0
    %309 = vmatprep.subr.bf16.mxu0 0
    %310 = vmatpush1.bf16.msra.mxu0 0
    %311 = vmatprep.subr.bf16.mxu0 0
    %312 = vmatpush1.bf16.msra.mxu0 0
    %313 = vmatprep.subr.bf16.mxu0 0
    %314 = vmatpush1.bf16.msra.mxu0 0
    %315 = vmatprep.mubr.bf16.mxu0 0
    %316 = vmatmul.mubr.bf16.gmra.mrb[0].mxu0 %v274
    %v317 = vpop.f32.mrb[0].mxu0
    %v318 = vadd.f32 0.0, %v317
    %v319 = vpop.f32.mrb[0].mxu0
    %v320 = vpop.f32.mrb[0].mxu0
    %v321 = vadd.f32 0.0, %v320
    %v322 = vpop.f32.mrb[0].mxu0
    %323 = vmatprep.mubr.bf16.mxu0 0
    %324 = vmatmul.mubr.bf16.gmra.mrb[0].mxu0 %v277
    %v325 = vpop.f32.mrb[0].mxu0
    %v326 = vadd.f32 0.0, %v325
    %v327 = vpop.f32.mrb[0].mxu0
    %v328 = vpop.f32.mrb[0].mxu0
    %v329 = vadd.f32 0.0, %v328
    %v330 = vpop.f32.mrb[0].mxu0
    %331 = vdwg.mxu0
    %v332 = vld [vmem:[#allocation10] sm:$0x1]
    %v334 = vlaneseq
    %v335 = vshrl.u32 %v334, 7
    %v336 = vsub.s32 0, %v335
    %v337 = vrot.slane %v332, %v336
    %v339 = vadd.f32 %v318, %v337
    %v340 = vadd.f32 %v321, %v337
    %v341 = vadd.f32 %v326, %v337
    %v342 = vadd.f32 %v329, %v337
    %v343 = vmax.f32 %v339, 0.0
    %v344 = vmax.f32 %v340, 0.0
    %v345 = vmax.f32 %v341, 0.0
    %v346 = vmax.f32 %v342, 0.0
    %v347 = vpack.c.bf16 %v344, %v343
    %v348 = vpack.c.bf16 %v346, %v345
    %v349 = vld [vmem:[#allocation12] sm:$0xf]
    %v350 = vld [vmem:[#allocation12 + $0x4] sm:$0xf]
    %v351 = vld [vmem:[#allocation12 + $0x8] sm:$0xf]
    %v352 = vld [vmem:[#allocation12 + $0xc] sm:$0xf]
    %v353 = vld [vmem:[#allocation12 + $0x10] sm:$0xf]
    %v354 = vld [vmem:[#allocation12 + $0x14] sm:$0xf]
    %v355 = vld [vmem:[#allocation12 + $0x18] sm:$0xf]
    %v356 = vld [vmem:[#allocation12 + $0x1c] sm:$0xf]
    %v357 = vld [vmem:[#allocation13] sm:$0x1]
    %v359 = vlaneseq
    %v360 = vshrl.u32 %v359, 7
    %v361 = vsub.s32 0, %v360
    %v362 = vrot.slane %v357, %v361
    %v372 = vunpack.c.l.b16 %v349
    %v373 = vunpack.c.l.b16 %v350
    %v374 = vunpack.c.l.b16 %v351
    %v375 = vunpack.c.l.b16 %v352
    %v376 = vunpack.c.l.b16 %v353
    %v377 = vunpack.c.l.b16 %v354
    %v378 = vunpack.c.l.b16 %v355
    %v379 = vunpack.c.l.b16 %v356
    %v380 = vpack.c.b16 %v373, %v372
    %v381 = vpack.c.b16 %v375, %v374
    %v382 = vpack.c.b16 %v377, %v376
    %v383 = vpack.c.b16 %v379, %v378
    %vm388 = vcmask 523264
    %v390 = vsel %vm388, %v347, 0
    %v393 = vsel %vm388, %v348, 0
    %395 = vmatprep.subr.bf16.mxu0 0
    %396 = vmatpush1.bf16.msra.mxu0 %v380
    %397 = vmatprep.subr.bf16.mxu0 0
    %398 = vmatpush1.bf16.msra.mxu0 %v381
    %399 = vmatprep.subr.bf16.mxu0 0
    %400 = vmatpush1.bf16.msra.mxu0 %v382
    %401 = vmatprep.subr.bf16.mxu0 0
    %402 = vmatpush1.bf16.msra.mxu0 %v383
    %403 = vmatprep.subr.bf16.mxu0 0
    %404 = vmatpush1.bf16.msra.mxu0 0
    %405 = vmatprep.subr.bf16.mxu0 0
    %406 = vmatpush1.bf16.msra.mxu0 0
    %407 = vmatprep.subr.bf16.mxu0 0
    %408 = vmatpush1.bf16.msra.mxu0 0
    %409 = vmatprep.subr.bf16.mxu0 0
    %410 = vmatpush1.bf16.msra.mxu0 0
    %411 = vmatprep.subr.bf16.mxu0 0
    %412 = vmatpush1.bf16.msra.mxu0 0
    %413 = vmatprep.subr.bf16.mxu0 0
    %414 = vmatpush1.bf16.msra.mxu0 0
    %415 = vmatprep.subr.bf16.mxu0 0
    %416 = vmatpush1.bf16.msra.mxu0 0
    %417 = vmatprep.subr.bf16.mxu0 0
    %418 = vmatpush1.bf16.msra.mxu0 0
    %419 = vmatprep.subr.bf16.mxu0 0
    %420 = vmatpush1.bf16.msra.mxu0 0
    %421 = vmatprep.subr.bf16.mxu0 0
    %422 = vmatpush1.bf16.msra.mxu0 0
    %423 = vmatprep.subr.bf16.mxu0 0
    %424 = vmatpush1.bf16.msra.mxu0 0
    %425 = vmatprep.subr.bf16.mxu0 0
    %426 = vmatpush1.bf16.msra.mxu0 0
    %427 = vmatprep.mubr.bf16.mxu0 0
    %428 = vmatmul.mubr.bf16.gmra.mrb[0].mxu0 %v390
    %v429 = vpop.f32.mrb[0].mxu0
    %v430 = vadd.f32 %v362, %v429
    %v431 = vpop.f32.mrb[0].mxu0
    %v432 = vpop.f32.mrb[0].mxu0
    %v433 = vadd.f32 %v362, %v432
    %v434 = vpop.f32.mrb[0].mxu0
    %435 = vmatprep.mubr.bf16.mxu0 0
    %436 = vmatmul.mubr.bf16.gmra.mrb[0].mxu0 %v393
    %v437 = vpop.f32.mrb[0].mxu0
    %v438 = vadd.f32 %v362, %v437
    %v439 = vpop.f32.mrb[0].mxu0
    %v440 = vpop.f32.mrb[0].mxu0
    %v441 = vadd.f32 %v362, %v440
    %v442 = vpop.f32.mrb[0].mxu0
    %443 = vdwg.mxu0
    %v444 = vmax.f32 %v430, 0.0
    %v445 = vmax.f32 %v433, 0.0
    %v446 = vmax.f32 %v438, 0.0
    %v447 = vmax.f32 %v441, 0.0
    %v448 = vpack.c.bf16 %v445, %v444
    %v449 = vpack.c.bf16 %v447, %v446
    %v450 = vld [vmem:[#allocation15] sm:$0xf]
    %v451 = vld [vmem:[#allocation15 + $0x4] sm:$0xf]
    %v452 = vld [vmem:[#allocation15 + $0x8] sm:$0xf]
    %v453 = vld [vmem:[#allocation15 + $0xc] sm:$0xf]
    %v454 = vld [vmem:[#allocation15 + $0x10] sm:$0xf]
    %v455 = vld [vmem:[#allocation15 + $0x14] sm:$0xf]
    %v456 = vld [vmem:[#allocation15 + $0x18] sm:$0xf]
    %v457 = vld [vmem:[#allocation15 + $0x1c] sm:$0xf]
    %v458 = vld [vmem:[#allocation16] sm:$0x1]
    %v460 = vlaneseq
    %v461 = vshrl.u32 %v460, 7
    %v462 = vsub.s32 0, %v461
    %v463 = vrot.slane %v458, %v462
    %v473 = vunpack.c.l.b16 %v450
    %v474 = vunpack.c.l.b16 %v451
    %v475 = vunpack.c.l.b16 %v452
    %v476 = vunpack.c.l.b16 %v453
    %v477 = vunpack.c.l.b16 %v454
    %v478 = vunpack.c.l.b16 %v455
    %v479 = vunpack.c.l.b16 %v456
    %v480 = vunpack.c.l.b16 %v457
    %v481 = vpack.c.b16 %v474, %v473
    %v482 = vpack.c.b16 %v476, %v475
    %v483 = vpack.c.b16 %v478, %v477
    %v484 = vpack.c.b16 %v480, %v479
    %v490 = vsel %vm388, %v448, 0
    %v493 = vsel %vm388, %v449, 0
    %495 = vmatprep.subr.bf16.mxu0 0
    %496 = vmatpush1.bf16.msra.mxu0 %v481
    %497 = vmatprep.subr.bf16.mxu0 0
    %498 = vmatpush1.bf16.msra.mxu0 %v482
    %499 = vmatprep.subr.bf16.mxu0 0
    %500 = vmatpush1.bf16.msra.mxu0 %v483
    %501 = vmatprep.subr.bf16.mxu0 0
    %502 = vmatpush1.bf16.msra.mxu0 %v484
    %503 = vmatprep.subr.bf16.mxu0 0
    %504 = vmatpush1.bf16.msra.mxu0 0
    %505 = vmatprep.subr.bf16.mxu0 0
    %506 = vmatpush1.bf16.msra.mxu0 0
    %507 = vmatprep.subr.bf16.mxu0 0
    %508 = vmatpush1.bf16.msra.mxu0 0
    %509 = vmatprep.subr.bf16.mxu0 0
    %510 = vmatpush1.bf16.msra.mxu0 0
    %511 = vmatprep.subr.bf16.mxu0 0
    %512 = vmatpush1.bf16.msra.mxu0 0
    %513 = vmatprep.subr.bf16.mxu0 0
    %514 = vmatpush1.bf16.msra.mxu0 0
    %515 = vmatprep.subr.bf16.mxu0 0
    %516 = vmatpush1.bf16.msra.mxu0 0
    %517 = vmatprep.subr.bf16.mxu0 0
    %518 = vmatpush1.bf16.msra.mxu0 0
    %519 = vmatprep.subr.bf16.mxu0 0
    %520 = vmatpush1.bf16.msra.mxu0 0
    %521 = vmatprep.subr.bf16.mxu0 0
    %522 = vmatpush1.bf16.msra.mxu0 0
    %523 = vmatprep.subr.bf16.mxu0 0
    %524 = vmatpush1.bf16.msra.mxu0 0
    %525 = vmatprep.subr.bf16.mxu0 0
    %526 = vmatpush1.bf16.msra.mxu0 0
    %527 = vmatprep.mubr.bf16.mxu0 0
    %528 = vmatmul.mubr.bf16.gmra.mrb[0].mxu0 %v490
    %v529 = vpop.f32.mrb[0].mxu0
    %v530 = vadd.f32 %v463, %v529
    %v531 = vpop.f32.mrb[0].mxu0
    %v532 = vpop.f32.mrb[0].mxu0
    %v533 = vadd.f32 %v463, %v532
    %v534 = vpop.f32.mrb[0].mxu0
    %535 = vmatprep.mubr.bf16.mxu0 0
    %536 = vmatmul.mubr.bf16.gmra.mrb[0].mxu0 %v493
    %v537 = vpop.f32.mrb[0].mxu0
    %v538 = vadd.f32 %v463, %v537
    %v539 = vpop.f32.mrb[0].mxu0
    %v540 = vpop.f32.mrb[0].mxu0
    %v541 = vadd.f32 %v463, %v540
    %v542 = vpop.f32.mrb[0].mxu0
    %543 = vdwg.mxu0
    %v544 = vpack.c.bf16 %v533, %v530
    %v545 = vpack.c.bf16 %v541, %v538
    %v546 = vld [vmem:[#allocation18] sm:$0xf]
    %v547 = vld [vmem:[#allocation18 + $0x4] sm:$0xf]
    %v548 = vld [vmem:[#allocation18 + $0x8] sm:$0xf]
    %v549 = vld [vmem:[#allocation18 + $0xc] sm:$0xf]
    %v550 = vld [vmem:[#allocation18 + $0x10] sm:$0xf]
    %v551 = vld [vmem:[#allocation18 + $0x14] sm:$0xf]
    %v552 = vld [vmem:[#allocation18 + $0x18] sm:$0xf]
    %v553 = vld [vmem:[#allocation18 + $0x1c] sm:$0xf]
    %v562 = vunpack.c.l.b16 %v546
    %v563 = vunpack.c.l.b16 %v547
    %v564 = vunpack.c.l.b16 %v548
    %v565 = vunpack.c.l.b16 %v549
    %v566 = vunpack.c.l.b16 %v550
    %v567 = vunpack.c.l.b16 %v551
    %v568 = vunpack.c.l.b16 %v552
    %v569 = vunpack.c.l.b16 %v553
    %v570 = vpack.c.b16 %v563, %v562
    %v571 = vpack.c.b16 %v565, %v564
    %v572 = vpack.c.b16 %v567, %v566
    %v573 = vpack.c.b16 %v569, %v568
    %v579 = vsel %vm388, %v544, 0
    %v582 = vsel %vm388, %v545, 0
    %584 = vmatprep.subr.bf16.mxu0 0
    %585 = vmatpush1.bf16.msra.mxu0 %v570
    %586 = vmatprep.subr.bf16.mxu0 0
    %587 = vmatpush1.bf16.msra.mxu0 %v571
    %588 = vmatprep.subr.bf16.mxu0 0
    %589 = vmatpush1.bf16.msra.mxu0 %v572
    %590 = vmatprep.subr.bf16.mxu0 0
    %591 = vmatpush1.bf16.msra.mxu0 %v573
    %592 = vmatprep.subr.bf16.mxu0 0
    %593 = vmatpush1.bf16.msra.mxu0 0
    %594 = vmatprep.subr.bf16.mxu0 0
    %595 = vmatpush1.bf16.msra.mxu0 0
    %596 = vmatprep.subr.bf16.mxu0 0
    %597 = vmatpush1.bf16.msra.mxu0 0
    %598 = vmatprep.subr.bf16.mxu0 0
    %599 = vmatpush1.bf16.msra.mxu0 0
    %600 = vmatprep.subr.bf16.mxu0 0
    %601 = vmatpush1.bf16.msra.mxu0 0
    %602 = vmatprep.subr.bf16.mxu0 0
    %603 = vmatpush1.bf16.msra.mxu0 0
    %604 = vmatprep.subr.bf16.mxu0 0
    %605 = vmatpush1.bf16.msra.mxu0 0
    %606 = vmatprep.subr.bf16.mxu0 0
    %607 = vmatpush1.bf16.msra.mxu0 0
    %608 = vmatprep.subr.bf16.mxu0 0
    %609 = vmatpush1.bf16.msra.mxu0 0
    %610 = vmatprep.subr.bf16.mxu0 0
    %611 = vmatpush1.bf16.msra.mxu0 0
    %612 = vmatprep.subr.bf16.mxu0 0
    %613 = vmatpush1.bf16.msra.mxu0 0
    %614 = vmatprep.subr.bf16.mxu0 0
    %615 = vmatpush1.bf16.msra.mxu0 0
    %616 = vmatprep.mubr.bf16.mxu0 0
    %617 = vmatmul.mubr.bf16.gmra.mrb[0].mxu0 %v579
    %v618 = vpop.f32.mrb[0].mxu0
    %v619 = vadd.f32 0.0, %v618
    %v620 = vpop.f32.mrb[0].mxu0
    %v621 = vpop.f32.mrb[0].mxu0
    %v622 = vadd.f32 0.0, %v621
    %v623 = vpop.f32.mrb[0].mxu0
    %624 = vmatprep.mubr.bf16.mxu0 0
    %625 = vmatmul.mubr.bf16.gmra.mrb[0].mxu0 %v582
    %v626 = vpop.f32.mrb[0].mxu0
    %v627 = vadd.f32 0.0, %v626
    %v628 = vpop.f32.mrb[0].mxu0
    %v629 = vpop.f32.mrb[0].mxu0
    %v630 = vadd.f32 0.0, %v629
    %v631 = vpop.f32.mrb[0].mxu0
    %632 = vdwg.mxu0
    %637 = vrot.lane.b32.xlu0 %v619, 64
    %v638 = vpop.permute.xlu0 %637
    %639 = vrot.lane.b32.xlu0 %v622, 64
    %v640 = vpop.permute.xlu0 %639
    %641 = vrot.lane.b32.xlu0 %v627, 64
    %v642 = vpop.permute.xlu0 %641
    %643 = vrot.lane.b32.xlu0 %v630, 64
    %v644 = vpop.permute.xlu0 %643
    %v649 = vadd.f32 %v318, %v638
    %v650 = vadd.f32 %v321, %v640
    %v651 = vadd.f32 %v326, %v642
    %v652 = vadd.f32 %v329, %v644
    %v653 = vld [vmem:[#allocation19] sm:$0x1]
    %v655 = vlaneseq
    %v656 = vshrl.u32 %v655, 7
    %v657 = vsub.s32 0, %v656
    %v658 = vrot.slane %v653, %v657
    %659 = vrot.lane.b32.xlu0 %v658, 64
    %v660 = vpop.permute.xlu0 %659
    %v662 = vadd.f32 %v649, %v660
    %v663 = vadd.f32 %v650, %v660
    %v664 = vadd.f32 %v651, %v660
    %v665 = vadd.f32 %v652, %v660
    %v666 = vmax.f32 %v662, 0.0
    %v667 = vmax.f32 %v663, 0.0
    %v668 = vmax.f32 %v664, 0.0
    %v669 = vmax.f32 %v665, 0.0
    %v670 = vpack.c.bf16 %v667, %v666
    %v671 = vpack.c.bf16 %v669, %v668
    %v672 = vld [vmem:[#allocation21] sm:$0xf]
    %v673 = vld [vmem:[#allocation21 + $0x4] sm:$0xf]
    %v674 = vld [vmem:[#allocation21 + $0x8] sm:$0xf]
    %v675 = vld [vmem:[#allocation21 + $0xc] sm:$0xf]
    %v676 = vld [vmem:[#allocation21 + $0x10] sm:$0xf]
    %v677 = vld [vmem:[#allocation21 + $0x14] sm:$0xf]
    %v678 = vld [vmem:[#allocation21 + $0x18] sm:$0xf]
    %v679 = vld [vmem:[#allocation21 + $0x1c] sm:$0xf]
    %v680 = vld [vmem:[#allocation22] sm:$0x1]
    %v682 = vlaneseq
    %v683 = vshrl.u32 %v682, 7
    %v684 = vsub.s32 0, %v683
    %v685 = vrot.slane %v680, %v684
    %689 = vrot.lane.b32.xlu0 %v670, 64
    %v690 = vpop.permute.xlu0 %689
    %691 = vrot.lane.b32.xlu0 %v671, 64
    %v692 = vpop.permute.xlu0 %691
    %v701 = vunpack.c.l.b16 %v672
    %v702 = vunpack.c.l.b16 %v673
    %v703 = vunpack.c.l.b16 %v674
    %v704 = vunpack.c.l.b16 %v675
    %v705 = vunpack.c.l.b16 %v676
    %v706 = vunpack.c.l.b16 %v677
    %v707 = vunpack.c.l.b16 %v678
    %v708 = vunpack.c.l.b16 %v679
    %v709 = vpack.c.b16 %v702, %v701
    %v710 = vpack.c.b16 %v704, %v703
    %v711 = vpack.c.b16 %v706, %v705
    %v712 = vpack.c.b16 %v708, %v707
    %v718 = vsel %vm388, %v690, 0
    %v721 = vsel %vm388, %v692, 0
    %723 = vmatprep.subr.bf16.mxu0 0
    %724 = vmatpush1.bf16.msra.mxu0 %v709
    %725 = vmatprep.subr.bf16.mxu0 0
    %726 = vmatpush1.bf16.msra.mxu0 %v710
    %727 = vmatprep.subr.bf16.mxu0 0
    %728 = vmatpush1.bf16.msra.mxu0 %v711
    %729 = vmatprep.subr.bf16.mxu0 0
    %730 = vmatpush1.bf16.msra.mxu0 %v712
    %731 = vmatprep.subr.bf16.mxu0 0
    %732 = vmatpush1.bf16.msra.mxu0 0
    %733 = vmatprep.subr.bf16.mxu0 0
    %734 = vmatpush1.bf16.msra.mxu0 0
    %735 = vmatprep.subr.bf16.mxu0 0
    %736 = vmatpush1.bf16.msra.mxu0 0
    %737 = vmatprep.subr.bf16.mxu0 0
    %738 = vmatpush1.bf16.msra.mxu0 0
    %739 = vmatprep.subr.bf16.mxu0 0
    %740 = vmatpush1.bf16.msra.mxu0 0
    %741 = vmatprep.subr.bf16.mxu0 0
    %742 = vmatpush1.bf16.msra.mxu0 0
    %743 = vmatprep.subr.bf16.mxu0 0
    %744 = vmatpush1.bf16.msra.mxu0 0
    %745 = vmatprep.subr.bf16.mxu0 0
    %746 = vmatpush1.bf16.msra.mxu0 0
    %747 = vmatprep.subr.bf16.mxu0 0
    %748 = vmatpush1.bf16.msra.mxu0 0
    %749 = vmatprep.subr.bf16.mxu0 0
    %750 = vmatpush1.bf16.msra.mxu0 0
    %751 = vmatprep.subr.bf16.mxu0 0
    %752 = vmatpush1.bf16.msra.mxu0 0
    %753 = vmatprep.subr.bf16.mxu0 0
    %754 = vmatpush1.bf16.msra.mxu0 0
    %755 = vmatprep.mubr.bf16.mxu0 0
    %756 = vmatmul.mubr.bf16.gmra.mrb[0].mxu0 %v718
    %v757 = vpop.f32.mrb[0].mxu0
    %v758 = vadd.f32 %v685, %v757
    %v759 = vpop.f32.mrb[0].mxu0
    %v760 = vpop.f32.mrb[0].mxu0
    %v761 = vadd.f32 %v685, %v760
    %v762 = vpop.f32.mrb[0].mxu0
    %763 = vmatprep.mubr.bf16.mxu0 0
    %764 = vmatmul.mubr.bf16.gmra.mrb[0].mxu0 %v721
    %v765 = vpop.f32.mrb[0].mxu0
    %v766 = vadd.f32 %v685, %v765
    %v767 = vpop.f32.mrb[0].mxu0
    %v768 = vpop.f32.mrb[0].mxu0
    %v769 = vadd.f32 %v685, %v768
    %v770 = vpop.f32.mrb[0].mxu0
    %771 = vdwg.mxu0
    %v772 = vmax.f32 %v758, 0.0
    %v773 = vmax.f32 %v761, 0.0
    %v774 = vmax.f32 %v766, 0.0
    %v775 = vmax.f32 %v769, 0.0
    %v776 = vpack.c.bf16 %v773, %v772
    %v777 = vpack.c.bf16 %v775, %v774
    %v778 = vld [vmem:[#allocation24] sm:$0xf]
    %v779 = vld [vmem:[#allocation24 + $0x4] sm:$0xf]
    %v780 = vld [vmem:[#allocation24 + $0x8] sm:$0xf]
    %v781 = vld [vmem:[#allocation24 + $0xc] sm:$0xf]
    %v782 = vld [vmem:[#allocation24 + $0x10] sm:$0xf]
    %v783 = vld [vmem:[#allocation24 + $0x14] sm:$0xf]
    %v784 = vld [vmem:[#allocation24 + $0x18] sm:$0xf]
    %v785 = vld [vmem:[#allocation24 + $0x1c] sm:$0xf]
    %v786 = vld [vmem:[#allocation25] sm:$0x1]
    %v788 = vlaneseq
    %v789 = vshrl.u32 %v788, 7
    %v790 = vsub.s32 0, %v789
    %v791 = vrot.slane %v786, %v790
    %v801 = vunpack.c.l.b16 %v778
    %v802 = vunpack.c.l.b16 %v779
    %v803 = vunpack.c.l.b16 %v780
    %v804 = vunpack.c.l.b16 %v781
    %v805 = vunpack.c.l.b16 %v782
    %v806 = vunpack.c.l.b16 %v783
    %v807 = vunpack.c.l.b16 %v784
    %v808 = vunpack.c.l.b16 %v785
    %v809 = vpack.c.b16 %v802, %v801
    %v810 = vpack.c.b16 %v804, %v803
    %v811 = vpack.c.b16 %v806, %v805
    %v812 = vpack.c.b16 %v808, %v807
    %v818 = vsel %vm388, %v776, 0
    %v821 = vsel %vm388, %v777, 0
    %823 = vmatprep.subr.bf16.mxu0 0
    %824 = vmatpush1.bf16.msra.mxu0 %v809
    %825 = vmatprep.subr.bf16.mxu0 0
    %826 = vmatpush1.bf16.msra.mxu0 %v810
    %827 = vmatprep.subr.bf16.mxu0 0
    %828 = vmatpush1.bf16.msra.mxu0 %v811
    %829 = vmatprep.subr.bf16.mxu0 0
    %830 = vmatpush1.bf16.msra.mxu0 %v812
    %831 = vmatprep.subr.bf16.mxu0 0
    %832 = vmatpush1.bf16.msra.mxu0 0
    %833 = vmatprep.subr.bf16.mxu0 0
    %834 = vmatpush1.bf16.msra.mxu0 0
    %835 = vmatprep.subr.bf16.mxu0 0
    %836 = vmatpush1.bf16.msra.mxu0 0
    %837 = vmatprep.subr.bf16.mxu0 0
    %838 = vmatpush1.bf16.msra.mxu0 0
    %839 = vmatprep.subr.bf16.mxu0 0
    %840 = vmatpush1.bf16.msra.mxu0 0
    %841 = vmatprep.subr.bf16.mxu0 0
    %842 = vmatpush1.bf16.msra.mxu0 0
    %843 = vmatprep.subr.bf16.mxu0 0
    %844 = vmatpush1.bf16.msra.mxu0 0
    %845 = vmatprep.subr.bf16.mxu0 0
    %846 = vmatpush1.bf16.msra.mxu0 0
    %847 = vmatprep.subr.bf16.mxu0 0
    %848 = vmatpush1.bf16.msra.mxu0 0
    %849 = vmatprep.subr.bf16.mxu0 0
    %850 = vmatpush1.bf16.msra.mxu0 0
    %851 = vmatprep.subr.bf16.mxu0 0
    %852 = vmatpush1.bf16.msra.mxu0 0
    %853 = vmatprep.subr.bf16.mxu0 0
    %854 = vmatpush1.bf16.msra.mxu0 0
    %855 = vmatprep.mubr.bf16.mxu0 0
    %856 = vmatmul.mubr.bf16.gmra.mrb[0].mxu0 %v818
    %v857 = vpop.f32.mrb[0].mxu0
    %v858 = vadd.f32 %v791, %v857
    %v859 = vpop.f32.mrb[0].mxu0
    %v860 = vpop.f32.mrb[0].mxu0
    %v861 = vadd.f32 %v791, %v860
    %v862 = vpop.f32.mrb[0].mxu0
    %863 = vmatprep.mubr.bf16.mxu0 0
    %864 = vmatmul.mubr.bf16.gmra.mrb[0].mxu0 %v821
    %v865 = vpop.f32.mrb[0].mxu0
    %v866 = vadd.f32 %v791, %v865
    %v867 = vpop.f32.mrb[0].mxu0
    %v868 = vpop.f32.mrb[0].mxu0
    %v869 = vadd.f32 %v791, %v868
    %v870 = vpop.f32.mrb[0].mxu0
    %871 = vdwg.mxu0
    %v872 = vld [vmem:[#allocation7] sm:$0x1]
    %s873 = smul.u32 %s229, 16
    %v874 = vstv %s873
    %v875 = vsub.s32 %v872, %v874
    %v876 = vlaneseq
    %v877 = vshrl.u32 %v876, 7
    %v878 = vadd.s32 %v877, 8
    %v879 = vlaneseq
    %v880 = vshrl.u32 %v879, 7
    %v881 = vsub.s32 0, %v880
    %v882 = vrot.slane %v875, %v881
    %vm883 = vcmp.eq.s32.totalorder %v877, %v882
    %vm884 = vcmp.eq.s32.totalorder %v878, %v882
    %v885 = vsel %vm883, 1, 0
    %v886 = vsel %vm884, 1, 0
    %v887 = vcvt.s32.f32 %v885
    %v888 = vcvt.s32.f32 %v886
    %v889 = vpack.c.bf16 %v888, %v887
    %v890 = vld [vmem:[#allocation27] sm:$0xff]
    %v891 = vld [vmem:[#allocation27 + $0x8] sm:$0xff]
    %v892 = vpack.c.bf16 %v861, %v858
    %v893 = vpack.c.bf16 %v869, %v866
    %vm894 = vcmask 261120
    %v896 = vsel %vm894, %v889, 0
    %898 = vmatprep.subr.bf16.mxu0 0
    %899 = vmatpush1.bf16.msra.mxu0 %v892
    %900 = vmatprep.subr.bf16.mxu0 0
    %901 = vmatpush1.bf16.msra.mxu0 %v893
    %902 = vmatprep.subr.bf16.mxu0 0
    %903 = vmatpush1.bf16.msra.mxu0 0
    %904 = vmatprep.subr.bf16.mxu0 0
    %905 = vmatpush1.bf16.msra.mxu0 0
    %906 = vmatprep.subr.bf16.mxu0 0
    %907 = vmatpush1.bf16.msra.mxu0 0
    %908 = vmatprep.subr.bf16.mxu0 0
    %909 = vmatpush1.bf16.msra.mxu0 0
    %910 = vmatprep.subr.bf16.mxu0 0
    %911 = vmatpush1.bf16.msra.mxu0 0
    %912 = vmatprep.subr.bf16.mxu0 0
    %913 = vmatpush1.bf16.msra.mxu0 0
    %914 = vmatprep.subr.bf16.mxu0 0
    %915 = vmatpush1.bf16.msra.mxu0 0
    %916 = vmatprep.subr.bf16.mxu0 0
    %917 = vmatpush1.bf16.msra.mxu0 0
    %918 = vmatprep.subr.bf16.mxu0 0
    %919 = vmatpush1.bf16.msra.mxu0 0
    %920 = vmatprep.subr.bf16.mxu0 0
    %921 = vmatpush1.bf16.msra.mxu0 0
    %922 = vmatprep.subr.bf16.mxu0 0
    %923 = vmatpush1.bf16.msra.mxu0 0
    %924 = vmatprep.subr.bf16.mxu0 0
    %925 = vmatpush1.bf16.msra.mxu0 0
    %926 = vmatprep.subr.bf16.mxu0 0
    %927 = vmatpush1.bf16.msra.mxu0 0
    %928 = vmatprep.subr.bf16.mxu0 0
    %929 = vmatpush1.bf16.msra.mxu0 0
    %930 = vmatprep.mubr.bf16.mxu0 0
    %931 = vmatmul.mubr.bf16.gmra.mrb[0].mxu0 %v896
    %v932 = vpop.f32.mrb[0].mxu0
    %v933 = vadd.f32 0.0, %v932
    %v934 = vpop.f32.mrb[0].mxu0
    %v935 = vpop.f32.mrb[0].mxu0
    %v936 = vadd.f32 0.0, %v935
    %v937 = vpop.f32.mrb[0].mxu0
    %938 = vdwg.mxu0
    %v939 = vadd.f32 %v890, %v933
    %v940 = vadd.f32 %v891, %v936
    %941 = vst.msk [vmem:[#allocation27] sm:$0xff] %vm388, %v939
    %942 = vst.msk [vmem:[#allocation27 + $0x8] sm:$0xff] %vm388, %v940
    // Predicated region
    $region118: #{gnn_forward.2} parent=1 // pred_check
      _
    $region119: #{gnn_forward.2} parent=1 // pred_check_branch
      %944 = sbr.rel (0) target = $region121
    $region120: #{gnn_forward.2} parent=1 // pred_region
      %s945 = sld [smem:[#allocation3]]
      %s946 = smul.u32 2, %s945
      %s948 = ssub.s32 256, 256
      %949 = vsyncadd [#allocation6], %s948
      %s950 = smul.addr %s946, 128
      %s951 = scalar_lea.hbm %s15, %s950
      %s952 = sshll.u32 [#allocation27], 4
      %s953 = int_to_ptr.vmem [resolvable:$true] %s952
      %958 = dma.vmem_to_hbm [thread:$0]  %s953, 256, %s951, [#allocation6], 128, 128, 8
    $region121: #{gnn_forward.2} parent=1 // pred_fallthru
      _
    // Predicated region
    $region122: #{gnn_forward.2} parent=1 // pred_check
      _
    $region123: #{gnn_forward.2} parent=1 // pred_check_branch
      %960 = sbr.rel (0) target = $region125
    $region124: #{gnn_forward.2} parent=1 // pred_region
      %961 = dma.done [#allocation6], 256
    $region125: #{gnn_forward.2} parent=1 // pred_fallthru
      _
    %962 = vsyncpa [#allocation5], 1
    %963 = vsyncpa [#allocation8], 1
    %964 = vsyncpa [#allocation11], 1
    %965 = vsyncpa [#allocation14], 1
    %966 = vsyncpa [#allocation17], 1
    %967 = vsyncpa [#allocation20], 1
    %968 = vsyncpa [#allocation23], 1
    %969 = vsyncpa [#allocation26], 1
    %970 = vsyncpa [#allocation6], 1

</llo_original>
